<compile_context>
chip_gen: v6e
topology: v6e:2x2x1
jax: 0.10.0
libtpu: 0.0.40
codegen_flags: <defaults>
</compile_context>

<pallas_src>
import jax
import jax.numpy as jnp
from jax.experimental import pallas as pl
from jax.experimental.pallas import tpu as pltpu

_K = 5            # Conv1d kernel size (both layers)
_BN_EPS = 1e-5


def _round_up(n, m):
    return -(-n // m) * m


def _make_kernel(TB, Cp, L1p, P1, P1x, L2p, P2):
    """Builds the fused conv->bn->relu->pool (x2) kernel for fixed static sizes."""

    def kernel(xc_ref, w1_ref, w2_ref, t_ref, o_ref):
        # xc_ref: (TB*L1p, K*Cin)  im2col'd layer-1 input (compute dtype)
        # w1_ref: (K*Cin, Cp)      BN-scale-folded conv1 weights
        # w2_ref: (K*Cp, Cp)       BN-scale-folded conv2 weights (tap-major rows)
        # t_ref:  (2, Cp) f32      folded bias+BN shifts (row 0 = layer1, row 1 = layer2)
        # o_ref:  (TB, P2, Cp)     output block (compute dtype)
        cdt = xc_ref.dtype

        # ---- Layer 1: single MXU matmul over the whole block (M = TB*L1p) ----
        y = jnp.dot(xc_ref[...], w1_ref[...], preferred_element_type=jnp.float32)
        y = jnp.maximum(y + t_ref[0:1, :], 0.0)            # folded bias/BN + ReLU (f32)
        y = y.reshape(TB, L1p, Cp)                          # L1p % 8 == 0 -> aligned split
        # MaxPool1d(kernel=2, floor mode): pairwise max along positions.
        p1 = jnp.max(y[:, :2 * P1, :].reshape(TB, P1, 2, Cp), axis=2)   # (TB, P1, Cp) f32

        # Zero-pad positions so every layer-2 tap slice below has exactly L2p rows.
        if P1x > P1:
            p1 = jnp.concatenate(
                [p1, jnp.zeros((TB, P1x - P1, Cp), p1.dtype)], axis=1)
        h = p1.astype(cdt)                                  # back to compute dtype for the MXU

        # ---- Layer 2: accumulate over tap pairs (no K*Cp-wide hcol buffer).
        # A pair gives a 2*Cp = 256-deep contraction (full v6e/v7x MXU depth; on
        # v5e it is simply two 128-deep passes).
        z = None
        for k0 in range(0, _K, 2):
            k1 = min(k0 + 2, _K)
            if k1 - k0 == 2:
                hg = jnp.concatenate(
                    [h[:, k0:k0 + L2p, :], h[:, k0 + 1:k0 + 1 + L2p, :]], axis=-1)
            else:
                hg = h[:, k0:k0 + L2p, :]
            part = jnp.dot(hg.reshape(TB * L2p, (k1 - k0) * Cp),
                           w2_ref[k0 * Cp:k1 * Cp, :],
                           preferred_element_type=jnp.float32)
            z = part if z is None else z + part

        z = jnp.maximum(z + t_ref[1:2, :], 0.0).reshape(TB, L2p, Cp)
        p2 = jnp.max(z[:, :2 * P2, :].reshape(TB, P2, 2, Cp), axis=2)
        o_ref[...] = p2.astype(o_ref.dtype)

    return kernel


def single_conv(x_ncl, params, *, compute_dtype=jnp.bfloat16):
    """x_ncl: (B, Cin, L) - PyTorch NCL layout. Returns (B, Cout, L_out) in x's dtype."""
    (w1, b1, g1, be1, m1, v1, w2, b2, g2, be2, m2, v2) = params

    B, Cin, L = x_ncl.shape
    Cout = w1.shape[0]
    L1 = L - (_K - 1)
    P1 = L1 // 2
    L2 = P1 - (_K - 1)
    P2 = L2 // 2
    if P2 < 1:
        raise ValueError(f"L={L} too short for K5,P2,K5,P2 (need L >= 16)")

    # Position counts padded to sublane (8) multiples so in-kernel flattens are free.
    L1p = _round_up(L1, 8)
    L2p = _round_up(L2, 8)
    Lx = L1p + _K - 1          # x rows needed so each layer-1 tap slice has L1p rows
    P1x = L2p + _K - 1         # pooled-1 rows needed so each layer-2 tap slice has L2p rows

    # ---- Fold conv bias + eval-mode BN into per-channel weight scale + one shift ----
    s1 = g1 / jnp.sqrt(v1 + _BN_EPS)
    s2 = g2 / jnp.sqrt(v2 + _BN_EPS)
    shift1 = (b1 - m1) * s1 + be1
    shift2 = (b2 - m2) * s2 + be2

    # Lane-pad the channel axis to a multiple of 128 (lane-dense MXU N / stores).
    Cp = _round_up(Cout, 128)
    pc = Cp - Cout

    # w1: (Cout, Cin, K) -> (K, Cin, Cout)*s1 -> (K*Cin, Cp)   [row order k*Cin + cin]
    w1_2d = (jnp.transpose(w1, (2, 1, 0)) * s1[None, None, :]).reshape(_K * Cin, Cout)
    w1_2d = jnp.pad(w1_2d, ((0, 0), (0, pc)))
    # w2: (Cout, Cin2, K) -> (K, Cin2, Cout)*s2 -> pad both channel axes -> (K*Cp, Cp)
    w2_k = jnp.transpose(w2, (2, 1, 0)) * s2[None, None, :]
    w2_k = jnp.pad(w2_k, ((0, 0), (0, pc), (0, pc)))
    w2_2d = w2_k.reshape(_K * Cp, Cp)
    shifts = jnp.stack([jnp.pad(shift1, (0, pc)),
                        jnp.pad(shift2, (0, pc))]).astype(jnp.float32)

    # ---- Generation-aware VMEM budget / TensorCore count ----
    try:
        kind = jax.devices()[0].device_kind.lower().replace(" ", "")
    except Exception:
        kind = ""
    is_v7 = ("v7" in kind) or ("tpu7" in kind)
    big_vmem = (not is_v7) and any(t in kind for t in ("v4", "v5", "v6"))
    if big_vmem:                       # 128 MiB physical VMEM (v4 / v5e / v6e)
        vmem_limit, step_budget = 100 * 2**20, 64 * 2**20
    else:                              # v7x (64 MiB physical) or unknown: conservative
        vmem_limit, step_budget = 48 * 2**20, 24 * 2**20
    n_cores = 2 if is_v7 else 1

    csz = jnp.dtype(compute_dtype).itemsize
    P2p = _round_up(P2, 8)

    def step_bytes(tb):
        # (8,128)-tile-padded VMEM footprint of one grid step, counting the default
        # two pipeline buffers for every pallas_call input/output.
        xc = 2 * tb * L1p * _round_up(_K * Cin, 128) * csz          # im2col input block
        ob = 2 * tb * P2p * Cp * csz                                # output block
        wb = 2 * ((_round_up(_K * Cin, 8) + _K * Cp) * Cp * csz     # w1 + w2
                  + _round_up(2, 8) * Cp * 4)                       # shifts
        y = tb * L1p * Cp * 4                                       # layer-1 pre-pool (f32)
        p1 = tb * P1x * Cp * (4 + csz)                              # pooled-1 (f32 + cast copy)
        hg = tb * L2p * 2 * Cp * csz                                # widest tap-pair view
        zb = 2 * tb * L2p * Cp * 4                                  # layer-2 accumulator + partial
        p2 = tb * P2p * Cp * (4 + csz)                              # pooled-2 + store cast
        return xc + ob + wb + y + p1 + hg + zb + p2

    # Batch rows per grid step: target M = TB*L1p ~ 512-1024, keep TB a multiple of 8
    # (tile-aligned block rows), shrink while the step exceeds the VMEM budget.
    TB = max(8, _round_up(max(1, 1024 // L1p), 8))
    TB = min(TB, _round_up(B, 8))
    while TB > 8 and step_bytes(TB) > step_budget:
        TB -= 8
    nblk = pl.cdiv(B, TB)
    if n_cores > 1 and B > 1 and nblk % n_cores:
        nblk += n_cores - nblk % n_cores     # balance grid steps across v7x TensorCores
    B_pad = nblk * TB

    # ---- Lane-dense layer-1 input: im2col in the wrapper (layout plumbing only).
    #      Each row is a contiguous length-K*Cin window, dense in HBM, so the kernel's
    #      layer-1 input needs no in-kernel relayout. ----
    x_nlc = jnp.transpose(x_ncl, (0, 2, 1)).astype(compute_dtype)        # (B, L, Cin)
    x_nlc = jnp.pad(x_nlc, ((0, B_pad - B), (0, Lx - L), (0, 0)))        # (B_pad, Lx, Cin)
    xcol = jnp.concatenate([x_nlc[:, k:k + L1p, :] for k in range(_K)], axis=-1)
    xcol = xcol.reshape(B_pad * L1p, _K * Cin)                           # (B_pad*L1p, K*Cin)

    kernel = _make_kernel(TB, Cp, L1p, P1, P1x, L2p, P2)

    out = pl.pallas_call(
        kernel,
        out_shape=jax.ShapeDtypeStruct((B_pad, P2, Cp), compute_dtype),
        grid_spec=pltpu.PrefetchScalarGridSpec(
            num_scalar_prefetch=0,
            grid=(nblk,),
            in_specs=[
                pl.BlockSpec((TB * L1p, _K * Cin), lambda i: (i, 0)),    # im2col'd x
                # Grid-invariant inputs below; kept at default double-buffering
                # (cheap at Cp=128, accounted for in step_bytes above).
                pl.BlockSpec((_K * Cin, Cp), lambda i: (0, 0)),          # folded w1
                pl.BlockSpec((_K * Cp, Cp), lambda i: (0, 0)),           # folded w2
                pl.BlockSpec((2, Cp), lambda i: (0, 0)),                 # packed shifts
            ],
            out_specs=pl.BlockSpec((TB, P2, Cp), lambda i: (i, 0, 0)),
        ),
        compiler_params=pltpu.CompilerParams(
            dimension_semantics=("parallel",),
            vmem_limit_bytes=vmem_limit,
        ),
    )(xcol, w1_2d.astype(compute_dtype), w2_2d.astype(compute_dtype), shifts)

    out = out[:B, :, :Cout]                                   # drop batch/channel padding
    # Back to PyTorch's NCL layout (consumers wanting NLC can skip this transpose).
    return jnp.transpose(out, (0, 2, 1)).astype(x_ncl.dtype)


def _ref_forward(x_ncl, params):
    """Pure-JAX reference (same eval-mode BN semantics) for validation."""
    (w1, b1, g1, be1, m1, v1, w2, b2, g2, be2, m2, v2) = params

    def block(x, w, b, g, be, m, v):
        y = jax.lax.conv_general_dilated(
            x, w, window_strides=(1,), padding='VALID',
            dimension_numbers=('NCH', 'OIH', 'NCH'))
        y = y + b[None, :, None]
        s = g / jnp.sqrt(v + _BN_EPS)
        y = (y - m[None, :, None]) * s[None, :, None] + be[None, :, None]
        y = jnp.maximum(y, 0.0)
        B, C, L = y.shape
        P = L // 2
        return jnp.max(y[:, :, :2 * P].reshape(B, C, P, 2), axis=-1)

    y = block(x_ncl, w1, b1, g1, be1, m1, v1)
    y = block(y, w2, b2, g2, be2, m2, v2)
    return y


if __name__ == "__main__":
    B, Cin, Cout, L = 8, 4, 8, 64
    key = jax.random.PRNGKey(0)
    kx, *ks = jax.random.split(key, 14)

    x = jax.random.normal(kx, (B, Cin, L), jnp.float32)

    w1 = 0.1 * jax.random.normal(ks[0], (Cout, Cin, _K), jnp.float32)
    b1 = 0.1 * jax.random.normal(ks[1], (Cout,), jnp.float32)
    g1 = 1.0 + 0.1 * jax.random.normal(ks[2], (Cout,), jnp.float32)
    be1 = 0.1 * jax.random.normal(ks[3], (Cout,), jnp.float32)
    m1 = 0.1 * jax.random.normal(ks[4], (Cout,), jnp.float32)
    v1 = 0.5 + jnp.abs(jax.random.normal(ks[5], (Cout,), jnp.float32))

    w2 = 0.1 * jax.random.normal(ks[6], (Cout, Cout, _K), jnp.float32)
    b2 = 0.1 * jax.random.normal(ks[7], (Cout,), jnp.float32)
    g2 = 1.0 + 0.1 * jax.random.normal(ks[8], (Cout,), jnp.float32)
    be2 = 0.1 * jax.random.normal(ks[9], (Cout,), jnp.float32)
    m2 = 0.1 * jax.random.normal(ks[10], (Cout,), jnp.float32)
    v2 = 0.5 + jnp.abs(jax.random.normal(ks[11], (Cout,), jnp.float32))

    params = (w1, b1, g1, be1, m1, v1, w2, b2, g2, be2, m2, v2)

    ref = jax.block_until_ready(_ref_forward(x, params))

    # f32 compute path: tight check against the reference.
    out_f32 = jax.block_until_ready(single_conv(x, params, compute_dtype=jnp.float32))
    assert out_f32.shape == ref.shape == (B, Cout, 13), (out_f32.shape, ref.shape)
    assert jnp.allclose(out_f32, ref, atol=1e-4, rtol=1e-4), "f32 path mismatch vs reference"

    # bf16 compute path (production default): looser numerical tolerance.
    out_bf16 = jax.block_until_ready(single_conv(x, params, compute_dtype=jnp.bfloat16))
    assert out_bf16.shape == ref.shape
    assert jnp.allclose(out_bf16, ref, atol=5e-2, rtol=5e-2), "bf16 path mismatch vs reference"

    print("KERNEL_OK")
</pallas_src>

<mosaic_0001>
module attributes {stable_mosaic.version = 11 : i64} {
  func.func @kernel(%arg0: i32, %arg1: memref<512x20xf32, #tpu.memory_space<vmem>>, %arg2: memref<20x128xf32, #tpu.memory_space<vmem>>, %arg3: memref<640x128xf32, #tpu.memory_space<vmem>>, %arg4: memref<2x128xf32, #tpu.memory_space<vmem>>, %arg5: memref<8x13x128xf32, #tpu.memory_space<vmem>>) attributes {dimension_semantics = [#tpu.dimension_semantics<parallel>], iteration_bounds = array<i64: 1>, scalar_prefetch = 0 : i64, scratch_operands = 0 : i64, tpu.core_type = #tpu.core_type<tc>, window_params = [{transform_indices = @transform_0, window_bounds = array<i64: 512, 20>}, {pipeline_mode = #tpu.pipeline_mode<synchronous>, transform_indices = @transform_1, window_bounds = array<i64: 20, 128>}, {pipeline_mode = #tpu.pipeline_mode<synchronous>, transform_indices = @transform_2, window_bounds = array<i64: 640, 128>}, {pipeline_mode = #tpu.pipeline_mode<synchronous>, transform_indices = @transform_3, window_bounds = array<i64: 2, 128>}, {transform_indices = @transform_4, window_bounds = array<i64: 8, 13, 128>}]} {
    %c0 = arith.constant 0 : index
    %c0_0 = arith.constant 0 : index
    %0 = vector.load %arg1[%c0, %c0_0] : memref<512x20xf32, #tpu.memory_space<vmem>>, vector<512x20xf32>
    %c0_1 = arith.constant 0 : index
    %c0_2 = arith.constant 0 : index
    %1 = vector.load %arg2[%c0_1, %c0_2] : memref<20x128xf32, #tpu.memory_space<vmem>>, vector<20x128xf32>
    %cst = arith.constant dense<0.000000e+00> : vector<512x128xf32>
    %2 = tpu.matmul %0, %1, %cst {dimension_numbers = #tpu.dot_dimension_numbers<[1], [0], [0], [1], [0, 0, 1, 1], [], []>} : vector<512x20xf32>, vector<20x128xf32>, vector<512x128xf32> -> vector<512x128xf32>
    %c0_3 = arith.constant 0 : index
    %c0_4 = arith.constant 0 : index
    %3 = vector.load %arg4[%c0_3, %c0_4] : memref<2x128xf32, #tpu.memory_space<vmem>>, vector<1x128xf32>
    %4 = vector.broadcast %3 : vector<1x128xf32> to vector<512x128xf32>
    %5 = arith.addf %2, %4 : vector<512x128xf32>
    %cst_5 = arith.constant 0.000000e+00 : f32
    %6 = vector.broadcast %cst_5 : f32 to vector<512x128xf32>
    %7 = arith.maximumf %5, %6 : vector<512x128xf32>
    %8 = vector.shape_cast %7 : vector<512x128xf32> to vector<8x64x128xf32>
    %9 = vector.extract_strided_slice %8 {offsets = [0, 0, 0], sizes = [8, 60, 128], strides = [1, 1, 1]} : vector<8x64x128xf32> to vector<8x60x128xf32>
    %10 = vector.shape_cast %9 : vector<8x60x128xf32> to vector<8x30x2x128xf32>
    %cst_6 = arith.constant dense<0xFF800000> : vector<8x30x128xf32>
    %11 = vector.multi_reduction <maximumf>, %10, %cst_6 [2] : vector<8x30x2x128xf32> to vector<8x30x128xf32>
    %cst_7 = arith.constant 0.000000e+00 : f32
    %12 = vector.broadcast %cst_7 : f32 to vector<8x6x128xf32>
    %13 = tpu.concatenate %11, %12 in 1 : vector<8x30x128xf32>, vector<8x6x128xf32> -> vector<8x36x128xf32>
    %14 = vector.extract_strided_slice %13 {offsets = [0, 0, 0], sizes = [8, 32, 128], strides = [1, 1, 1]} : vector<8x36x128xf32> to vector<8x32x128xf32>
    %15 = vector.extract_strided_slice %13 {offsets = [0, 1, 0], sizes = [8, 32, 128], strides = [1, 1, 1]} : vector<8x36x128xf32> to vector<8x32x128xf32>
    %16 = tpu.concatenate %14, %15 in 2 : vector<8x32x128xf32>, vector<8x32x128xf32> -> vector<8x32x256xf32>
    %17 = vector.shape_cast %16 : vector<8x32x256xf32> to vector<256x256xf32>
    %c0_8 = arith.constant 0 : index
    %c0_9 = arith.constant 0 : index
    %18 = vector.load %arg3[%c0_8, %c0_9] : memref<640x128xf32, #tpu.memory_space<vmem>>, vector<256x128xf32>
    %cst_10 = arith.constant dense<0.000000e+00> : vector<256x128xf32>
    %19 = tpu.matmul %17, %18, %cst_10 {dimension_numbers = #tpu.dot_dimension_numbers<[1], [0], [0], [1], [0, 0, 1, 1], [], []>} : vector<256x256xf32>, vector<256x128xf32>, vector<256x128xf32> -> vector<256x128xf32>
    %20 = vector.extract_strided_slice %13 {offsets = [0, 2, 0], sizes = [8, 32, 128], strides = [1, 1, 1]} : vector<8x36x128xf32> to vector<8x32x128xf32>
    %21 = vector.extract_strided_slice %13 {offsets = [0, 3, 0], sizes = [8, 32, 128], strides = [1, 1, 1]} : vector<8x36x128xf32> to vector<8x32x128xf32>
    %22 = tpu.concatenate %20, %21 in 2 : vector<8x32x128xf32>, vector<8x32x128xf32> -> vector<8x32x256xf32>
    %23 = vector.shape_cast %22 : vector<8x32x256xf32> to vector<256x256xf32>
    %c256 = arith.constant 256 : index
    %c0_11 = arith.constant 0 : index
    %24 = vector.load %arg3[%c256, %c0_11] : memref<640x128xf32, #tpu.memory_space<vmem>>, vector<256x128xf32>
    %cst_12 = arith.constant dense<0.000000e+00> : vector<256x128xf32>
    %25 = tpu.matmul %23, %24, %cst_12 {dimension_numbers = #tpu.dot_dimension_numbers<[1], [0], [0], [1], [0, 0, 1, 1], [], []>} : vector<256x256xf32>, vector<256x128xf32>, vector<256x128xf32> -> vector<256x128xf32>
    %26 = arith.addf %19, %25 : vector<256x128xf32>
    %27 = vector.extract_strided_slice %13 {offsets = [0, 4, 0], sizes = [8, 32, 128], strides = [1, 1, 1]} : vector<8x36x128xf32> to vector<8x32x128xf32>
    %28 = vector.shape_cast %27 : vector<8x32x128xf32> to vector<256x128xf32>
    %c512 = arith.constant 512 : index
    %c0_13 = arith.constant 0 : index
    %29 = vector.load %arg3[%c512, %c0_13] : memref<640x128xf32, #tpu.memory_space<vmem>>, vector<128x128xf32>
    %cst_14 = arith.constant dense<0.000000e+00> : vector<256x128xf32>
    %30 = tpu.matmul %28, %29, %cst_14 {dimension_numbers = #tpu.dot_dimension_numbers<[1], [0], [0], [1], [0, 0, 1, 1], [], []>} : vector<256x128xf32>, vector<128x128xf32>, vector<256x128xf32> -> vector<256x128xf32>
    %31 = arith.addf %26, %30 : vector<256x128xf32>
    %c1 = arith.constant 1 : index
    %c0_15 = arith.constant 0 : index
    %32 = vector.load %arg4[%c1, %c0_15] : memref<2x128xf32, #tpu.memory_space<vmem>>, vector<1x128xf32>
    %33 = vector.broadcast %32 : vector<1x128xf32> to vector<256x128xf32>
    %34 = arith.addf %31, %33 : vector<256x128xf32>
    %cst_16 = arith.constant 0.000000e+00 : f32
    %35 = vector.broadcast %cst_16 : f32 to vector<256x128xf32>
    %36 = arith.maximumf %34, %35 : vector<256x128xf32>
    %37 = vector.shape_cast %36 : vector<256x128xf32> to vector<8x32x128xf32>
    %38 = vector.extract_strided_slice %37 {offsets = [0, 0, 0], sizes = [8, 26, 128], strides = [1, 1, 1]} : vector<8x32x128xf32> to vector<8x26x128xf32>
    %39 = vector.shape_cast %38 : vector<8x26x128xf32> to vector<8x13x2x128xf32>
    %cst_17 = arith.constant dense<0xFF800000> : vector<8x13x128xf32>
    %40 = vector.multi_reduction <maximumf>, %39, %cst_17 [2] : vector<8x13x2x128xf32> to vector<8x13x128xf32>
    %c0_18 = arith.constant 0 : index
    %c0_19 = arith.constant 0 : index
    %c0_20 = arith.constant 0 : index
    %41 = vector.load %arg5[%c0_18, %c0_19, %c0_20] : memref<8x13x128xf32, #tpu.memory_space<vmem>>, vector<8x13x128xf32>
    tpu.vector_store %arg5[%c0_18, %c0_19, %c0_20], %40 {strides = array<i32>} : memref<8x13x128xf32, #tpu.memory_space<vmem>>, vector<8x13x128xf32>,
    return
  }
  func.func @transform_0(%arg0: i32) -> (i32, i32) {
    %c0_i32 = arith.constant 0 : i32
    %c0_i32_0 = arith.constant 0 : i32
    return %arg0, %c0_i32 : i32, i32
  }
  func.func @transform_1(%arg0: i32) -> (i32, i32) {
    %c0_i32 = arith.constant 0 : i32
    %c0_i32_0 = arith.constant 0 : i32
    %c0_i32_1 = arith.constant 0 : i32
    return %c0_i32, %c0_i32_0 : i32, i32
  }
  func.func @transform_2(%arg0: i32) -> (i32, i32) {
    %c0_i32 = arith.constant 0 : i32
    %c0_i32_0 = arith.constant 0 : i32
    %c0_i32_1 = arith.constant 0 : i32
    return %c0_i32, %c0_i32_0 : i32, i32
  }
  func.func @transform_3(%arg0: i32) -> (i32, i32) {
    %c0_i32 = arith.constant 0 : i32
    %c0_i32_0 = arith.constant 0 : i32
    %c0_i32_1 = arith.constant 0 : i32
    return %c0_i32, %c0_i32_0 : i32, i32
  }
  func.func @transform_4(%arg0: i32) -> (i32, i32, i32) {
    %c0_i32 = arith.constant 0 : i32
    %c0_i32_0 = arith.constant 0 : i32
    %c0_i32_1 = arith.constant 0 : i32
    return %arg0, %c0_i32, %c0_i32_0 : i32, i32, i32
  }
}

</mosaic_0001>

<llo_original>
// kernel: tpu_custom_call.1
$region0: #{tpu_custom_call.1}
  #allocation0 [shape = 'u32[]', space=smem, size = 0x4, offset = 0x4, fixed_abs, tag = 'smem constant byte address 0x4 - core index']
  #allocation1 [shape = 'u32[144,128]{1,0:T(1,128)}', space=vmem, size = 0x12000, scoped, tag = 'internal scratch']
  %s0 = inlined_call_operand.vmem [shape: f32[512,20], index: 0, kind: input, shape index: {}]
  %s1 = inlined_call_operand.vmem [shape: f32[20,128], index: 1, kind: input, shape index: {}]
  %s2 = inlined_call_operand.hbm [shape: f32[640,128], index: 2, kind: input, shape index: {}]
  %s3 = inlined_call_operand.vmem [shape: f32[2,128], index: 3, kind: input, shape index: {}]
  %s4 = inlined_call_operand.vmem [shape: f32[8,13,128], index: 4, kind: output, shape index: {}]
  %s5 = sld [smem:[#allocation0]]
  $region30: #{tpu_custom_call.1} parent=0
    _
  %s7 = ssub.s32 1, %s5
  %s8 = scalar_select 0, %s7, %s5
  $region1: #{tpu_custom_call.1} parent=0
    #allocation2 [shape = 'u8[327680]{0}', space=vmem, size = 0x50000, scoped, tag = 'input window, operand 2, single buffered']
    #allocation3 [shape = 's32[1]{0}', space=sflag, size = 0x4, scoped, tag = 'scoped memory for tpu_custom_call.1']
    %9 = vsyncpa [#allocation3], 0
    // Predicated region
    $region2: #{tpu_custom_call.1} parent=1 // pred_check
      _
    $region3: #{tpu_custom_call.1} parent=1 // pred_check_branch
      %11 = sbr.rel (0) target = $region5
    $region4: #{tpu_custom_call.1} parent=1 // pred_region
      _
    $region5: #{tpu_custom_call.1} parent=1 // pred_fallthru
      _
    // Predicated region
    $region6: #{tpu_custom_call.1} parent=1 // pred_check
      _
    $region7: #{tpu_custom_call.1} parent=1 // pred_check_branch
      %13 = sbr.rel (0) target = $region9
    $region8: #{tpu_custom_call.1} parent=1 // pred_region
      _
    $region9: #{tpu_custom_call.1} parent=1 // pred_fallthru
      _
    // Predicated region
    $region10: #{tpu_custom_call.1} parent=1 // pred_check
      _
    $region11: #{tpu_custom_call.1} parent=1 // pred_check_branch
      %15 = sbr.rel (0) target = $region13
    $region12: #{tpu_custom_call.1} parent=1 // pred_region
      %s17 = ssub.s32 10240, 10240
      %18 = vsyncadd [#allocation3], %s17
      %s19 = sshll.u32 [#allocation2], 4
      %s20 = int_to_ptr.vmem [resolvable:$true] %s19
      %25 = dma.hbm_to_vmem [thread:$0]  %s2, 10240, %s20, [#allocation3], 128, 128, 8
    $region13: #{tpu_custom_call.1} parent=1 // pred_fallthru
      _
    // Predicated region
    $region14: #{tpu_custom_call.1} parent=1 // pred_check
      _
    $region15: #{tpu_custom_call.1} parent=1 // pred_check_branch
      %27 = sbr.rel (0) target = $region17
    $region16: #{tpu_custom_call.1} parent=1 // pred_region
      _
    $region17: #{tpu_custom_call.1} parent=1 // pred_fallthru
      _
    // Predicated region
    $region18: #{tpu_custom_call.1} parent=1 // pred_check
      _
    $region19: #{tpu_custom_call.1} parent=1 // pred_check_branch
      %29 = sbr.rel (0) target = $region21
    $region20: #{tpu_custom_call.1} parent=1 // pred_region
      %30 = dma.done [#allocation3], 10240
    $region21: #{tpu_custom_call.1} parent=1 // pred_fallthru
      _
    %v31 = vld [vmem:[%s0] sm:$0xff]
    %v32 = vld [vmem:[%s0 + $0x8] sm:$0xff]
    %v33 = vld [vmem:[%s0 + $0x10] sm:$0xff]
    %v34 = vld [vmem:[%s0 + $0x18] sm:$0xff]
    %v35 = vld [vmem:[%s0 + $0x20] sm:$0xff]
    %v36 = vld [vmem:[%s0 + $0x28] sm:$0xff]
    %v37 = vld [vmem:[%s0 + $0x30] sm:$0xff]
    %v38 = vld [vmem:[%s0 + $0x38] sm:$0xff]
    %v39 = vld [vmem:[%s0 + $0x40] sm:$0xff]
    %v40 = vld [vmem:[%s0 + $0x48] sm:$0xff]
    %v41 = vld [vmem:[%s0 + $0x50] sm:$0xff]
    %v42 = vld [vmem:[%s0 + $0x58] sm:$0xff]
    %v43 = vld [vmem:[%s0 + $0x60] sm:$0xff]
    %v44 = vld [vmem:[%s0 + $0x68] sm:$0xff]
    %v45 = vld [vmem:[%s0 + $0x70] sm:$0xff]
    %v46 = vld [vmem:[%s0 + $0x78] sm:$0xff]
    %v47 = vld [vmem:[%s0 + $0x80] sm:$0xff]
    %v48 = vld [vmem:[%s0 + $0x88] sm:$0xff]
    %v49 = vld [vmem:[%s0 + $0x90] sm:$0xff]
    %v50 = vld [vmem:[%s0 + $0x98] sm:$0xff]
    %v51 = vld [vmem:[%s0 + $0xa0] sm:$0xff]
    %v52 = vld [vmem:[%s0 + $0xa8] sm:$0xff]
    %v53 = vld [vmem:[%s0 + $0xb0] sm:$0xff]
    %v54 = vld [vmem:[%s0 + $0xb8] sm:$0xff]
    %v55 = vld [vmem:[%s0 + $0xc0] sm:$0xff]
    %v56 = vld [vmem:[%s0 + $0xc8] sm:$0xff]
    %v57 = vld [vmem:[%s0 + $0xd0] sm:$0xff]
    %v58 = vld [vmem:[%s0 + $0xd8] sm:$0xff]
    %v59 = vld [vmem:[%s0 + $0xe0] sm:$0xff]
    %v60 = vld [vmem:[%s0 + $0xe8] sm:$0xff]
    %v61 = vld [vmem:[%s0 + $0xf0] sm:$0xff]
    %v62 = vld [vmem:[%s0 + $0xf8] sm:$0xff]
    %v63 = vld [vmem:[%s0 + $0x100] sm:$0xff]
    %v64 = vld [vmem:[%s0 + $0x108] sm:$0xff]
    %v65 = vld [vmem:[%s0 + $0x110] sm:$0xff]
    %v66 = vld [vmem:[%s0 + $0x118] sm:$0xff]
    %v67 = vld [vmem:[%s0 + $0x120] sm:$0xff]
    %v68 = vld [vmem:[%s0 + $0x128] sm:$0xff]
    %v69 = vld [vmem:[%s0 + $0x130] sm:$0xff]
    %v70 = vld [vmem:[%s0 + $0x138] sm:$0xff]
    %v71 = vld [vmem:[%s0 + $0x140] sm:$0xff]
    %v72 = vld [vmem:[%s0 + $0x148] sm:$0xff]
    %v73 = vld [vmem:[%s0 + $0x150] sm:$0xff]
    %v74 = vld [vmem:[%s0 + $0x158] sm:$0xff]
    %v75 = vld [vmem:[%s0 + $0x160] sm:$0xff]
    %v76 = vld [vmem:[%s0 + $0x168] sm:$0xff]
    %v77 = vld [vmem:[%s0 + $0x170] sm:$0xff]
    %v78 = vld [vmem:[%s0 + $0x178] sm:$0xff]
    %v79 = vld [vmem:[%s0 + $0x180] sm:$0xff]
    %v80 = vld [vmem:[%s0 + $0x188] sm:$0xff]
    %v81 = vld [vmem:[%s0 + $0x190] sm:$0xff]
    %v82 = vld [vmem:[%s0 + $0x198] sm:$0xff]
    %v83 = vld [vmem:[%s0 + $0x1a0] sm:$0xff]
    %v84 = vld [vmem:[%s0 + $0x1a8] sm:$0xff]
    %v85 = vld [vmem:[%s0 + $0x1b0] sm:$0xff]
    %v86 = vld [vmem:[%s0 + $0x1b8] sm:$0xff]
    %v87 = vld [vmem:[%s0 + $0x1c0] sm:$0xff]
    %v88 = vld [vmem:[%s0 + $0x1c8] sm:$0xff]
    %v89 = vld [vmem:[%s0 + $0x1d0] sm:$0xff]
    %v90 = vld [vmem:[%s0 + $0x1d8] sm:$0xff]
    %v91 = vld [vmem:[%s0 + $0x1e0] sm:$0xff]
    %v92 = vld [vmem:[%s0 + $0x1e8] sm:$0xff]
    %v93 = vld [vmem:[%s0 + $0x1f0] sm:$0xff]
    %v94 = vld [vmem:[%s0 + $0x1f8] sm:$0xff]
    %v95 = vld [vmem:[%s1] sm:$0xff]
    %v96 = vld [vmem:[%s1 + $0x8] sm:$0xff]
    %v97 = vld [vmem:[%s1 + $0x10] sm:$0xf]
    %v98 = vld [vmem:[%s3] sm:$0x1]
    %v99 = vlaneseq
    %v100 = vshrl.u32 %v99, 7
    %v101 = vsub.s32 0, %v100
    %v102 = vrot.slane %v98, %v101
    %vm103 = vcmask 162816
    %v105 = vsel %vm103, %v31, 0
    %v108 = vsel %vm103, %v32, 0
    %v111 = vsel %vm103, %v33, 0
    %v114 = vsel %vm103, %v34, 0
    %v117 = vsel %vm103, %v35, 0
    %v120 = vsel %vm103, %v36, 0
    %v123 = vsel %vm103, %v37, 0
    %v126 = vsel %vm103, %v38, 0
    %v129 = vsel %vm103, %v39, 0
    %v132 = vsel %vm103, %v40, 0
    %v135 = vsel %vm103, %v41, 0
    %v138 = vsel %vm103, %v42, 0
    %v141 = vsel %vm103, %v43, 0
    %v144 = vsel %vm103, %v44, 0
    %v147 = vsel %vm103, %v45, 0
    %v150 = vsel %vm103, %v46, 0
    %v153 = vsel %vm103, %v47, 0
    %v156 = vsel %vm103, %v48, 0
    %v159 = vsel %vm103, %v49, 0
    %v162 = vsel %vm103, %v50, 0
    %v165 = vsel %vm103, %v51, 0
    %v168 = vsel %vm103, %v52, 0
    %v171 = vsel %vm103, %v53, 0
    %v174 = vsel %vm103, %v54, 0
    %v177 = vsel %vm103, %v55, 0
    %v180 = vsel %vm103, %v56, 0
    %v183 = vsel %vm103, %v57, 0
    %v186 = vsel %vm103, %v58, 0
    %v189 = vsel %vm103, %v59, 0
    %v192 = vsel %vm103, %v60, 0
    %v195 = vsel %vm103, %v61, 0
    %v198 = vsel %vm103, %v62, 0
    %v201 = vsel %vm103, %v63, 0
    %v204 = vsel %vm103, %v64, 0
    %v207 = vsel %vm103, %v65, 0
    %v210 = vsel %vm103, %v66, 0
    %v213 = vsel %vm103, %v67, 0
    %v216 = vsel %vm103, %v68, 0
    %v219 = vsel %vm103, %v69, 0
    %v222 = vsel %vm103, %v70, 0
    %v225 = vsel %vm103, %v71, 0
    %v228 = vsel %vm103, %v72, 0
    %v231 = vsel %vm103, %v73, 0
    %v234 = vsel %vm103, %v74, 0
    %v237 = vsel %vm103, %v75, 0
    %v240 = vsel %vm103, %v76, 0
    %v243 = vsel %vm103, %v77, 0
    %v246 = vsel %vm103, %v78, 0
    %v249 = vsel %vm103, %v79, 0
    %v252 = vsel %vm103, %v80, 0
    %v255 = vsel %vm103, %v81, 0
    %v258 = vsel %vm103, %v82, 0
    %v261 = vsel %vm103, %v83, 0
    %v264 = vsel %vm103, %v84, 0
    %v267 = vsel %vm103, %v85, 0
    %v270 = vsel %vm103, %v86, 0
    %v273 = vsel %vm103, %v87, 0
    %v276 = vsel %vm103, %v88, 0
    %v279 = vsel %vm103, %v89, 0
    %v282 = vsel %vm103, %v90, 0
    %v285 = vsel %vm103, %v91, 0
    %v288 = vsel %vm103, %v92, 0
    %v291 = vsel %vm103, %v93, 0
    %v294 = vsel %vm103, %v94, 0
    %vm296 = vcmask 1043456
    %v298 = vsel %vm296, %v97, 0
    %300 = vmatprep.subr.mxu0 0.0
    %301 = vmatpush1.msra.mxu0 0.0
    %302 = vmatprep.subr.mxu0 0.0
    %303 = vmatpush1.msra.mxu0 0.0
    %304 = vmatprep.subr.mxu0 0.0
    %305 = vmatpush1.msra.mxu0 0.0
    %306 = vmatprep.subr.mxu0 0.0
    %307 = vmatpush1.msra.mxu0 0.0
    %308 = vmatprep.subr.mxu0 0.0
    %309 = vmatpush1.msra.mxu0 0.0
    %310 = vmatprep.subr.mxu0 0.0
    %311 = vmatpush1.msra.mxu0 0.0
    %312 = vmatprep.subr.mxu0 0.0
    %313 = vmatpush1.msra.mxu0 0.0
    %314 = vmatprep.subr.mxu0 0.0
    %315 = vmatpush1.msra.mxu0 0.0
    %316 = vmatprep.subr.mxu0 0.0
    %317 = vmatpush1.msra.mxu0 0.0
    %318 = vmatprep.subr.mxu0 0.0
    %319 = vmatpush1.msra.mxu0 0.0
    %320 = vmatprep.subr.mxu0 0.0
    %321 = vmatpush1.msra.mxu0 0.0
    %322 = vmatprep.subr.mxu0 0.0
    %323 = vmatpush1.msra.mxu0 0.0
    %324 = vmatprep.subr.mxu0 0.0
    %325 = vmatpush1.msra.mxu0 0.0
    %326 = vmatprep.subr.mxu0 0.0
    %327 = vmatpush1.msra.mxu0 %v298
    %328 = vmatprep.subr.mxu0 0.0
    %329 = vmatpush1.msra.mxu0 %v96
    %330 = vmatprep.subr.mxu0 0.0
    %331 = vmatpush1.msra.mxu0 %v95
    %332 = vmatprep.subr.mxu0 0.0
    %333 = vmatpush2.msra.mxu0 0.0
    %334 = vmatprep.subr.mxu0 0.0
    %335 = vmatpush2.msra.mxu0 0.0
    %336 = vmatprep.subr.mxu0 0.0
    %337 = vmatpush2.msra.mxu0 0.0
    %338 = vmatprep.subr.mxu0 0.0
    %339 = vmatpush2.msra.mxu0 0.0
    %340 = vmatprep.subr.mxu0 0.0
    %341 = vmatpush2.msra.mxu0 0.0
    %342 = vmatprep.subr.mxu0 0.0
    %343 = vmatpush2.msra.mxu0 0.0
    %344 = vmatprep.subr.mxu0 0.0
    %345 = vmatpush2.msra.mxu0 0.0
    %346 = vmatprep.subr.mxu0 0.0
    %347 = vmatpush2.msra.mxu0 0.0
    %348 = vmatprep.subr.mxu0 0.0
    %349 = vmatpush2.msra.mxu0 0.0
    %350 = vmatprep.subr.mxu0 0.0
    %351 = vmatpush2.msra.mxu0 0.0
    %352 = vmatprep.subr.mxu0 0.0
    %353 = vmatpush2.msra.mxu0 0.0
    %354 = vmatprep.subr.mxu0 0.0
    %355 = vmatpush2.msra.mxu0 0.0
    %356 = vmatprep.subr.mxu0 0.0
    %357 = vmatpush2.msra.mxu0 0.0
    %358 = vmatprep.subr.mxu0 0.0
    %359 = vmatpush2.msra.mxu0 0.0
    %360 = vmatprep.subr.mxu0 0.0
    %361 = vmatpush2.msra.mxu0 0.0
    %362 = vmatprep.subr.mxu0 0.0
    %363 = vmatpush2.msra.mxu0 0.0
    %364 = vmatprep.mubr.f32.mxu0 0.0
    %365 = vmatmul.mubr.f32.gmra.mxu0 %v105
    %v366 = vpop.f32.mrf.mxu0
    %v367 = vadd.f32 %v102, %v366
    %v368 = vpop.f32.mrf.mxu0
    %369 = vmatprep.mubr.f32.mxu0 0.0
    %370 = vmatmul.mubr.f32.gmra.mxu0 %v108
    %v371 = vpop.f32.mrf.mxu0
    %v372 = vadd.f32 %v102, %v371
    %v373 = vpop.f32.mrf.mxu0
    %374 = vmatprep.mubr.f32.mxu0 0.0
    %375 = vmatmul.mubr.f32.gmra.mxu0 %v111
    %v376 = vpop.f32.mrf.mxu0
    %v377 = vadd.f32 %v102, %v376
    %v378 = vpop.f32.mrf.mxu0
    %379 = vmatprep.mubr.f32.mxu0 0.0
    %380 = vmatmul.mubr.f32.gmra.mxu0 %v114
    %v381 = vpop.f32.mrf.mxu0
    %v382 = vadd.f32 %v102, %v381
    %v383 = vpop.f32.mrf.mxu0
    %384 = vmatprep.mubr.f32.mxu0 0.0
    %385 = vmatmul.mubr.f32.gmra.mxu0 %v117
    %v386 = vpop.f32.mrf.mxu0
    %v387 = vadd.f32 %v102, %v386
    %v388 = vpop.f32.mrf.mxu0
    %389 = vmatprep.mubr.f32.mxu0 0.0
    %390 = vmatmul.mubr.f32.gmra.mxu0 %v120
    %v391 = vpop.f32.mrf.mxu0
    %v392 = vadd.f32 %v102, %v391
    %v393 = vpop.f32.mrf.mxu0
    %394 = vmatprep.mubr.f32.mxu0 0.0
    %395 = vmatmul.mubr.f32.gmra.mxu0 %v123
    %v396 = vpop.f32.mrf.mxu0
    %v397 = vadd.f32 %v102, %v396
    %v398 = vpop.f32.mrf.mxu0
    %399 = vmatprep.mubr.f32.mxu0 0.0
    %400 = vmatmul.mubr.f32.gmra.mxu0 %v126
    %v401 = vpop.f32.mrf.mxu0
    %v402 = vadd.f32 %v102, %v401
    %v403 = vpop.f32.mrf.mxu0
    %404 = vmatprep.mubr.f32.mxu0 0.0
    %405 = vmatmul.mubr.f32.gmra.mxu0 %v129
    %v406 = vpop.f32.mrf.mxu0
    %v407 = vadd.f32 %v102, %v406
    %v408 = vpop.f32.mrf.mxu0
    %409 = vmatprep.mubr.f32.mxu0 0.0
    %410 = vmatmul.mubr.f32.gmra.mxu0 %v132
    %v411 = vpop.f32.mrf.mxu0
    %v412 = vadd.f32 %v102, %v411
    %v413 = vpop.f32.mrf.mxu0
    %414 = vmatprep.mubr.f32.mxu0 0.0
    %415 = vmatmul.mubr.f32.gmra.mxu0 %v135
    %v416 = vpop.f32.mrf.mxu0
    %v417 = vadd.f32 %v102, %v416
    %v418 = vpop.f32.mrf.mxu0
    %419 = vmatprep.mubr.f32.mxu0 0.0
    %420 = vmatmul.mubr.f32.gmra.mxu0 %v138
    %v421 = vpop.f32.mrf.mxu0
    %v422 = vadd.f32 %v102, %v421
    %v423 = vpop.f32.mrf.mxu0
    %424 = vmatprep.mubr.f32.mxu0 0.0
    %425 = vmatmul.mubr.f32.gmra.mxu0 %v141
    %v426 = vpop.f32.mrf.mxu0
    %v427 = vadd.f32 %v102, %v426
    %v428 = vpop.f32.mrf.mxu0
    %429 = vmatprep.mubr.f32.mxu0 0.0
    %430 = vmatmul.mubr.f32.gmra.mxu0 %v144
    %v431 = vpop.f32.mrf.mxu0
    %v432 = vadd.f32 %v102, %v431
    %v433 = vpop.f32.mrf.mxu0
    %434 = vmatprep.mubr.f32.mxu0 0.0
    %435 = vmatmul.mubr.f32.gmra.mxu0 %v147
    %v436 = vpop.f32.mrf.mxu0
    %v437 = vadd.f32 %v102, %v436
    %v438 = vpop.f32.mrf.mxu0
    %439 = vmatprep.mubr.f32.mxu0 0.0
    %440 = vmatmul.mubr.f32.gmra.mxu0 %v150
    %v441 = vpop.f32.mrf.mxu0
    %v442 = vadd.f32 %v102, %v441
    %v443 = vpop.f32.mrf.mxu0
    %444 = vmatprep.mubr.f32.mxu0 0.0
    %445 = vmatmul.mubr.f32.gmra.mxu0 %v153
    %v446 = vpop.f32.mrf.mxu0
    %v447 = vadd.f32 %v102, %v446
    %v448 = vpop.f32.mrf.mxu0
    %449 = vmatprep.mubr.f32.mxu0 0.0
    %450 = vmatmul.mubr.f32.gmra.mxu0 %v156
    %v451 = vpop.f32.mrf.mxu0
    %v452 = vadd.f32 %v102, %v451
    %v453 = vpop.f32.mrf.mxu0
    %454 = vmatprep.mubr.f32.mxu0 0.0
    %455 = vmatmul.mubr.f32.gmra.mxu0 %v159
    %v456 = vpop.f32.mrf.mxu0
    %v457 = vadd.f32 %v102, %v456
    %v458 = vpop.f32.mrf.mxu0
    %459 = vmatprep.mubr.f32.mxu0 0.0
    %460 = vmatmul.mubr.f32.gmra.mxu0 %v162
    %v461 = vpop.f32.mrf.mxu0
    %v462 = vadd.f32 %v102, %v461
    %v463 = vpop.f32.mrf.mxu0
    %464 = vmatprep.mubr.f32.mxu0 0.0
    %465 = vmatmul.mubr.f32.gmra.mxu0 %v165
    %v466 = vpop.f32.mrf.mxu0
    %v467 = vadd.f32 %v102, %v466
    %v468 = vpop.f32.mrf.mxu0
    %469 = vmatprep.mubr.f32.mxu0 0.0
    %470 = vmatmul.mubr.f32.gmra.mxu0 %v168
    %v471 = vpop.f32.mrf.mxu0
    %v472 = vadd.f32 %v102, %v471
    %v473 = vpop.f32.mrf.mxu0
    %474 = vmatprep.mubr.f32.mxu0 0.0
    %475 = vmatmul.mubr.f32.gmra.mxu0 %v171
    %v476 = vpop.f32.mrf.mxu0
    %v477 = vadd.f32 %v102, %v476
    %v478 = vpop.f32.mrf.mxu0
    %479 = vmatprep.mubr.f32.mxu0 0.0
    %480 = vmatmul.mubr.f32.gmra.mxu0 %v174
    %v481 = vpop.f32.mrf.mxu0
    %v482 = vadd.f32 %v102, %v481
    %v483 = vpop.f32.mrf.mxu0
    %484 = vmatprep.mubr.f32.mxu0 0.0
    %485 = vmatmul.mubr.f32.gmra.mxu0 %v177
    %v486 = vpop.f32.mrf.mxu0
    %v487 = vadd.f32 %v102, %v486
    %v488 = vpop.f32.mrf.mxu0
    %489 = vmatprep.mubr.f32.mxu0 0.0
    %490 = vmatmul.mubr.f32.gmra.mxu0 %v180
    %v491 = vpop.f32.mrf.mxu0
    %v492 = vadd.f32 %v102, %v491
    %v493 = vpop.f32.mrf.mxu0
    %494 = vmatprep.mubr.f32.mxu0 0.0
    %495 = vmatmul.mubr.f32.gmra.mxu0 %v183
    %v496 = vpop.f32.mrf.mxu0
    %v497 = vadd.f32 %v102, %v496
    %v498 = vpop.f32.mrf.mxu0
    %499 = vmatprep.mubr.f32.mxu0 0.0
    %500 = vmatmul.mubr.f32.gmra.mxu0 %v186
    %v501 = vpop.f32.mrf.mxu0
    %v502 = vadd.f32 %v102, %v501
    %v503 = vpop.f32.mrf.mxu0
    %504 = vmatprep.mubr.f32.mxu0 0.0
    %505 = vmatmul.mubr.f32.gmra.mxu0 %v189
    %v506 = vpop.f32.mrf.mxu0
    %v507 = vadd.f32 %v102, %v506
    %v508 = vpop.f32.mrf.mxu0
    %509 = vmatprep.mubr.f32.mxu0 0.0
    %510 = vmatmul.mubr.f32.gmra.mxu0 %v192
    %v511 = vpop.f32.mrf.mxu0
    %v512 = vadd.f32 %v102, %v511
    %v513 = vpop.f32.mrf.mxu0
    %514 = vmatprep.mubr.f32.mxu0 0.0
    %515 = vmatmul.mubr.f32.gmra.mxu0 %v195
    %v516 = vpop.f32.mrf.mxu0
    %v517 = vadd.f32 %v102, %v516
    %v518 = vpop.f32.mrf.mxu0
    %519 = vmatprep.mubr.f32.mxu0 0.0
    %520 = vmatmul.mubr.f32.gmra.mxu0 %v198
    %v521 = vpop.f32.mrf.mxu0
    %v522 = vadd.f32 %v102, %v521
    %v523 = vpop.f32.mrf.mxu0
    %524 = vmatprep.mubr.f32.mxu0 0.0
    %525 = vmatmul.mubr.f32.gmra.mxu0 %v201
    %v526 = vpop.f32.mrf.mxu0
    %v527 = vadd.f32 %v102, %v526
    %v528 = vpop.f32.mrf.mxu0
    %529 = vmatprep.mubr.f32.mxu0 0.0
    %530 = vmatmul.mubr.f32.gmra.mxu0 %v204
    %v531 = vpop.f32.mrf.mxu0
    %v532 = vadd.f32 %v102, %v531
    %v533 = vpop.f32.mrf.mxu0
    %534 = vmatprep.mubr.f32.mxu0 0.0
    %535 = vmatmul.mubr.f32.gmra.mxu0 %v207
    %v536 = vpop.f32.mrf.mxu0
    %v537 = vadd.f32 %v102, %v536
    %v538 = vpop.f32.mrf.mxu0
    %539 = vmatprep.mubr.f32.mxu0 0.0
    %540 = vmatmul.mubr.f32.gmra.mxu0 %v210
    %v541 = vpop.f32.mrf.mxu0
    %v542 = vadd.f32 %v102, %v541
    %v543 = vpop.f32.mrf.mxu0
    %544 = vmatprep.mubr.f32.mxu0 0.0
    %545 = vmatmul.mubr.f32.gmra.mxu0 %v213
    %v546 = vpop.f32.mrf.mxu0
    %v547 = vadd.f32 %v102, %v546
    %v548 = vpop.f32.mrf.mxu0
    %549 = vmatprep.mubr.f32.mxu0 0.0
    %550 = vmatmul.mubr.f32.gmra.mxu0 %v216
    %v551 = vpop.f32.mrf.mxu0
    %v552 = vadd.f32 %v102, %v551
    %v553 = vpop.f32.mrf.mxu0
    %554 = vmatprep.mubr.f32.mxu0 0.0
    %555 = vmatmul.mubr.f32.gmra.mxu0 %v219
    %v556 = vpop.f32.mrf.mxu0
    %v557 = vadd.f32 %v102, %v556
    %v558 = vpop.f32.mrf.mxu0
    %559 = vmatprep.mubr.f32.mxu0 0.0
    %560 = vmatmul.mubr.f32.gmra.mxu0 %v222
    %v561 = vpop.f32.mrf.mxu0
    %v562 = vadd.f32 %v102, %v561
    %v563 = vpop.f32.mrf.mxu0
    %564 = vmatprep.mubr.f32.mxu0 0.0
    %565 = vmatmul.mubr.f32.gmra.mxu0 %v225
    %v566 = vpop.f32.mrf.mxu0
    %v567 = vadd.f32 %v102, %v566
    %v568 = vpop.f32.mrf.mxu0
    %569 = vmatprep.mubr.f32.mxu0 0.0
    %570 = vmatmul.mubr.f32.gmra.mxu0 %v228
    %v571 = vpop.f32.mrf.mxu0
    %v572 = vadd.f32 %v102, %v571
    %v573 = vpop.f32.mrf.mxu0
    %574 = vmatprep.mubr.f32.mxu0 0.0
    %575 = vmatmul.mubr.f32.gmra.mxu0 %v231
    %v576 = vpop.f32.mrf.mxu0
    %v577 = vadd.f32 %v102, %v576
    %v578 = vpop.f32.mrf.mxu0
    %579 = vmatprep.mubr.f32.mxu0 0.0
    %580 = vmatmul.mubr.f32.gmra.mxu0 %v234
    %v581 = vpop.f32.mrf.mxu0
    %v582 = vadd.f32 %v102, %v581
    %v583 = vpop.f32.mrf.mxu0
    %584 = vmatprep.mubr.f32.mxu0 0.0
    %585 = vmatmul.mubr.f32.gmra.mxu0 %v237
    %v586 = vpop.f32.mrf.mxu0
    %v587 = vadd.f32 %v102, %v586
    %v588 = vpop.f32.mrf.mxu0
    %589 = vmatprep.mubr.f32.mxu0 0.0
    %590 = vmatmul.mubr.f32.gmra.mxu0 %v240
    %v591 = vpop.f32.mrf.mxu0
    %v592 = vadd.f32 %v102, %v591
    %v593 = vpop.f32.mrf.mxu0
    %594 = vmatprep.mubr.f32.mxu0 0.0
    %595 = vmatmul.mubr.f32.gmra.mxu0 %v243
    %v596 = vpop.f32.mrf.mxu0
    %v597 = vadd.f32 %v102, %v596
    %v598 = vpop.f32.mrf.mxu0
    %599 = vmatprep.mubr.f32.mxu0 0.0
    %600 = vmatmul.mubr.f32.gmra.mxu0 %v246
    %v601 = vpop.f32.mrf.mxu0
    %v602 = vadd.f32 %v102, %v601
    %v603 = vpop.f32.mrf.mxu0
    %604 = vmatprep.mubr.f32.mxu0 0.0
    %605 = vmatmul.mubr.f32.gmra.mxu0 %v249
    %v606 = vpop.f32.mrf.mxu0
    %v607 = vadd.f32 %v102, %v606
    %v608 = vpop.f32.mrf.mxu0
    %609 = vmatprep.mubr.f32.mxu0 0.0
    %610 = vmatmul.mubr.f32.gmra.mxu0 %v252
    %v611 = vpop.f32.mrf.mxu0
    %v612 = vadd.f32 %v102, %v611
    %v613 = vpop.f32.mrf.mxu0
    %614 = vmatprep.mubr.f32.mxu0 0.0
    %615 = vmatmul.mubr.f32.gmra.mxu0 %v255
    %v616 = vpop.f32.mrf.mxu0
    %v617 = vadd.f32 %v102, %v616
    %v618 = vpop.f32.mrf.mxu0
    %619 = vmatprep.mubr.f32.mxu0 0.0
    %620 = vmatmul.mubr.f32.gmra.mxu0 %v258
    %v621 = vpop.f32.mrf.mxu0
    %v622 = vadd.f32 %v102, %v621
    %v623 = vpop.f32.mrf.mxu0
    %624 = vmatprep.mubr.f32.mxu0 0.0
    %625 = vmatmul.mubr.f32.gmra.mxu0 %v261
    %v626 = vpop.f32.mrf.mxu0
    %v627 = vadd.f32 %v102, %v626
    %v628 = vpop.f32.mrf.mxu0
    %629 = vmatprep.mubr.f32.mxu0 0.0
    %630 = vmatmul.mubr.f32.gmra.mxu0 %v264
    %v631 = vpop.f32.mrf.mxu0
    %v632 = vadd.f32 %v102, %v631
    %v633 = vpop.f32.mrf.mxu0
    %634 = vmatprep.mubr.f32.mxu0 0.0
    %635 = vmatmul.mubr.f32.gmra.mxu0 %v267
    %v636 = vpop.f32.mrf.mxu0
    %v637 = vadd.f32 %v102, %v636
    %v638 = vpop.f32.mrf.mxu0
    %639 = vmatprep.mubr.f32.mxu0 0.0
    %640 = vmatmul.mubr.f32.gmra.mxu0 %v270
    %v641 = vpop.f32.mrf.mxu0
    %v642 = vadd.f32 %v102, %v641
    %v643 = vpop.f32.mrf.mxu0
    %644 = vmatprep.mubr.f32.mxu0 0.0
    %645 = vmatmul.mubr.f32.gmra.mxu0 %v273
    %v646 = vpop.f32.mrf.mxu0
    %v647 = vadd.f32 %v102, %v646
    %v648 = vpop.f32.mrf.mxu0
    %649 = vmatprep.mubr.f32.mxu0 0.0
    %650 = vmatmul.mubr.f32.gmra.mxu0 %v276
    %v651 = vpop.f32.mrf.mxu0
    %v652 = vadd.f32 %v102, %v651
    %v653 = vpop.f32.mrf.mxu0
    %654 = vmatprep.mubr.f32.mxu0 0.0
    %655 = vmatmul.mubr.f32.gmra.mxu0 %v279
    %v656 = vpop.f32.mrf.mxu0
    %v657 = vadd.f32 %v102, %v656
    %v658 = vpop.f32.mrf.mxu0
    %659 = vmatprep.mubr.f32.mxu0 0.0
    %660 = vmatmul.mubr.f32.gmra.mxu0 %v282
    %v661 = vpop.f32.mrf.mxu0
    %v662 = vadd.f32 %v102, %v661
    %v663 = vpop.f32.mrf.mxu0
    %664 = vmatprep.mubr.f32.mxu0 0.0
    %665 = vmatmul.mubr.f32.gmra.mxu0 %v285
    %v666 = vpop.f32.mrf.mxu0
    %v667 = vadd.f32 %v102, %v666
    %v668 = vpop.f32.mrf.mxu0
    %669 = vmatprep.mubr.f32.mxu0 0.0
    %670 = vmatmul.mubr.f32.gmra.mxu0 %v288
    %v671 = vpop.f32.mrf.mxu0
    %v672 = vadd.f32 %v102, %v671
    %v673 = vpop.f32.mrf.mxu0
    %674 = vmatprep.mubr.f32.mxu0 0.0
    %675 = vmatmul.mubr.f32.gmra.mxu0 %v291
    %v676 = vpop.f32.mrf.mxu0
    %v677 = vadd.f32 %v102, %v676
    %v678 = vpop.f32.mrf.mxu0
    %679 = vmatprep.mubr.f32.mxu0 0.0
    %680 = vmatmul.mubr.f32.gmra.mxu0 %v294
    %v681 = vpop.f32.mrf.mxu0
    %v682 = vadd.f32 %v102, %v681
    %v683 = vpop.f32.mrf.mxu0
    %684 = vdwg.mxu0
    %v685 = vmax.f32 %v367, 0.0
    %v686 = vmax.f32 %v372, 0.0
    %v687 = vmax.f32 %v377, 0.0
    %v688 = vmax.f32 %v382, 0.0
    %v689 = vmax.f32 %v387, 0.0
    %v690 = vmax.f32 %v392, 0.0
    %v691 = vmax.f32 %v397, 0.0
    %v692 = vmax.f32 %v402, 0.0
    %v693 = vmax.f32 %v407, 0.0
    %v694 = vmax.f32 %v412, 0.0
    %v695 = vmax.f32 %v417, 0.0
    %v696 = vmax.f32 %v422, 0.0
    %v697 = vmax.f32 %v427, 0.0
    %v698 = vmax.f32 %v432, 0.0
    %v699 = vmax.f32 %v437, 0.0
    %v700 = vmax.f32 %v442, 0.0
    %v701 = vmax.f32 %v447, 0.0
    %v702 = vmax.f32 %v452, 0.0
    %v703 = vmax.f32 %v457, 0.0
    %v704 = vmax.f32 %v462, 0.0
    %v705 = vmax.f32 %v467, 0.0
    %v706 = vmax.f32 %v472, 0.0
    %v707 = vmax.f32 %v477, 0.0
    %v708 = vmax.f32 %v482, 0.0
    %v709 = vmax.f32 %v487, 0.0
    %v710 = vmax.f32 %v492, 0.0
    %v711 = vmax.f32 %v497, 0.0
    %v712 = vmax.f32 %v502, 0.0
    %v713 = vmax.f32 %v507, 0.0
    %v714 = vmax.f32 %v512, 0.0
    %v715 = vmax.f32 %v517, 0.0
    %v716 = vmax.f32 %v522, 0.0
    %v717 = vmax.f32 %v527, 0.0
    %v718 = vmax.f32 %v532, 0.0
    %v719 = vmax.f32 %v537, 0.0
    %v720 = vmax.f32 %v542, 0.0
    %v721 = vmax.f32 %v547, 0.0
    %v722 = vmax.f32 %v552, 0.0
    %v723 = vmax.f32 %v557, 0.0
    %v724 = vmax.f32 %v562, 0.0
    %v725 = vmax.f32 %v567, 0.0
    %v726 = vmax.f32 %v572, 0.0
    %v727 = vmax.f32 %v577, 0.0
    %v728 = vmax.f32 %v582, 0.0
    %v729 = vmax.f32 %v587, 0.0
    %v730 = vmax.f32 %v592, 0.0
    %v731 = vmax.f32 %v597, 0.0
    %v732 = vmax.f32 %v602, 0.0
    %v733 = vmax.f32 %v607, 0.0
    %v734 = vmax.f32 %v612, 0.0
    %v735 = vmax.f32 %v617, 0.0
    %v736 = vmax.f32 %v622, 0.0
    %v737 = vmax.f32 %v627, 0.0
    %v738 = vmax.f32 %v632, 0.0
    %v739 = vmax.f32 %v637, 0.0
    %v740 = vmax.f32 %v642, 0.0
    %v741 = vmax.f32 %v647, 0.0
    %v742 = vmax.f32 %v652, 0.0
    %v743 = vmax.f32 %v657, 0.0
    %v744 = vmax.f32 %v662, 0.0
    %v745 = vmax.f32 %v667, 0.0
    %v746 = vmax.f32 %v672, 0.0
    %v747 = vmax.f32 %v677, 0.0
    %v748 = vmax.f32 %v682, 0.0
    %v813 = vcombine.high %v685, %v685
    %v815 = vunpack.c.l.s4 1983009808
    %v816 = vunpack.c.0.s8 %v815
    %v817 = vlaneseq
    %v818 = vshrl.u32 %v817, 7
    %v819 = vsub.s32 %v816, %v818
    %v820 = vrot.slane %v685, %v819
    %v822 = vunpack.c.l.s4 1983009808
    %v823 = vunpack.c.0.s8 %v822
    %v824 = vlaneseq
    %v825 = vshrl.u32 %v824, 7
    %v826 = vsub.s32 %v823, %v825
    %v827 = vrot.slane %v813, %v826
    %v828 = vcombine.high %v820, %v820
    %v829 = vcombine.high %v827, %v827
    %v830 = vcombine.high %v686, %v686
    %v832 = vunpack.c.l.s4 1983009808
    %v833 = vunpack.c.0.s8 %v832
    %v834 = vlaneseq
    %v835 = vshrl.u32 %v834, 7
    %v836 = vsub.s32 %v833, %v835
    %v837 = vrot.slane %v686, %v836
    %v839 = vunpack.c.l.s4 1983009808
    %v840 = vunpack.c.0.s8 %v839
    %v841 = vlaneseq
    %v842 = vshrl.u32 %v841, 7
    %v843 = vsub.s32 %v840, %v842
    %v844 = vrot.slane %v830, %v843
    %v845 = vcombine.high %v837, %v837
    %v846 = vcombine.high %v844, %v844
    %v847 = vcombine.high %v687, %v687
    %v849 = vunpack.c.l.s4 1983009808
    %v850 = vunpack.c.0.s8 %v849
    %v851 = vlaneseq
    %v852 = vshrl.u32 %v851, 7
    %v853 = vsub.s32 %v850, %v852
    %v854 = vrot.slane %v687, %v853
    %v856 = vunpack.c.l.s4 1983009808
    %v857 = vunpack.c.0.s8 %v856
    %v858 = vlaneseq
    %v859 = vshrl.u32 %v858, 7
    %v860 = vsub.s32 %v857, %v859
    %v861 = vrot.slane %v847, %v860
    %v862 = vcombine.high %v854, %v854
    %v863 = vcombine.high %v861, %v861
    %v864 = vcombine.high %v688, %v688
    %v866 = vunpack.c.l.s4 1983009808
    %v867 = vunpack.c.0.s8 %v866
    %v868 = vlaneseq
    %v869 = vshrl.u32 %v868, 7
    %v870 = vsub.s32 %v867, %v869
    %v871 = vrot.slane %v688, %v870
    %v873 = vunpack.c.l.s4 1983009808
    %v874 = vunpack.c.0.s8 %v873
    %v875 = vlaneseq
    %v876 = vshrl.u32 %v875, 7
    %v877 = vsub.s32 %v874, %v876
    %v878 = vrot.slane %v864, %v877
    %v879 = vcombine.high %v871, %v871
    %v880 = vcombine.high %v878, %v878
    %v881 = vcombine.high %v689, %v689
    %v883 = vunpack.c.l.s4 1983009808
    %v884 = vunpack.c.0.s8 %v883
    %v885 = vlaneseq
    %v886 = vshrl.u32 %v885, 7
    %v887 = vsub.s32 %v884, %v886
    %v888 = vrot.slane %v689, %v887
    %v890 = vunpack.c.l.s4 1983009808
    %v891 = vunpack.c.0.s8 %v890
    %v892 = vlaneseq
    %v893 = vshrl.u32 %v892, 7
    %v894 = vsub.s32 %v891, %v893
    %v895 = vrot.slane %v881, %v894
    %v896 = vcombine.high %v888, %v888
    %v897 = vcombine.high %v895, %v895
    %v898 = vcombine.high %v690, %v690
    %v900 = vunpack.c.l.s4 1983009808
    %v901 = vunpack.c.0.s8 %v900
    %v902 = vlaneseq
    %v903 = vshrl.u32 %v902, 7
    %v904 = vsub.s32 %v901, %v903
    %v905 = vrot.slane %v690, %v904
    %v907 = vunpack.c.l.s4 1983009808
    %v908 = vunpack.c.0.s8 %v907
    %v909 = vlaneseq
    %v910 = vshrl.u32 %v909, 7
    %v911 = vsub.s32 %v908, %v910
    %v912 = vrot.slane %v898, %v911
    %v913 = vcombine.high %v905, %v905
    %v914 = vcombine.high %v912, %v912
    %v915 = vcombine.high %v691, %v691
    %v917 = vunpack.c.l.s4 1983009808
    %v918 = vunpack.c.0.s8 %v917
    %v919 = vlaneseq
    %v920 = vshrl.u32 %v919, 7
    %v921 = vsub.s32 %v918, %v920
    %v922 = vrot.slane %v691, %v921
    %v924 = vunpack.c.l.s4 1983009808
    %v925 = vunpack.c.0.s8 %v924
    %v926 = vlaneseq
    %v927 = vshrl.u32 %v926, 7
    %v928 = vsub.s32 %v925, %v927
    %v929 = vrot.slane %v915, %v928
    %v930 = vcombine.high %v922, %v922
    %v931 = vcombine.high %v929, %v929
    %v933 = vunpack.c.l.s4 1983009808
    %v934 = vunpack.c.0.s8 %v933
    %v935 = vlaneseq
    %v936 = vshrl.u32 %v935, 7
    %v937 = vsub.s32 %v934, %v936
    %v938 = vrot.slane %v692, %v937
    %v939 = vcombine.high %v938, %v938
    %v940 = vcombine.high %v693, %v693
    %v942 = vunpack.c.l.s4 1983009808
    %v943 = vunpack.c.0.s8 %v942
    %v944 = vlaneseq
    %v945 = vshrl.u32 %v944, 7
    %v946 = vsub.s32 %v943, %v945
    %v947 = vrot.slane %v693, %v946
    %v949 = vunpack.c.l.s4 1983009808
    %v950 = vunpack.c.0.s8 %v949
    %v951 = vlaneseq
    %v952 = vshrl.u32 %v951, 7
    %v953 = vsub.s32 %v950, %v952
    %v954 = vrot.slane %v940, %v953
    %v955 = vcombine.high %v947, %v947
    %v956 = vcombine.high %v954, %v954
    %v957 = vcombine.high %v694, %v694
    %v959 = vunpack.c.l.s4 1983009808
    %v960 = vunpack.c.0.s8 %v959
    %v961 = vlaneseq
    %v962 = vshrl.u32 %v961, 7
    %v963 = vsub.s32 %v960, %v962
    %v964 = vrot.slane %v694, %v963
    %v966 = vunpack.c.l.s4 1983009808
    %v967 = vunpack.c.0.s8 %v966
    %v968 = vlaneseq
    %v969 = vshrl.u32 %v968, 7
    %v970 = vsub.s32 %v967, %v969
    %v971 = vrot.slane %v957, %v970
    %v972 = vcombine.high %v964, %v964
    %v973 = vcombine.high %v971, %v971
    %v974 = vcombine.high %v695, %v695
    %v976 = vunpack.c.l.s4 1983009808
    %v977 = vunpack.c.0.s8 %v976
    %v978 = vlaneseq
    %v979 = vshrl.u32 %v978, 7
    %v980 = vsub.s32 %v977, %v979
    %v981 = vrot.slane %v695, %v980
    %v983 = vunpack.c.l.s4 1983009808
    %v984 = vunpack.c.0.s8 %v983
    %v985 = vlaneseq
    %v986 = vshrl.u32 %v985, 7
    %v987 = vsub.s32 %v984, %v986
    %v988 = vrot.slane %v974, %v987
    %v989 = vcombine.high %v981, %v981
    %v990 = vcombine.high %v988, %v988
    %v991 = vcombine.high %v696, %v696
    %v993 = vunpack.c.l.s4 1983009808
    %v994 = vunpack.c.0.s8 %v993
    %v995 = vlaneseq
    %v996 = vshrl.u32 %v995, 7
    %v997 = vsub.s32 %v994, %v996
    %v998 = vrot.slane %v696, %v997
    %v1000 = vunpack.c.l.s4 1983009808
    %v1001 = vunpack.c.0.s8 %v1000
    %v1002 = vlaneseq
    %v1003 = vshrl.u32 %v1002, 7
    %v1004 = vsub.s32 %v1001, %v1003
    %v1005 = vrot.slane %v991, %v1004
    %v1006 = vcombine.high %v998, %v998
    %v1007 = vcombine.high %v1005, %v1005
    %v1008 = vcombine.high %v697, %v697
    %v1010 = vunpack.c.l.s4 1983009808
    %v1011 = vunpack.c.0.s8 %v1010
    %v1012 = vlaneseq
    %v1013 = vshrl.u32 %v1012, 7
    %v1014 = vsub.s32 %v1011, %v1013
    %v1015 = vrot.slane %v697, %v1014
    %v1017 = vunpack.c.l.s4 1983009808
    %v1018 = vunpack.c.0.s8 %v1017
    %v1019 = vlaneseq
    %v1020 = vshrl.u32 %v1019, 7
    %v1021 = vsub.s32 %v1018, %v1020
    %v1022 = vrot.slane %v1008, %v1021
    %v1023 = vcombine.high %v1015, %v1015
    %v1024 = vcombine.high %v1022, %v1022
    %v1025 = vcombine.high %v698, %v698
    %v1027 = vunpack.c.l.s4 1983009808
    %v1028 = vunpack.c.0.s8 %v1027
    %v1029 = vlaneseq
    %v1030 = vshrl.u32 %v1029, 7
    %v1031 = vsub.s32 %v1028, %v1030
    %v1032 = vrot.slane %v698, %v1031
    %v1034 = vunpack.c.l.s4 1983009808
    %v1035 = vunpack.c.0.s8 %v1034
    %v1036 = vlaneseq
    %v1037 = vshrl.u32 %v1036, 7
    %v1038 = vsub.s32 %v1035, %v1037
    %v1039 = vrot.slane %v1025, %v1038
    %v1040 = vcombine.high %v1032, %v1032
    %v1041 = vcombine.high %v1039, %v1039
    %v1042 = vcombine.high %v699, %v699
    %v1044 = vunpack.c.l.s4 1983009808
    %v1045 = vunpack.c.0.s8 %v1044
    %v1046 = vlaneseq
    %v1047 = vshrl.u32 %v1046, 7
    %v1048 = vsub.s32 %v1045, %v1047
    %v1049 = vrot.slane %v699, %v1048
    %v1051 = vunpack.c.l.s4 1983009808
    %v1052 = vunpack.c.0.s8 %v1051
    %v1053 = vlaneseq
    %v1054 = vshrl.u32 %v1053, 7
    %v1055 = vsub.s32 %v1052, %v1054
    %v1056 = vrot.slane %v1042, %v1055
    %v1057 = vcombine.high %v1049, %v1049
    %v1058 = vcombine.high %v1056, %v1056
    %v1060 = vunpack.c.l.s4 1983009808
    %v1061 = vunpack.c.0.s8 %v1060
    %v1062 = vlaneseq
    %v1063 = vshrl.u32 %v1062, 7
    %v1064 = vsub.s32 %v1061, %v1063
    %v1065 = vrot.slane %v700, %v1064
    %v1066 = vcombine.high %v1065, %v1065
    %v1067 = vcombine.high %v701, %v701
    %v1069 = vunpack.c.l.s4 1983009808
    %v1070 = vunpack.c.0.s8 %v1069
    %v1071 = vlaneseq
    %v1072 = vshrl.u32 %v1071, 7
    %v1073 = vsub.s32 %v1070, %v1072
    %v1074 = vrot.slane %v701, %v1073
    %v1076 = vunpack.c.l.s4 1983009808
    %v1077 = vunpack.c.0.s8 %v1076
    %v1078 = vlaneseq
    %v1079 = vshrl.u32 %v1078, 7
    %v1080 = vsub.s32 %v1077, %v1079
    %v1081 = vrot.slane %v1067, %v1080
    %v1082 = vcombine.high %v1074, %v1074
    %v1083 = vcombine.high %v1081, %v1081
    %v1084 = vcombine.high %v702, %v702
    %v1086 = vunpack.c.l.s4 1983009808
    %v1087 = vunpack.c.0.s8 %v1086
    %v1088 = vlaneseq
    %v1089 = vshrl.u32 %v1088, 7
    %v1090 = vsub.s32 %v1087, %v1089
    %v1091 = vrot.slane %v702, %v1090
    %v1093 = vunpack.c.l.s4 1983009808
    %v1094 = vunpack.c.0.s8 %v1093
    %v1095 = vlaneseq
    %v1096 = vshrl.u32 %v1095, 7
    %v1097 = vsub.s32 %v1094, %v1096
    %v1098 = vrot.slane %v1084, %v1097
    %v1099 = vcombine.high %v1091, %v1091
    %v1100 = vcombine.high %v1098, %v1098
    %v1101 = vcombine.high %v703, %v703
    %v1103 = vunpack.c.l.s4 1983009808
    %v1104 = vunpack.c.0.s8 %v1103
    %v1105 = vlaneseq
    %v1106 = vshrl.u32 %v1105, 7
    %v1107 = vsub.s32 %v1104, %v1106
    %v1108 = vrot.slane %v703, %v1107
    %v1110 = vunpack.c.l.s4 1983009808
    %v1111 = vunpack.c.0.s8 %v1110
    %v1112 = vlaneseq
    %v1113 = vshrl.u32 %v1112, 7
    %v1114 = vsub.s32 %v1111, %v1113
    %v1115 = vrot.slane %v1101, %v1114
    %v1116 = vcombine.high %v1108, %v1108
    %v1117 = vcombine.high %v1115, %v1115
    %v1118 = vcombine.high %v704, %v704
    %v1120 = vunpack.c.l.s4 1983009808
    %v1121 = vunpack.c.0.s8 %v1120
    %v1122 = vlaneseq
    %v1123 = vshrl.u32 %v1122, 7
    %v1124 = vsub.s32 %v1121, %v1123
    %v1125 = vrot.slane %v704, %v1124
    %v1127 = vunpack.c.l.s4 1983009808
    %v1128 = vunpack.c.0.s8 %v1127
    %v1129 = vlaneseq
    %v1130 = vshrl.u32 %v1129, 7
    %v1131 = vsub.s32 %v1128, %v1130
    %v1132 = vrot.slane %v1118, %v1131
    %v1133 = vcombine.high %v1125, %v1125
    %v1134 = vcombine.high %v1132, %v1132
    %v1135 = vcombine.high %v705, %v705
    %v1137 = vunpack.c.l.s4 1983009808
    %v1138 = vunpack.c.0.s8 %v1137
    %v1139 = vlaneseq
    %v1140 = vshrl.u32 %v1139, 7
    %v1141 = vsub.s32 %v1138, %v1140
    %v1142 = vrot.slane %v705, %v1141
    %v1144 = vunpack.c.l.s4 1983009808
    %v1145 = vunpack.c.0.s8 %v1144
    %v1146 = vlaneseq
    %v1147 = vshrl.u32 %v1146, 7
    %v1148 = vsub.s32 %v1145, %v1147
    %v1149 = vrot.slane %v1135, %v1148
    %v1150 = vcombine.high %v1142, %v1142
    %v1151 = vcombine.high %v1149, %v1149
    %v1152 = vcombine.high %v706, %v706
    %v1154 = vunpack.c.l.s4 1983009808
    %v1155 = vunpack.c.0.s8 %v1154
    %v1156 = vlaneseq
    %v1157 = vshrl.u32 %v1156, 7
    %v1158 = vsub.s32 %v1155, %v1157
    %v1159 = vrot.slane %v706, %v1158
    %v1161 = vunpack.c.l.s4 1983009808
    %v1162 = vunpack.c.0.s8 %v1161
    %v1163 = vlaneseq
    %v1164 = vshrl.u32 %v1163, 7
    %v1165 = vsub.s32 %v1162, %v1164
    %v1166 = vrot.slane %v1152, %v1165
    %v1167 = vcombine.high %v1159, %v1159
    %v1168 = vcombine.high %v1166, %v1166
    %v1169 = vcombine.high %v707, %v707
    %v1171 = vunpack.c.l.s4 1983009808
    %v1172 = vunpack.c.0.s8 %v1171
    %v1173 = vlaneseq
    %v1174 = vshrl.u32 %v1173, 7
    %v1175 = vsub.s32 %v1172, %v1174
    %v1176 = vrot.slane %v707, %v1175
    %v1178 = vunpack.c.l.s4 1983009808
    %v1179 = vunpack.c.0.s8 %v1178
    %v1180 = vlaneseq
    %v1181 = vshrl.u32 %v1180, 7
    %v1182 = vsub.s32 %v1179, %v1181
    %v1183 = vrot.slane %v1169, %v1182
    %v1184 = vcombine.high %v1176, %v1176
    %v1185 = vcombine.high %v1183, %v1183
    %v1187 = vunpack.c.l.s4 1983009808
    %v1188 = vunpack.c.0.s8 %v1187
    %v1189 = vlaneseq
    %v1190 = vshrl.u32 %v1189, 7
    %v1191 = vsub.s32 %v1188, %v1190
    %v1192 = vrot.slane %v708, %v1191
    %v1193 = vcombine.high %v1192, %v1192
    %v1194 = vcombine.high %v709, %v709
    %v1196 = vunpack.c.l.s4 1983009808
    %v1197 = vunpack.c.0.s8 %v1196
    %v1198 = vlaneseq
    %v1199 = vshrl.u32 %v1198, 7
    %v1200 = vsub.s32 %v1197, %v1199
    %v1201 = vrot.slane %v709, %v1200
    %v1203 = vunpack.c.l.s4 1983009808
    %v1204 = vunpack.c.0.s8 %v1203
    %v1205 = vlaneseq
    %v1206 = vshrl.u32 %v1205, 7
    %v1207 = vsub.s32 %v1204, %v1206
    %v1208 = vrot.slane %v1194, %v1207
    %v1209 = vcombine.high %v1201, %v1201
    %v1210 = vcombine.high %v1208, %v1208
    %v1211 = vcombine.high %v710, %v710
    %v1213 = vunpack.c.l.s4 1983009808
    %v1214 = vunpack.c.0.s8 %v1213
    %v1215 = vlaneseq
    %v1216 = vshrl.u32 %v1215, 7
    %v1217 = vsub.s32 %v1214, %v1216
    %v1218 = vrot.slane %v710, %v1217
    %v1220 = vunpack.c.l.s4 1983009808
    %v1221 = vunpack.c.0.s8 %v1220
    %v1222 = vlaneseq
    %v1223 = vshrl.u32 %v1222, 7
    %v1224 = vsub.s32 %v1221, %v1223
    %v1225 = vrot.slane %v1211, %v1224
    %v1226 = vcombine.high %v1218, %v1218
    %v1227 = vcombine.high %v1225, %v1225
    %v1228 = vcombine.high %v711, %v711
    %v1230 = vunpack.c.l.s4 1983009808
    %v1231 = vunpack.c.0.s8 %v1230
    %v1232 = vlaneseq
    %v1233 = vshrl.u32 %v1232, 7
    %v1234 = vsub.s32 %v1231, %v1233
    %v1235 = vrot.slane %v711, %v1234
    %v1237 = vunpack.c.l.s4 1983009808
    %v1238 = vunpack.c.0.s8 %v1237
    %v1239 = vlaneseq
    %v1240 = vshrl.u32 %v1239, 7
    %v1241 = vsub.s32 %v1238, %v1240
    %v1242 = vrot.slane %v1228, %v1241
    %v1243 = vcombine.high %v1235, %v1235
    %v1244 = vcombine.high %v1242, %v1242
    %v1245 = vcombine.high %v712, %v712
    %v1247 = vunpack.c.l.s4 1983009808
    %v1248 = vunpack.c.0.s8 %v1247
    %v1249 = vlaneseq
    %v1250 = vshrl.u32 %v1249, 7
    %v1251 = vsub.s32 %v1248, %v1250
    %v1252 = vrot.slane %v712, %v1251
    %v1254 = vunpack.c.l.s4 1983009808
    %v1255 = vunpack.c.0.s8 %v1254
    %v1256 = vlaneseq
    %v1257 = vshrl.u32 %v1256, 7
    %v1258 = vsub.s32 %v1255, %v1257
    %v1259 = vrot.slane %v1245, %v1258
    %v1260 = vcombine.high %v1252, %v1252
    %v1261 = vcombine.high %v1259, %v1259
    %v1262 = vcombine.high %v713, %v713
    %v1264 = vunpack.c.l.s4 1983009808
    %v1265 = vunpack.c.0.s8 %v1264
    %v1266 = vlaneseq
    %v1267 = vshrl.u32 %v1266, 7
    %v1268 = vsub.s32 %v1265, %v1267
    %v1269 = vrot.slane %v713, %v1268
    %v1271 = vunpack.c.l.s4 1983009808
    %v1272 = vunpack.c.0.s8 %v1271
    %v1273 = vlaneseq
    %v1274 = vshrl.u32 %v1273, 7
    %v1275 = vsub.s32 %v1272, %v1274
    %v1276 = vrot.slane %v1262, %v1275
    %v1277 = vcombine.high %v1269, %v1269
    %v1278 = vcombine.high %v1276, %v1276
    %v1279 = vcombine.high %v714, %v714
    %v1281 = vunpack.c.l.s4 1983009808
    %v1282 = vunpack.c.0.s8 %v1281
    %v1283 = vlaneseq
    %v1284 = vshrl.u32 %v1283, 7
    %v1285 = vsub.s32 %v1282, %v1284
    %v1286 = vrot.slane %v714, %v1285
    %v1288 = vunpack.c.l.s4 1983009808
    %v1289 = vunpack.c.0.s8 %v1288
    %v1290 = vlaneseq
    %v1291 = vshrl.u32 %v1290, 7
    %v1292 = vsub.s32 %v1289, %v1291
    %v1293 = vrot.slane %v1279, %v1292
    %v1294 = vcombine.high %v1286, %v1286
    %v1295 = vcombine.high %v1293, %v1293
    %v1296 = vcombine.high %v715, %v715
    %v1298 = vunpack.c.l.s4 1983009808
    %v1299 = vunpack.c.0.s8 %v1298
    %v1300 = vlaneseq
    %v1301 = vshrl.u32 %v1300, 7
    %v1302 = vsub.s32 %v1299, %v1301
    %v1303 = vrot.slane %v715, %v1302
    %v1305 = vunpack.c.l.s4 1983009808
    %v1306 = vunpack.c.0.s8 %v1305
    %v1307 = vlaneseq
    %v1308 = vshrl.u32 %v1307, 7
    %v1309 = vsub.s32 %v1306, %v1308
    %v1310 = vrot.slane %v1296, %v1309
    %v1311 = vcombine.high %v1303, %v1303
    %v1312 = vcombine.high %v1310, %v1310
    %v1314 = vunpack.c.l.s4 1983009808
    %v1315 = vunpack.c.0.s8 %v1314
    %v1316 = vlaneseq
    %v1317 = vshrl.u32 %v1316, 7
    %v1318 = vsub.s32 %v1315, %v1317
    %v1319 = vrot.slane %v716, %v1318
    %v1320 = vcombine.high %v1319, %v1319
    %v1321 = vcombine.high %v717, %v717
    %v1323 = vunpack.c.l.s4 1983009808
    %v1324 = vunpack.c.0.s8 %v1323
    %v1325 = vlaneseq
    %v1326 = vshrl.u32 %v1325, 7
    %v1327 = vsub.s32 %v1324, %v1326
    %v1328 = vrot.slane %v717, %v1327
    %v1330 = vunpack.c.l.s4 1983009808
    %v1331 = vunpack.c.0.s8 %v1330
    %v1332 = vlaneseq
    %v1333 = vshrl.u32 %v1332, 7
    %v1334 = vsub.s32 %v1331, %v1333
    %v1335 = vrot.slane %v1321, %v1334
    %v1336 = vcombine.high %v1328, %v1328
    %v1337 = vcombine.high %v1335, %v1335
    %v1338 = vcombine.high %v718, %v718
    %v1340 = vunpack.c.l.s4 1983009808
    %v1341 = vunpack.c.0.s8 %v1340
    %v1342 = vlaneseq
    %v1343 = vshrl.u32 %v1342, 7
    %v1344 = vsub.s32 %v1341, %v1343
    %v1345 = vrot.slane %v718, %v1344
    %v1347 = vunpack.c.l.s4 1983009808
    %v1348 = vunpack.c.0.s8 %v1347
    %v1349 = vlaneseq
    %v1350 = vshrl.u32 %v1349, 7
    %v1351 = vsub.s32 %v1348, %v1350
    %v1352 = vrot.slane %v1338, %v1351
    %v1353 = vcombine.high %v1345, %v1345
    %v1354 = vcombine.high %v1352, %v1352
    %v1355 = vcombine.high %v719, %v719
    %v1357 = vunpack.c.l.s4 1983009808
    %v1358 = vunpack.c.0.s8 %v1357
    %v1359 = vlaneseq
    %v1360 = vshrl.u32 %v1359, 7
    %v1361 = vsub.s32 %v1358, %v1360
    %v1362 = vrot.slane %v719, %v1361
    %v1364 = vunpack.c.l.s4 1983009808
    %v1365 = vunpack.c.0.s8 %v1364
    %v1366 = vlaneseq
    %v1367 = vshrl.u32 %v1366, 7
    %v1368 = vsub.s32 %v1365, %v1367
    %v1369 = vrot.slane %v1355, %v1368
    %v1370 = vcombine.high %v1362, %v1362
    %v1371 = vcombine.high %v1369, %v1369
    %v1372 = vcombine.high %v720, %v720
    %v1374 = vunpack.c.l.s4 1983009808
    %v1375 = vunpack.c.0.s8 %v1374
    %v1376 = vlaneseq
    %v1377 = vshrl.u32 %v1376, 7
    %v1378 = vsub.s32 %v1375, %v1377
    %v1379 = vrot.slane %v720, %v1378
    %v1381 = vunpack.c.l.s4 1983009808
    %v1382 = vunpack.c.0.s8 %v1381
    %v1383 = vlaneseq
    %v1384 = vshrl.u32 %v1383, 7
    %v1385 = vsub.s32 %v1382, %v1384
    %v1386 = vrot.slane %v1372, %v1385
    %v1387 = vcombine.high %v1379, %v1379
    %v1388 = vcombine.high %v1386, %v1386
    %v1389 = vcombine.high %v721, %v721
    %v1391 = vunpack.c.l.s4 1983009808
    %v1392 = vunpack.c.0.s8 %v1391
    %v1393 = vlaneseq
    %v1394 = vshrl.u32 %v1393, 7
    %v1395 = vsub.s32 %v1392, %v1394
    %v1396 = vrot.slane %v721, %v1395
    %v1398 = vunpack.c.l.s4 1983009808
    %v1399 = vunpack.c.0.s8 %v1398
    %v1400 = vlaneseq
    %v1401 = vshrl.u32 %v1400, 7
    %v1402 = vsub.s32 %v1399, %v1401
    %v1403 = vrot.slane %v1389, %v1402
    %v1404 = vcombine.high %v1396, %v1396
    %v1405 = vcombine.high %v1403, %v1403
    %v1406 = vcombine.high %v722, %v722
    %v1408 = vunpack.c.l.s4 1983009808
    %v1409 = vunpack.c.0.s8 %v1408
    %v1410 = vlaneseq
    %v1411 = vshrl.u32 %v1410, 7
    %v1412 = vsub.s32 %v1409, %v1411
    %v1413 = vrot.slane %v722, %v1412
    %v1415 = vunpack.c.l.s4 1983009808
    %v1416 = vunpack.c.0.s8 %v1415
    %v1417 = vlaneseq
    %v1418 = vshrl.u32 %v1417, 7
    %v1419 = vsub.s32 %v1416, %v1418
    %v1420 = vrot.slane %v1406, %v1419
    %v1421 = vcombine.high %v1413, %v1413
    %v1422 = vcombine.high %v1420, %v1420
    %v1423 = vcombine.high %v723, %v723
    %v1425 = vunpack.c.l.s4 1983009808
    %v1426 = vunpack.c.0.s8 %v1425
    %v1427 = vlaneseq
    %v1428 = vshrl.u32 %v1427, 7
    %v1429 = vsub.s32 %v1426, %v1428
    %v1430 = vrot.slane %v723, %v1429
    %v1432 = vunpack.c.l.s4 1983009808
    %v1433 = vunpack.c.0.s8 %v1432
    %v1434 = vlaneseq
    %v1435 = vshrl.u32 %v1434, 7
    %v1436 = vsub.s32 %v1433, %v1435
    %v1437 = vrot.slane %v1423, %v1436
    %v1438 = vcombine.high %v1430, %v1430
    %v1439 = vcombine.high %v1437, %v1437
    %v1441 = vunpack.c.l.s4 1983009808
    %v1442 = vunpack.c.0.s8 %v1441
    %v1443 = vlaneseq
    %v1444 = vshrl.u32 %v1443, 7
    %v1445 = vsub.s32 %v1442, %v1444
    %v1446 = vrot.slane %v724, %v1445
    %v1447 = vcombine.high %v1446, %v1446
    %v1448 = vcombine.high %v725, %v725
    %v1450 = vunpack.c.l.s4 1983009808
    %v1451 = vunpack.c.0.s8 %v1450
    %v1452 = vlaneseq
    %v1453 = vshrl.u32 %v1452, 7
    %v1454 = vsub.s32 %v1451, %v1453
    %v1455 = vrot.slane %v725, %v1454
    %v1457 = vunpack.c.l.s4 1983009808
    %v1458 = vunpack.c.0.s8 %v1457
    %v1459 = vlaneseq
    %v1460 = vshrl.u32 %v1459, 7
    %v1461 = vsub.s32 %v1458, %v1460
    %v1462 = vrot.slane %v1448, %v1461
    %v1463 = vcombine.high %v1455, %v1455
    %v1464 = vcombine.high %v1462, %v1462
    %v1465 = vcombine.high %v726, %v726
    %v1467 = vunpack.c.l.s4 1983009808
    %v1468 = vunpack.c.0.s8 %v1467
    %v1469 = vlaneseq
    %v1470 = vshrl.u32 %v1469, 7
    %v1471 = vsub.s32 %v1468, %v1470
    %v1472 = vrot.slane %v726, %v1471
    %v1474 = vunpack.c.l.s4 1983009808
    %v1475 = vunpack.c.0.s8 %v1474
    %v1476 = vlaneseq
    %v1477 = vshrl.u32 %v1476, 7
    %v1478 = vsub.s32 %v1475, %v1477
    %v1479 = vrot.slane %v1465, %v1478
    %v1480 = vcombine.high %v1472, %v1472
    %v1481 = vcombine.high %v1479, %v1479
    %v1482 = vcombine.high %v727, %v727
    %v1484 = vunpack.c.l.s4 1983009808
    %v1485 = vunpack.c.0.s8 %v1484
    %v1486 = vlaneseq
    %v1487 = vshrl.u32 %v1486, 7
    %v1488 = vsub.s32 %v1485, %v1487
    %v1489 = vrot.slane %v727, %v1488
    %v1491 = vunpack.c.l.s4 1983009808
    %v1492 = vunpack.c.0.s8 %v1491
    %v1493 = vlaneseq
    %v1494 = vshrl.u32 %v1493, 7
    %v1495 = vsub.s32 %v1492, %v1494
    %v1496 = vrot.slane %v1482, %v1495
    %v1497 = vcombine.high %v1489, %v1489
    %v1498 = vcombine.high %v1496, %v1496
    %v1499 = vcombine.high %v728, %v728
    %v1501 = vunpack.c.l.s4 1983009808
    %v1502 = vunpack.c.0.s8 %v1501
    %v1503 = vlaneseq
    %v1504 = vshrl.u32 %v1503, 7
    %v1505 = vsub.s32 %v1502, %v1504
    %v1506 = vrot.slane %v728, %v1505
    %v1508 = vunpack.c.l.s4 1983009808
    %v1509 = vunpack.c.0.s8 %v1508
    %v1510 = vlaneseq
    %v1511 = vshrl.u32 %v1510, 7
    %v1512 = vsub.s32 %v1509, %v1511
    %v1513 = vrot.slane %v1499, %v1512
    %v1514 = vcombine.high %v1506, %v1506
    %v1515 = vcombine.high %v1513, %v1513
    %v1516 = vcombine.high %v729, %v729
    %v1518 = vunpack.c.l.s4 1983009808
    %v1519 = vunpack.c.0.s8 %v1518
    %v1520 = vlaneseq
    %v1521 = vshrl.u32 %v1520, 7
    %v1522 = vsub.s32 %v1519, %v1521
    %v1523 = vrot.slane %v729, %v1522
    %v1525 = vunpack.c.l.s4 1983009808
    %v1526 = vunpack.c.0.s8 %v1525
    %v1527 = vlaneseq
    %v1528 = vshrl.u32 %v1527, 7
    %v1529 = vsub.s32 %v1526, %v1528
    %v1530 = vrot.slane %v1516, %v1529
    %v1531 = vcombine.high %v1523, %v1523
    %v1532 = vcombine.high %v1530, %v1530
    %v1533 = vcombine.high %v730, %v730
    %v1535 = vunpack.c.l.s4 1983009808
    %v1536 = vunpack.c.0.s8 %v1535
    %v1537 = vlaneseq
    %v1538 = vshrl.u32 %v1537, 7
    %v1539 = vsub.s32 %v1536, %v1538
    %v1540 = vrot.slane %v730, %v1539
    %v1542 = vunpack.c.l.s4 1983009808
    %v1543 = vunpack.c.0.s8 %v1542
    %v1544 = vlaneseq
    %v1545 = vshrl.u32 %v1544, 7
    %v1546 = vsub.s32 %v1543, %v1545
    %v1547 = vrot.slane %v1533, %v1546
    %v1548 = vcombine.high %v1540, %v1540
    %v1549 = vcombine.high %v1547, %v1547
    %v1550 = vcombine.high %v731, %v731
    %v1552 = vunpack.c.l.s4 1983009808
    %v1553 = vunpack.c.0.s8 %v1552
    %v1554 = vlaneseq
    %v1555 = vshrl.u32 %v1554, 7
    %v1556 = vsub.s32 %v1553, %v1555
    %v1557 = vrot.slane %v731, %v1556
    %v1559 = vunpack.c.l.s4 1983009808
    %v1560 = vunpack.c.0.s8 %v1559
    %v1561 = vlaneseq
    %v1562 = vshrl.u32 %v1561, 7
    %v1563 = vsub.s32 %v1560, %v1562
    %v1564 = vrot.slane %v1550, %v1563
    %v1565 = vcombine.high %v1557, %v1557
    %v1566 = vcombine.high %v1564, %v1564
    %v1568 = vunpack.c.l.s4 1983009808
    %v1569 = vunpack.c.0.s8 %v1568
    %v1570 = vlaneseq
    %v1571 = vshrl.u32 %v1570, 7
    %v1572 = vsub.s32 %v1569, %v1571
    %v1573 = vrot.slane %v732, %v1572
    %v1574 = vcombine.high %v1573, %v1573
    %v1575 = vcombine.high %v733, %v733
    %v1577 = vunpack.c.l.s4 1983009808
    %v1578 = vunpack.c.0.s8 %v1577
    %v1579 = vlaneseq
    %v1580 = vshrl.u32 %v1579, 7
    %v1581 = vsub.s32 %v1578, %v1580
    %v1582 = vrot.slane %v733, %v1581
    %v1584 = vunpack.c.l.s4 1983009808
    %v1585 = vunpack.c.0.s8 %v1584
    %v1586 = vlaneseq
    %v1587 = vshrl.u32 %v1586, 7
    %v1588 = vsub.s32 %v1585, %v1587
    %v1589 = vrot.slane %v1575, %v1588
    %v1590 = vcombine.high %v1582, %v1582
    %v1591 = vcombine.high %v1589, %v1589
    %v1592 = vcombine.high %v734, %v734
    %v1594 = vunpack.c.l.s4 1983009808
    %v1595 = vunpack.c.0.s8 %v1594
    %v1596 = vlaneseq
    %v1597 = vshrl.u32 %v1596, 7
    %v1598 = vsub.s32 %v1595, %v1597
    %v1599 = vrot.slane %v734, %v1598
    %v1601 = vunpack.c.l.s4 1983009808
    %v1602 = vunpack.c.0.s8 %v1601
    %v1603 = vlaneseq
    %v1604 = vshrl.u32 %v1603, 7
    %v1605 = vsub.s32 %v1602, %v1604
    %v1606 = vrot.slane %v1592, %v1605
    %v1607 = vcombine.high %v1599, %v1599
    %v1608 = vcombine.high %v1606, %v1606
    %v1609 = vcombine.high %v735, %v735
    %v1611 = vunpack.c.l.s4 1983009808
    %v1612 = vunpack.c.0.s8 %v1611
    %v1613 = vlaneseq
    %v1614 = vshrl.u32 %v1613, 7
    %v1615 = vsub.s32 %v1612, %v1614
    %v1616 = vrot.slane %v735, %v1615
    %v1618 = vunpack.c.l.s4 1983009808
    %v1619 = vunpack.c.0.s8 %v1618
    %v1620 = vlaneseq
    %v1621 = vshrl.u32 %v1620, 7
    %v1622 = vsub.s32 %v1619, %v1621
    %v1623 = vrot.slane %v1609, %v1622
    %v1624 = vcombine.high %v1616, %v1616
    %v1625 = vcombine.high %v1623, %v1623
    %v1626 = vcombine.high %v736, %v736
    %v1628 = vunpack.c.l.s4 1983009808
    %v1629 = vunpack.c.0.s8 %v1628
    %v1630 = vlaneseq
    %v1631 = vshrl.u32 %v1630, 7
    %v1632 = vsub.s32 %v1629, %v1631
    %v1633 = vrot.slane %v736, %v1632
    %v1635 = vunpack.c.l.s4 1983009808
    %v1636 = vunpack.c.0.s8 %v1635
    %v1637 = vlaneseq
    %v1638 = vshrl.u32 %v1637, 7
    %v1639 = vsub.s32 %v1636, %v1638
    %v1640 = vrot.slane %v1626, %v1639
    %v1641 = vcombine.high %v1633, %v1633
    %v1642 = vcombine.high %v1640, %v1640
    %v1643 = vcombine.high %v737, %v737
    %v1645 = vunpack.c.l.s4 1983009808
    %v1646 = vunpack.c.0.s8 %v1645
    %v1647 = vlaneseq
    %v1648 = vshrl.u32 %v1647, 7
    %v1649 = vsub.s32 %v1646, %v1648
    %v1650 = vrot.slane %v737, %v1649
    %v1652 = vunpack.c.l.s4 1983009808
    %v1653 = vunpack.c.0.s8 %v1652
    %v1654 = vlaneseq
    %v1655 = vshrl.u32 %v1654, 7
    %v1656 = vsub.s32 %v1653, %v1655
    %v1657 = vrot.slane %v1643, %v1656
    %v1658 = vcombine.high %v1650, %v1650
    %v1659 = vcombine.high %v1657, %v1657
    %v1660 = vcombine.high %v738, %v738
    %v1662 = vunpack.c.l.s4 1983009808
    %v1663 = vunpack.c.0.s8 %v1662
    %v1664 = vlaneseq
    %v1665 = vshrl.u32 %v1664, 7
    %v1666 = vsub.s32 %v1663, %v1665
    %v1667 = vrot.slane %v738, %v1666
    %v1669 = vunpack.c.l.s4 1983009808
    %v1670 = vunpack.c.0.s8 %v1669
    %v1671 = vlaneseq
    %v1672 = vshrl.u32 %v1671, 7
    %v1673 = vsub.s32 %v1670, %v1672
    %v1674 = vrot.slane %v1660, %v1673
    %v1675 = vcombine.high %v1667, %v1667
    %v1676 = vcombine.high %v1674, %v1674
    %v1677 = vcombine.high %v739, %v739
    %v1679 = vunpack.c.l.s4 1983009808
    %v1680 = vunpack.c.0.s8 %v1679
    %v1681 = vlaneseq
    %v1682 = vshrl.u32 %v1681, 7
    %v1683 = vsub.s32 %v1680, %v1682
    %v1684 = vrot.slane %v739, %v1683
    %v1686 = vunpack.c.l.s4 1983009808
    %v1687 = vunpack.c.0.s8 %v1686
    %v1688 = vlaneseq
    %v1689 = vshrl.u32 %v1688, 7
    %v1690 = vsub.s32 %v1687, %v1689
    %v1691 = vrot.slane %v1677, %v1690
    %v1692 = vcombine.high %v1684, %v1684
    %v1693 = vcombine.high %v1691, %v1691
    %v1695 = vunpack.c.l.s4 1983009808
    %v1696 = vunpack.c.0.s8 %v1695
    %v1697 = vlaneseq
    %v1698 = vshrl.u32 %v1697, 7
    %v1699 = vsub.s32 %v1696, %v1698
    %v1700 = vrot.slane %v740, %v1699
    %v1701 = vcombine.high %v1700, %v1700
    %v1702 = vcombine.high %v741, %v741
    %v1704 = vunpack.c.l.s4 1983009808
    %v1705 = vunpack.c.0.s8 %v1704
    %v1706 = vlaneseq
    %v1707 = vshrl.u32 %v1706, 7
    %v1708 = vsub.s32 %v1705, %v1707
    %v1709 = vrot.slane %v741, %v1708
    %v1711 = vunpack.c.l.s4 1983009808
    %v1712 = vunpack.c.0.s8 %v1711
    %v1713 = vlaneseq
    %v1714 = vshrl.u32 %v1713, 7
    %v1715 = vsub.s32 %v1712, %v1714
    %v1716 = vrot.slane %v1702, %v1715
    %v1717 = vcombine.high %v1709, %v1709
    %v1718 = vcombine.high %v1716, %v1716
    %v1719 = vcombine.high %v742, %v742
    %v1721 = vunpack.c.l.s4 1983009808
    %v1722 = vunpack.c.0.s8 %v1721
    %v1723 = vlaneseq
    %v1724 = vshrl.u32 %v1723, 7
    %v1725 = vsub.s32 %v1722, %v1724
    %v1726 = vrot.slane %v742, %v1725
    %v1728 = vunpack.c.l.s4 1983009808
    %v1729 = vunpack.c.0.s8 %v1728
    %v1730 = vlaneseq
    %v1731 = vshrl.u32 %v1730, 7
    %v1732 = vsub.s32 %v1729, %v1731
    %v1733 = vrot.slane %v1719, %v1732
    %v1734 = vcombine.high %v1726, %v1726
    %v1735 = vcombine.high %v1733, %v1733
    %v1736 = vcombine.high %v743, %v743
    %v1738 = vunpack.c.l.s4 1983009808
    %v1739 = vunpack.c.0.s8 %v1738
    %v1740 = vlaneseq
    %v1741 = vshrl.u32 %v1740, 7
    %v1742 = vsub.s32 %v1739, %v1741
    %v1743 = vrot.slane %v743, %v1742
    %v1745 = vunpack.c.l.s4 1983009808
    %v1746 = vunpack.c.0.s8 %v1745
    %v1747 = vlaneseq
    %v1748 = vshrl.u32 %v1747, 7
    %v1749 = vsub.s32 %v1746, %v1748
    %v1750 = vrot.slane %v1736, %v1749
    %v1751 = vcombine.high %v1743, %v1743
    %v1752 = vcombine.high %v1750, %v1750
    %v1753 = vcombine.high %v744, %v744
    %v1755 = vunpack.c.l.s4 1983009808
    %v1756 = vunpack.c.0.s8 %v1755
    %v1757 = vlaneseq
    %v1758 = vshrl.u32 %v1757, 7
    %v1759 = vsub.s32 %v1756, %v1758
    %v1760 = vrot.slane %v744, %v1759
    %v1762 = vunpack.c.l.s4 1983009808
    %v1763 = vunpack.c.0.s8 %v1762
    %v1764 = vlaneseq
    %v1765 = vshrl.u32 %v1764, 7
    %v1766 = vsub.s32 %v1763, %v1765
    %v1767 = vrot.slane %v1753, %v1766
    %v1768 = vcombine.high %v1760, %v1760
    %v1769 = vcombine.high %v1767, %v1767
    %v1770 = vcombine.high %v745, %v745
    %v1772 = vunpack.c.l.s4 1983009808
    %v1773 = vunpack.c.0.s8 %v1772
    %v1774 = vlaneseq
    %v1775 = vshrl.u32 %v1774, 7
    %v1776 = vsub.s32 %v1773, %v1775
    %v1777 = vrot.slane %v745, %v1776
    %v1779 = vunpack.c.l.s4 1983009808
    %v1780 = vunpack.c.0.s8 %v1779
    %v1781 = vlaneseq
    %v1782 = vshrl.u32 %v1781, 7
    %v1783 = vsub.s32 %v1780, %v1782
    %v1784 = vrot.slane %v1770, %v1783
    %v1785 = vcombine.high %v1777, %v1777
    %v1786 = vcombine.high %v1784, %v1784
    %v1787 = vcombine.high %v746, %v746
    %v1789 = vunpack.c.l.s4 1983009808
    %v1790 = vunpack.c.0.s8 %v1789
    %v1791 = vlaneseq
    %v1792 = vshrl.u32 %v1791, 7
    %v1793 = vsub.s32 %v1790, %v1792
    %v1794 = vrot.slane %v746, %v1793
    %v1796 = vunpack.c.l.s4 1983009808
    %v1797 = vunpack.c.0.s8 %v1796
    %v1798 = vlaneseq
    %v1799 = vshrl.u32 %v1798, 7
    %v1800 = vsub.s32 %v1797, %v1799
    %v1801 = vrot.slane %v1787, %v1800
    %v1802 = vcombine.high %v1794, %v1794
    %v1803 = vcombine.high %v1801, %v1801
    %v1804 = vcombine.high %v747, %v747
    %v1806 = vunpack.c.l.s4 1983009808
    %v1807 = vunpack.c.0.s8 %v1806
    %v1808 = vlaneseq
    %v1809 = vshrl.u32 %v1808, 7
    %v1810 = vsub.s32 %v1807, %v1809
    %v1811 = vrot.slane %v747, %v1810
    %v1813 = vunpack.c.l.s4 1983009808
    %v1814 = vunpack.c.0.s8 %v1813
    %v1815 = vlaneseq
    %v1816 = vshrl.u32 %v1815, 7
    %v1817 = vsub.s32 %v1814, %v1816
    %v1818 = vrot.slane %v1804, %v1817
    %v1819 = vcombine.high %v1811, %v1811
    %v1820 = vcombine.high %v1818, %v1818
    %v1822 = vunpack.c.l.s4 1983009808
    %v1823 = vunpack.c.0.s8 %v1822
    %v1824 = vlaneseq
    %v1825 = vshrl.u32 %v1824, 7
    %v1826 = vsub.s32 %v1823, %v1825
    %v1827 = vrot.slane %v748, %v1826
    %v1828 = vcombine.high %v1827, %v1827
    %vm2069 = vcmask 1041408
    %v2070 = vsel %vm2069, %v820, -inf
    %v2071 = vrot.slane %v2070, 4
    %v2072 = vmax.f32 %v2070, %v2071
    %v2073 = vrot.slane %v2072, 2
    %v2074 = vmax.f32 %v2072, %v2073
    %v2075 = vrot.slane %v2074, 1
    %v2076 = vmax.f32 %v2074, %v2075
    %v2077 = vsel %vm2069, %v828, -inf
    %v2078 = vrot.slane %v2077, 4
    %v2079 = vmax.f32 %v2077, %v2078
    %v2080 = vrot.slane %v2079, 2
    %v2081 = vmax.f32 %v2079, %v2080
    %v2082 = vrot.slane %v2081, 1
    %v2083 = vmax.f32 %v2081, %v2082
    %v2084 = vsel %vm2069, %v827, -inf
    %v2085 = vrot.slane %v2084, 4
    %v2086 = vmax.f32 %v2084, %v2085
    %v2087 = vrot.slane %v2086, 2
    %v2088 = vmax.f32 %v2086, %v2087
    %v2089 = vrot.slane %v2088, 1
    %v2090 = vmax.f32 %v2088, %v2089
    %v2091 = vsel %vm2069, %v829, -inf
    %v2092 = vrot.slane %v2091, 4
    %v2093 = vmax.f32 %v2091, %v2092
    %v2094 = vrot.slane %v2093, 2
    %v2095 = vmax.f32 %v2093, %v2094
    %v2096 = vrot.slane %v2095, 1
    %v2097 = vmax.f32 %v2095, %v2096
    %v2098 = vsel %vm2069, %v837, -inf
    %v2099 = vrot.slane %v2098, 4
    %v2100 = vmax.f32 %v2098, %v2099
    %v2101 = vrot.slane %v2100, 2
    %v2102 = vmax.f32 %v2100, %v2101
    %v2103 = vrot.slane %v2102, 1
    %v2104 = vmax.f32 %v2102, %v2103
    %v2105 = vsel %vm2069, %v845, -inf
    %v2106 = vrot.slane %v2105, 4
    %v2107 = vmax.f32 %v2105, %v2106
    %v2108 = vrot.slane %v2107, 2
    %v2109 = vmax.f32 %v2107, %v2108
    %v2110 = vrot.slane %v2109, 1
    %v2111 = vmax.f32 %v2109, %v2110
    %v2112 = vsel %vm2069, %v844, -inf
    %v2113 = vrot.slane %v2112, 4
    %v2114 = vmax.f32 %v2112, %v2113
    %v2115 = vrot.slane %v2114, 2
    %v2116 = vmax.f32 %v2114, %v2115
    %v2117 = vrot.slane %v2116, 1
    %v2118 = vmax.f32 %v2116, %v2117
    %v2119 = vsel %vm2069, %v846, -inf
    %v2120 = vrot.slane %v2119, 4
    %v2121 = vmax.f32 %v2119, %v2120
    %v2122 = vrot.slane %v2121, 2
    %v2123 = vmax.f32 %v2121, %v2122
    %v2124 = vrot.slane %v2123, 1
    %v2125 = vmax.f32 %v2123, %v2124
    %v2126 = vsel %vm2069, %v854, -inf
    %v2127 = vrot.slane %v2126, 4
    %v2128 = vmax.f32 %v2126, %v2127
    %v2129 = vrot.slane %v2128, 2
    %v2130 = vmax.f32 %v2128, %v2129
    %v2131 = vrot.slane %v2130, 1
    %v2132 = vmax.f32 %v2130, %v2131
    %v2133 = vsel %vm2069, %v862, -inf
    %v2134 = vrot.slane %v2133, 4
    %v2135 = vmax.f32 %v2133, %v2134
    %v2136 = vrot.slane %v2135, 2
    %v2137 = vmax.f32 %v2135, %v2136
    %v2138 = vrot.slane %v2137, 1
    %v2139 = vmax.f32 %v2137, %v2138
    %v2140 = vsel %vm2069, %v861, -inf
    %v2141 = vrot.slane %v2140, 4
    %v2142 = vmax.f32 %v2140, %v2141
    %v2143 = vrot.slane %v2142, 2
    %v2144 = vmax.f32 %v2142, %v2143
    %v2145 = vrot.slane %v2144, 1
    %v2146 = vmax.f32 %v2144, %v2145
    %v2147 = vsel %vm2069, %v863, -inf
    %v2148 = vrot.slane %v2147, 4
    %v2149 = vmax.f32 %v2147, %v2148
    %v2150 = vrot.slane %v2149, 2
    %v2151 = vmax.f32 %v2149, %v2150
    %v2152 = vrot.slane %v2151, 1
    %v2153 = vmax.f32 %v2151, %v2152
    %v2154 = vsel %vm2069, %v871, -inf
    %v2155 = vrot.slane %v2154, 4
    %v2156 = vmax.f32 %v2154, %v2155
    %v2157 = vrot.slane %v2156, 2
    %v2158 = vmax.f32 %v2156, %v2157
    %v2159 = vrot.slane %v2158, 1
    %v2160 = vmax.f32 %v2158, %v2159
    %v2161 = vsel %vm2069, %v879, -inf
    %v2162 = vrot.slane %v2161, 4
    %v2163 = vmax.f32 %v2161, %v2162
    %v2164 = vrot.slane %v2163, 2
    %v2165 = vmax.f32 %v2163, %v2164
    %v2166 = vrot.slane %v2165, 1
    %v2167 = vmax.f32 %v2165, %v2166
    %v2168 = vsel %vm2069, %v878, -inf
    %v2169 = vrot.slane %v2168, 4
    %v2170 = vmax.f32 %v2168, %v2169
    %v2171 = vrot.slane %v2170, 2
    %v2172 = vmax.f32 %v2170, %v2171
    %v2173 = vrot.slane %v2172, 1
    %v2174 = vmax.f32 %v2172, %v2173
    %v2175 = vsel %vm2069, %v880, -inf
    %v2176 = vrot.slane %v2175, 4
    %v2177 = vmax.f32 %v2175, %v2176
    %v2178 = vrot.slane %v2177, 2
    %v2179 = vmax.f32 %v2177, %v2178
    %v2180 = vrot.slane %v2179, 1
    %v2181 = vmax.f32 %v2179, %v2180
    %v2182 = vsel %vm2069, %v888, -inf
    %v2183 = vrot.slane %v2182, 4
    %v2184 = vmax.f32 %v2182, %v2183
    %v2185 = vrot.slane %v2184, 2
    %v2186 = vmax.f32 %v2184, %v2185
    %v2187 = vrot.slane %v2186, 1
    %v2188 = vmax.f32 %v2186, %v2187
    %v2189 = vsel %vm2069, %v896, -inf
    %v2190 = vrot.slane %v2189, 4
    %v2191 = vmax.f32 %v2189, %v2190
    %v2192 = vrot.slane %v2191, 2
    %v2193 = vmax.f32 %v2191, %v2192
    %v2194 = vrot.slane %v2193, 1
    %v2195 = vmax.f32 %v2193, %v2194
    %v2196 = vsel %vm2069, %v895, -inf
    %v2197 = vrot.slane %v2196, 4
    %v2198 = vmax.f32 %v2196, %v2197
    %v2199 = vrot.slane %v2198, 2
    %v2200 = vmax.f32 %v2198, %v2199
    %v2201 = vrot.slane %v2200, 1
    %v2202 = vmax.f32 %v2200, %v2201
    %v2203 = vsel %vm2069, %v897, -inf
    %v2204 = vrot.slane %v2203, 4
    %v2205 = vmax.f32 %v2203, %v2204
    %v2206 = vrot.slane %v2205, 2
    %v2207 = vmax.f32 %v2205, %v2206
    %v2208 = vrot.slane %v2207, 1
    %v2209 = vmax.f32 %v2207, %v2208
    %v2210 = vsel %vm2069, %v905, -inf
    %v2211 = vrot.slane %v2210, 4
    %v2212 = vmax.f32 %v2210, %v2211
    %v2213 = vrot.slane %v2212, 2
    %v2214 = vmax.f32 %v2212, %v2213
    %v2215 = vrot.slane %v2214, 1
    %v2216 = vmax.f32 %v2214, %v2215
    %v2217 = vsel %vm2069, %v913, -inf
    %v2218 = vrot.slane %v2217, 4
    %v2219 = vmax.f32 %v2217, %v2218
    %v2220 = vrot.slane %v2219, 2
    %v2221 = vmax.f32 %v2219, %v2220
    %v2222 = vrot.slane %v2221, 1
    %v2223 = vmax.f32 %v2221, %v2222
    %v2224 = vsel %vm2069, %v912, -inf
    %v2225 = vrot.slane %v2224, 4
    %v2226 = vmax.f32 %v2224, %v2225
    %v2227 = vrot.slane %v2226, 2
    %v2228 = vmax.f32 %v2226, %v2227
    %v2229 = vrot.slane %v2228, 1
    %v2230 = vmax.f32 %v2228, %v2229
    %v2231 = vsel %vm2069, %v914, -inf
    %v2232 = vrot.slane %v2231, 4
    %v2233 = vmax.f32 %v2231, %v2232
    %v2234 = vrot.slane %v2233, 2
    %v2235 = vmax.f32 %v2233, %v2234
    %v2236 = vrot.slane %v2235, 1
    %v2237 = vmax.f32 %v2235, %v2236
    %v2238 = vsel %vm2069, %v922, -inf
    %v2239 = vrot.slane %v2238, 4
    %v2240 = vmax.f32 %v2238, %v2239
    %v2241 = vrot.slane %v2240, 2
    %v2242 = vmax.f32 %v2240, %v2241
    %v2243 = vrot.slane %v2242, 1
    %v2244 = vmax.f32 %v2242, %v2243
    %v2245 = vsel %vm2069, %v930, -inf
    %v2246 = vrot.slane %v2245, 4
    %v2247 = vmax.f32 %v2245, %v2246
    %v2248 = vrot.slane %v2247, 2
    %v2249 = vmax.f32 %v2247, %v2248
    %v2250 = vrot.slane %v2249, 1
    %v2251 = vmax.f32 %v2249, %v2250
    %v2252 = vsel %vm2069, %v929, -inf
    %v2253 = vrot.slane %v2252, 4
    %v2254 = vmax.f32 %v2252, %v2253
    %v2255 = vrot.slane %v2254, 2
    %v2256 = vmax.f32 %v2254, %v2255
    %v2257 = vrot.slane %v2256, 1
    %v2258 = vmax.f32 %v2256, %v2257
    %v2259 = vsel %vm2069, %v931, -inf
    %v2260 = vrot.slane %v2259, 4
    %v2261 = vmax.f32 %v2259, %v2260
    %v2262 = vrot.slane %v2261, 2
    %v2263 = vmax.f32 %v2261, %v2262
    %v2264 = vrot.slane %v2263, 1
    %v2265 = vmax.f32 %v2263, %v2264
    %v2266 = vsel %vm2069, %v938, -inf
    %v2267 = vrot.slane %v2266, 4
    %v2268 = vmax.f32 %v2266, %v2267
    %v2269 = vrot.slane %v2268, 2
    %v2270 = vmax.f32 %v2268, %v2269
    %v2271 = vrot.slane %v2270, 1
    %v2272 = vmax.f32 %v2270, %v2271
    %v2273 = vsel %vm2069, %v939, -inf
    %v2274 = vrot.slane %v2273, 4
    %v2275 = vmax.f32 %v2273, %v2274
    %v2276 = vrot.slane %v2275, 2
    %v2277 = vmax.f32 %v2275, %v2276
    %v2278 = vrot.slane %v2277, 1
    %v2279 = vmax.f32 %v2277, %v2278
    %v2280 = vsel %vm2069, %v947, -inf
    %v2281 = vrot.slane %v2280, 4
    %v2282 = vmax.f32 %v2280, %v2281
    %v2283 = vrot.slane %v2282, 2
    %v2284 = vmax.f32 %v2282, %v2283
    %v2285 = vrot.slane %v2284, 1
    %v2286 = vmax.f32 %v2284, %v2285
    %v2287 = vsel %vm2069, %v955, -inf
    %v2288 = vrot.slane %v2287, 4
    %v2289 = vmax.f32 %v2287, %v2288
    %v2290 = vrot.slane %v2289, 2
    %v2291 = vmax.f32 %v2289, %v2290
    %v2292 = vrot.slane %v2291, 1
    %v2293 = vmax.f32 %v2291, %v2292
    %v2294 = vsel %vm2069, %v954, -inf
    %v2295 = vrot.slane %v2294, 4
    %v2296 = vmax.f32 %v2294, %v2295
    %v2297 = vrot.slane %v2296, 2
    %v2298 = vmax.f32 %v2296, %v2297
    %v2299 = vrot.slane %v2298, 1
    %v2300 = vmax.f32 %v2298, %v2299
    %v2301 = vsel %vm2069, %v956, -inf
    %v2302 = vrot.slane %v2301, 4
    %v2303 = vmax.f32 %v2301, %v2302
    %v2304 = vrot.slane %v2303, 2
    %v2305 = vmax.f32 %v2303, %v2304
    %v2306 = vrot.slane %v2305, 1
    %v2307 = vmax.f32 %v2305, %v2306
    %v2308 = vsel %vm2069, %v964, -inf
    %v2309 = vrot.slane %v2308, 4
    %v2310 = vmax.f32 %v2308, %v2309
    %v2311 = vrot.slane %v2310, 2
    %v2312 = vmax.f32 %v2310, %v2311
    %v2313 = vrot.slane %v2312, 1
    %v2314 = vmax.f32 %v2312, %v2313
    %v2315 = vsel %vm2069, %v972, -inf
    %v2316 = vrot.slane %v2315, 4
    %v2317 = vmax.f32 %v2315, %v2316
    %v2318 = vrot.slane %v2317, 2
    %v2319 = vmax.f32 %v2317, %v2318
    %v2320 = vrot.slane %v2319, 1
    %v2321 = vmax.f32 %v2319, %v2320
    %v2322 = vsel %vm2069, %v971, -inf
    %v2323 = vrot.slane %v2322, 4
    %v2324 = vmax.f32 %v2322, %v2323
    %v2325 = vrot.slane %v2324, 2
    %v2326 = vmax.f32 %v2324, %v2325
    %v2327 = vrot.slane %v2326, 1
    %v2328 = vmax.f32 %v2326, %v2327
    %v2329 = vsel %vm2069, %v973, -inf
    %v2330 = vrot.slane %v2329, 4
    %v2331 = vmax.f32 %v2329, %v2330
    %v2332 = vrot.slane %v2331, 2
    %v2333 = vmax.f32 %v2331, %v2332
    %v2334 = vrot.slane %v2333, 1
    %v2335 = vmax.f32 %v2333, %v2334
    %v2336 = vsel %vm2069, %v981, -inf
    %v2337 = vrot.slane %v2336, 4
    %v2338 = vmax.f32 %v2336, %v2337
    %v2339 = vrot.slane %v2338, 2
    %v2340 = vmax.f32 %v2338, %v2339
    %v2341 = vrot.slane %v2340, 1
    %v2342 = vmax.f32 %v2340, %v2341
    %v2343 = vsel %vm2069, %v989, -inf
    %v2344 = vrot.slane %v2343, 4
    %v2345 = vmax.f32 %v2343, %v2344
    %v2346 = vrot.slane %v2345, 2
    %v2347 = vmax.f32 %v2345, %v2346
    %v2348 = vrot.slane %v2347, 1
    %v2349 = vmax.f32 %v2347, %v2348
    %v2350 = vsel %vm2069, %v988, -inf
    %v2351 = vrot.slane %v2350, 4
    %v2352 = vmax.f32 %v2350, %v2351
    %v2353 = vrot.slane %v2352, 2
    %v2354 = vmax.f32 %v2352, %v2353
    %v2355 = vrot.slane %v2354, 1
    %v2356 = vmax.f32 %v2354, %v2355
    %v2357 = vsel %vm2069, %v990, -inf
    %v2358 = vrot.slane %v2357, 4
    %v2359 = vmax.f32 %v2357, %v2358
    %v2360 = vrot.slane %v2359, 2
    %v2361 = vmax.f32 %v2359, %v2360
    %v2362 = vrot.slane %v2361, 1
    %v2363 = vmax.f32 %v2361, %v2362
    %v2364 = vsel %vm2069, %v998, -inf
    %v2365 = vrot.slane %v2364, 4
    %v2366 = vmax.f32 %v2364, %v2365
    %v2367 = vrot.slane %v2366, 2
    %v2368 = vmax.f32 %v2366, %v2367
    %v2369 = vrot.slane %v2368, 1
    %v2370 = vmax.f32 %v2368, %v2369
    %v2371 = vsel %vm2069, %v1006, -inf
    %v2372 = vrot.slane %v2371, 4
    %v2373 = vmax.f32 %v2371, %v2372
    %v2374 = vrot.slane %v2373, 2
    %v2375 = vmax.f32 %v2373, %v2374
    %v2376 = vrot.slane %v2375, 1
    %v2377 = vmax.f32 %v2375, %v2376
    %v2378 = vsel %vm2069, %v1005, -inf
    %v2379 = vrot.slane %v2378, 4
    %v2380 = vmax.f32 %v2378, %v2379
    %v2381 = vrot.slane %v2380, 2
    %v2382 = vmax.f32 %v2380, %v2381
    %v2383 = vrot.slane %v2382, 1
    %v2384 = vmax.f32 %v2382, %v2383
    %v2385 = vsel %vm2069, %v1007, -inf
    %v2386 = vrot.slane %v2385, 4
    %v2387 = vmax.f32 %v2385, %v2386
    %v2388 = vrot.slane %v2387, 2
    %v2389 = vmax.f32 %v2387, %v2388
    %v2390 = vrot.slane %v2389, 1
    %v2391 = vmax.f32 %v2389, %v2390
    %v2392 = vsel %vm2069, %v1015, -inf
    %v2393 = vrot.slane %v2392, 4
    %v2394 = vmax.f32 %v2392, %v2393
    %v2395 = vrot.slane %v2394, 2
    %v2396 = vmax.f32 %v2394, %v2395
    %v2397 = vrot.slane %v2396, 1
    %v2398 = vmax.f32 %v2396, %v2397
    %v2399 = vsel %vm2069, %v1023, -inf
    %v2400 = vrot.slane %v2399, 4
    %v2401 = vmax.f32 %v2399, %v2400
    %v2402 = vrot.slane %v2401, 2
    %v2403 = vmax.f32 %v2401, %v2402
    %v2404 = vrot.slane %v2403, 1
    %v2405 = vmax.f32 %v2403, %v2404
    %v2406 = vsel %vm2069, %v1022, -inf
    %v2407 = vrot.slane %v2406, 4
    %v2408 = vmax.f32 %v2406, %v2407
    %v2409 = vrot.slane %v2408, 2
    %v2410 = vmax.f32 %v2408, %v2409
    %v2411 = vrot.slane %v2410, 1
    %v2412 = vmax.f32 %v2410, %v2411
    %v2413 = vsel %vm2069, %v1024, -inf
    %v2414 = vrot.slane %v2413, 4
    %v2415 = vmax.f32 %v2413, %v2414
    %v2416 = vrot.slane %v2415, 2
    %v2417 = vmax.f32 %v2415, %v2416
    %v2418 = vrot.slane %v2417, 1
    %v2419 = vmax.f32 %v2417, %v2418
    %v2420 = vsel %vm2069, %v1032, -inf
    %v2421 = vrot.slane %v2420, 4
    %v2422 = vmax.f32 %v2420, %v2421
    %v2423 = vrot.slane %v2422, 2
    %v2424 = vmax.f32 %v2422, %v2423
    %v2425 = vrot.slane %v2424, 1
    %v2426 = vmax.f32 %v2424, %v2425
    %v2427 = vsel %vm2069, %v1040, -inf
    %v2428 = vrot.slane %v2427, 4
    %v2429 = vmax.f32 %v2427, %v2428
    %v2430 = vrot.slane %v2429, 2
    %v2431 = vmax.f32 %v2429, %v2430
    %v2432 = vrot.slane %v2431, 1
    %v2433 = vmax.f32 %v2431, %v2432
    %v2434 = vsel %vm2069, %v1039, -inf
    %v2435 = vrot.slane %v2434, 4
    %v2436 = vmax.f32 %v2434, %v2435
    %v2437 = vrot.slane %v2436, 2
    %v2438 = vmax.f32 %v2436, %v2437
    %v2439 = vrot.slane %v2438, 1
    %v2440 = vmax.f32 %v2438, %v2439
    %v2441 = vsel %vm2069, %v1041, -inf
    %v2442 = vrot.slane %v2441, 4
    %v2443 = vmax.f32 %v2441, %v2442
    %v2444 = vrot.slane %v2443, 2
    %v2445 = vmax.f32 %v2443, %v2444
    %v2446 = vrot.slane %v2445, 1
    %v2447 = vmax.f32 %v2445, %v2446
    %v2448 = vsel %vm2069, %v1049, -inf
    %v2449 = vrot.slane %v2448, 4
    %v2450 = vmax.f32 %v2448, %v2449
    %v2451 = vrot.slane %v2450, 2
    %v2452 = vmax.f32 %v2450, %v2451
    %v2453 = vrot.slane %v2452, 1
    %v2454 = vmax.f32 %v2452, %v2453
    %v2455 = vsel %vm2069, %v1057, -inf
    %v2456 = vrot.slane %v2455, 4
    %v2457 = vmax.f32 %v2455, %v2456
    %v2458 = vrot.slane %v2457, 2
    %v2459 = vmax.f32 %v2457, %v2458
    %v2460 = vrot.slane %v2459, 1
    %v2461 = vmax.f32 %v2459, %v2460
    %v2462 = vsel %vm2069, %v1056, -inf
    %v2463 = vrot.slane %v2462, 4
    %v2464 = vmax.f32 %v2462, %v2463
    %v2465 = vrot.slane %v2464, 2
    %v2466 = vmax.f32 %v2464, %v2465
    %v2467 = vrot.slane %v2466, 1
    %v2468 = vmax.f32 %v2466, %v2467
    %v2469 = vsel %vm2069, %v1058, -inf
    %v2470 = vrot.slane %v2469, 4
    %v2471 = vmax.f32 %v2469, %v2470
    %v2472 = vrot.slane %v2471, 2
    %v2473 = vmax.f32 %v2471, %v2472
    %v2474 = vrot.slane %v2473, 1
    %v2475 = vmax.f32 %v2473, %v2474
    %v2476 = vsel %vm2069, %v1065, -inf
    %v2477 = vrot.slane %v2476, 4
    %v2478 = vmax.f32 %v2476, %v2477
    %v2479 = vrot.slane %v2478, 2
    %v2480 = vmax.f32 %v2478, %v2479
    %v2481 = vrot.slane %v2480, 1
    %v2482 = vmax.f32 %v2480, %v2481
    %v2483 = vsel %vm2069, %v1066, -inf
    %v2484 = vrot.slane %v2483, 4
    %v2485 = vmax.f32 %v2483, %v2484
    %v2486 = vrot.slane %v2485, 2
    %v2487 = vmax.f32 %v2485, %v2486
    %v2488 = vrot.slane %v2487, 1
    %v2489 = vmax.f32 %v2487, %v2488
    %v2490 = vsel %vm2069, %v1074, -inf
    %v2491 = vrot.slane %v2490, 4
    %v2492 = vmax.f32 %v2490, %v2491
    %v2493 = vrot.slane %v2492, 2
    %v2494 = vmax.f32 %v2492, %v2493
    %v2495 = vrot.slane %v2494, 1
    %v2496 = vmax.f32 %v2494, %v2495
    %v2497 = vsel %vm2069, %v1082, -inf
    %v2498 = vrot.slane %v2497, 4
    %v2499 = vmax.f32 %v2497, %v2498
    %v2500 = vrot.slane %v2499, 2
    %v2501 = vmax.f32 %v2499, %v2500
    %v2502 = vrot.slane %v2501, 1
    %v2503 = vmax.f32 %v2501, %v2502
    %v2504 = vsel %vm2069, %v1081, -inf
    %v2505 = vrot.slane %v2504, 4
    %v2506 = vmax.f32 %v2504, %v2505
    %v2507 = vrot.slane %v2506, 2
    %v2508 = vmax.f32 %v2506, %v2507
    %v2509 = vrot.slane %v2508, 1
    %v2510 = vmax.f32 %v2508, %v2509
    %v2511 = vsel %vm2069, %v1083, -inf
    %v2512 = vrot.slane %v2511, 4
    %v2513 = vmax.f32 %v2511, %v2512
    %v2514 = vrot.slane %v2513, 2
    %v2515 = vmax.f32 %v2513, %v2514
    %v2516 = vrot.slane %v2515, 1
    %v2517 = vmax.f32 %v2515, %v2516
    %v2518 = vsel %vm2069, %v1091, -inf
    %v2519 = vrot.slane %v2518, 4
    %v2520 = vmax.f32 %v2518, %v2519
    %v2521 = vrot.slane %v2520, 2
    %v2522 = vmax.f32 %v2520, %v2521
    %v2523 = vrot.slane %v2522, 1
    %v2524 = vmax.f32 %v2522, %v2523
    %v2525 = vsel %vm2069, %v1099, -inf
    %v2526 = vrot.slane %v2525, 4
    %v2527 = vmax.f32 %v2525, %v2526
    %v2528 = vrot.slane %v2527, 2
    %v2529 = vmax.f32 %v2527, %v2528
    %v2530 = vrot.slane %v2529, 1
    %v2531 = vmax.f32 %v2529, %v2530
    %v2532 = vsel %vm2069, %v1098, -inf
    %v2533 = vrot.slane %v2532, 4
    %v2534 = vmax.f32 %v2532, %v2533
    %v2535 = vrot.slane %v2534, 2
    %v2536 = vmax.f32 %v2534, %v2535
    %v2537 = vrot.slane %v2536, 1
    %v2538 = vmax.f32 %v2536, %v2537
    %v2539 = vsel %vm2069, %v1100, -inf
    %v2540 = vrot.slane %v2539, 4
    %v2541 = vmax.f32 %v2539, %v2540
    %v2542 = vrot.slane %v2541, 2
    %v2543 = vmax.f32 %v2541, %v2542
    %v2544 = vrot.slane %v2543, 1
    %v2545 = vmax.f32 %v2543, %v2544
    %v2546 = vsel %vm2069, %v1108, -inf
    %v2547 = vrot.slane %v2546, 4
    %v2548 = vmax.f32 %v2546, %v2547
    %v2549 = vrot.slane %v2548, 2
    %v2550 = vmax.f32 %v2548, %v2549
    %v2551 = vrot.slane %v2550, 1
    %v2552 = vmax.f32 %v2550, %v2551
    %v2553 = vsel %vm2069, %v1116, -inf
    %v2554 = vrot.slane %v2553, 4
    %v2555 = vmax.f32 %v2553, %v2554
    %v2556 = vrot.slane %v2555, 2
    %v2557 = vmax.f32 %v2555, %v2556
    %v2558 = vrot.slane %v2557, 1
    %v2559 = vmax.f32 %v2557, %v2558
    %v2560 = vsel %vm2069, %v1115, -inf
    %v2561 = vrot.slane %v2560, 4
    %v2562 = vmax.f32 %v2560, %v2561
    %v2563 = vrot.slane %v2562, 2
    %v2564 = vmax.f32 %v2562, %v2563
    %v2565 = vrot.slane %v2564, 1
    %v2566 = vmax.f32 %v2564, %v2565
    %v2567 = vsel %vm2069, %v1117, -inf
    %v2568 = vrot.slane %v2567, 4
    %v2569 = vmax.f32 %v2567, %v2568
    %v2570 = vrot.slane %v2569, 2
    %v2571 = vmax.f32 %v2569, %v2570
    %v2572 = vrot.slane %v2571, 1
    %v2573 = vmax.f32 %v2571, %v2572
    %v2574 = vsel %vm2069, %v1125, -inf
    %v2575 = vrot.slane %v2574, 4
    %v2576 = vmax.f32 %v2574, %v2575
    %v2577 = vrot.slane %v2576, 2
    %v2578 = vmax.f32 %v2576, %v2577
    %v2579 = vrot.slane %v2578, 1
    %v2580 = vmax.f32 %v2578, %v2579
    %v2581 = vsel %vm2069, %v1133, -inf
    %v2582 = vrot.slane %v2581, 4
    %v2583 = vmax.f32 %v2581, %v2582
    %v2584 = vrot.slane %v2583, 2
    %v2585 = vmax.f32 %v2583, %v2584
    %v2586 = vrot.slane %v2585, 1
    %v2587 = vmax.f32 %v2585, %v2586
    %v2588 = vsel %vm2069, %v1132, -inf
    %v2589 = vrot.slane %v2588, 4
    %v2590 = vmax.f32 %v2588, %v2589
    %v2591 = vrot.slane %v2590, 2
    %v2592 = vmax.f32 %v2590, %v2591
    %v2593 = vrot.slane %v2592, 1
    %v2594 = vmax.f32 %v2592, %v2593
    %v2595 = vsel %vm2069, %v1134, -inf
    %v2596 = vrot.slane %v2595, 4
    %v2597 = vmax.f32 %v2595, %v2596
    %v2598 = vrot.slane %v2597, 2
    %v2599 = vmax.f32 %v2597, %v2598
    %v2600 = vrot.slane %v2599, 1
    %v2601 = vmax.f32 %v2599, %v2600
    %v2602 = vsel %vm2069, %v1142, -inf
    %v2603 = vrot.slane %v2602, 4
    %v2604 = vmax.f32 %v2602, %v2603
    %v2605 = vrot.slane %v2604, 2
    %v2606 = vmax.f32 %v2604, %v2605
    %v2607 = vrot.slane %v2606, 1
    %v2608 = vmax.f32 %v2606, %v2607
    %v2609 = vsel %vm2069, %v1150, -inf
    %v2610 = vrot.slane %v2609, 4
    %v2611 = vmax.f32 %v2609, %v2610
    %v2612 = vrot.slane %v2611, 2
    %v2613 = vmax.f32 %v2611, %v2612
    %v2614 = vrot.slane %v2613, 1
    %v2615 = vmax.f32 %v2613, %v2614
    %v2616 = vsel %vm2069, %v1149, -inf
    %v2617 = vrot.slane %v2616, 4
    %v2618 = vmax.f32 %v2616, %v2617
    %v2619 = vrot.slane %v2618, 2
    %v2620 = vmax.f32 %v2618, %v2619
    %v2621 = vrot.slane %v2620, 1
    %v2622 = vmax.f32 %v2620, %v2621
    %v2623 = vsel %vm2069, %v1151, -inf
    %v2624 = vrot.slane %v2623, 4
    %v2625 = vmax.f32 %v2623, %v2624
    %v2626 = vrot.slane %v2625, 2
    %v2627 = vmax.f32 %v2625, %v2626
    %v2628 = vrot.slane %v2627, 1
    %v2629 = vmax.f32 %v2627, %v2628
    %v2630 = vsel %vm2069, %v1159, -inf
    %v2631 = vrot.slane %v2630, 4
    %v2632 = vmax.f32 %v2630, %v2631
    %v2633 = vrot.slane %v2632, 2
    %v2634 = vmax.f32 %v2632, %v2633
    %v2635 = vrot.slane %v2634, 1
    %v2636 = vmax.f32 %v2634, %v2635
    %v2637 = vsel %vm2069, %v1167, -inf
    %v2638 = vrot.slane %v2637, 4
    %v2639 = vmax.f32 %v2637, %v2638
    %v2640 = vrot.slane %v2639, 2
    %v2641 = vmax.f32 %v2639, %v2640
    %v2642 = vrot.slane %v2641, 1
    %v2643 = vmax.f32 %v2641, %v2642
    %v2644 = vsel %vm2069, %v1166, -inf
    %v2645 = vrot.slane %v2644, 4
    %v2646 = vmax.f32 %v2644, %v2645
    %v2647 = vrot.slane %v2646, 2
    %v2648 = vmax.f32 %v2646, %v2647
    %v2649 = vrot.slane %v2648, 1
    %v2650 = vmax.f32 %v2648, %v2649
    %v2651 = vsel %vm2069, %v1168, -inf
    %v2652 = vrot.slane %v2651, 4
    %v2653 = vmax.f32 %v2651, %v2652
    %v2654 = vrot.slane %v2653, 2
    %v2655 = vmax.f32 %v2653, %v2654
    %v2656 = vrot.slane %v2655, 1
    %v2657 = vmax.f32 %v2655, %v2656
    %v2658 = vsel %vm2069, %v1176, -inf
    %v2659 = vrot.slane %v2658, 4
    %v2660 = vmax.f32 %v2658, %v2659
    %v2661 = vrot.slane %v2660, 2
    %v2662 = vmax.f32 %v2660, %v2661
    %v2663 = vrot.slane %v2662, 1
    %v2664 = vmax.f32 %v2662, %v2663
    %v2665 = vsel %vm2069, %v1184, -inf
    %v2666 = vrot.slane %v2665, 4
    %v2667 = vmax.f32 %v2665, %v2666
    %v2668 = vrot.slane %v2667, 2
    %v2669 = vmax.f32 %v2667, %v2668
    %v2670 = vrot.slane %v2669, 1
    %v2671 = vmax.f32 %v2669, %v2670
    %v2672 = vsel %vm2069, %v1183, -inf
    %v2673 = vrot.slane %v2672, 4
    %v2674 = vmax.f32 %v2672, %v2673
    %v2675 = vrot.slane %v2674, 2
    %v2676 = vmax.f32 %v2674, %v2675
    %v2677 = vrot.slane %v2676, 1
    %v2678 = vmax.f32 %v2676, %v2677
    %v2679 = vsel %vm2069, %v1185, -inf
    %v2680 = vrot.slane %v2679, 4
    %v2681 = vmax.f32 %v2679, %v2680
    %v2682 = vrot.slane %v2681, 2
    %v2683 = vmax.f32 %v2681, %v2682
    %v2684 = vrot.slane %v2683, 1
    %v2685 = vmax.f32 %v2683, %v2684
    %v2686 = vsel %vm2069, %v1192, -inf
    %v2687 = vrot.slane %v2686, 4
    %v2688 = vmax.f32 %v2686, %v2687
    %v2689 = vrot.slane %v2688, 2
    %v2690 = vmax.f32 %v2688, %v2689
    %v2691 = vrot.slane %v2690, 1
    %v2692 = vmax.f32 %v2690, %v2691
    %v2693 = vsel %vm2069, %v1193, -inf
    %v2694 = vrot.slane %v2693, 4
    %v2695 = vmax.f32 %v2693, %v2694
    %v2696 = vrot.slane %v2695, 2
    %v2697 = vmax.f32 %v2695, %v2696
    %v2698 = vrot.slane %v2697, 1
    %v2699 = vmax.f32 %v2697, %v2698
    %v2700 = vsel %vm2069, %v1201, -inf
    %v2701 = vrot.slane %v2700, 4
    %v2702 = vmax.f32 %v2700, %v2701
    %v2703 = vrot.slane %v2702, 2
    %v2704 = vmax.f32 %v2702, %v2703
    %v2705 = vrot.slane %v2704, 1
    %v2706 = vmax.f32 %v2704, %v2705
    %v2707 = vsel %vm2069, %v1209, -inf
    %v2708 = vrot.slane %v2707, 4
    %v2709 = vmax.f32 %v2707, %v2708
    %v2710 = vrot.slane %v2709, 2
    %v2711 = vmax.f32 %v2709, %v2710
    %v2712 = vrot.slane %v2711, 1
    %v2713 = vmax.f32 %v2711, %v2712
    %v2714 = vsel %vm2069, %v1208, -inf
    %v2715 = vrot.slane %v2714, 4
    %v2716 = vmax.f32 %v2714, %v2715
    %v2717 = vrot.slane %v2716, 2
    %v2718 = vmax.f32 %v2716, %v2717
    %v2719 = vrot.slane %v2718, 1
    %v2720 = vmax.f32 %v2718, %v2719
    %v2721 = vsel %vm2069, %v1210, -inf
    %v2722 = vrot.slane %v2721, 4
    %v2723 = vmax.f32 %v2721, %v2722
    %v2724 = vrot.slane %v2723, 2
    %v2725 = vmax.f32 %v2723, %v2724
    %v2726 = vrot.slane %v2725, 1
    %v2727 = vmax.f32 %v2725, %v2726
    %v2728 = vsel %vm2069, %v1218, -inf
    %v2729 = vrot.slane %v2728, 4
    %v2730 = vmax.f32 %v2728, %v2729
    %v2731 = vrot.slane %v2730, 2
    %v2732 = vmax.f32 %v2730, %v2731
    %v2733 = vrot.slane %v2732, 1
    %v2734 = vmax.f32 %v2732, %v2733
    %v2735 = vsel %vm2069, %v1226, -inf
    %v2736 = vrot.slane %v2735, 4
    %v2737 = vmax.f32 %v2735, %v2736
    %v2738 = vrot.slane %v2737, 2
    %v2739 = vmax.f32 %v2737, %v2738
    %v2740 = vrot.slane %v2739, 1
    %v2741 = vmax.f32 %v2739, %v2740
    %v2742 = vsel %vm2069, %v1225, -inf
    %v2743 = vrot.slane %v2742, 4
    %v2744 = vmax.f32 %v2742, %v2743
    %v2745 = vrot.slane %v2744, 2
    %v2746 = vmax.f32 %v2744, %v2745
    %v2747 = vrot.slane %v2746, 1
    %v2748 = vmax.f32 %v2746, %v2747
    %v2749 = vsel %vm2069, %v1227, -inf
    %v2750 = vrot.slane %v2749, 4
    %v2751 = vmax.f32 %v2749, %v2750
    %v2752 = vrot.slane %v2751, 2
    %v2753 = vmax.f32 %v2751, %v2752
    %v2754 = vrot.slane %v2753, 1
    %v2755 = vmax.f32 %v2753, %v2754
    %v2756 = vsel %vm2069, %v1235, -inf
    %v2757 = vrot.slane %v2756, 4
    %v2758 = vmax.f32 %v2756, %v2757
    %v2759 = vrot.slane %v2758, 2
    %v2760 = vmax.f32 %v2758, %v2759
    %v2761 = vrot.slane %v2760, 1
    %v2762 = vmax.f32 %v2760, %v2761
    %v2763 = vsel %vm2069, %v1243, -inf
    %v2764 = vrot.slane %v2763, 4
    %v2765 = vmax.f32 %v2763, %v2764
    %v2766 = vrot.slane %v2765, 2
    %v2767 = vmax.f32 %v2765, %v2766
    %v2768 = vrot.slane %v2767, 1
    %v2769 = vmax.f32 %v2767, %v2768
    %v2770 = vsel %vm2069, %v1242, -inf
    %v2771 = vrot.slane %v2770, 4
    %v2772 = vmax.f32 %v2770, %v2771
    %v2773 = vrot.slane %v2772, 2
    %v2774 = vmax.f32 %v2772, %v2773
    %v2775 = vrot.slane %v2774, 1
    %v2776 = vmax.f32 %v2774, %v2775
    %v2777 = vsel %vm2069, %v1244, -inf
    %v2778 = vrot.slane %v2777, 4
    %v2779 = vmax.f32 %v2777, %v2778
    %v2780 = vrot.slane %v2779, 2
    %v2781 = vmax.f32 %v2779, %v2780
    %v2782 = vrot.slane %v2781, 1
    %v2783 = vmax.f32 %v2781, %v2782
    %v2784 = vsel %vm2069, %v1252, -inf
    %v2785 = vrot.slane %v2784, 4
    %v2786 = vmax.f32 %v2784, %v2785
    %v2787 = vrot.slane %v2786, 2
    %v2788 = vmax.f32 %v2786, %v2787
    %v2789 = vrot.slane %v2788, 1
    %v2790 = vmax.f32 %v2788, %v2789
    %v2791 = vsel %vm2069, %v1260, -inf
    %v2792 = vrot.slane %v2791, 4
    %v2793 = vmax.f32 %v2791, %v2792
    %v2794 = vrot.slane %v2793, 2
    %v2795 = vmax.f32 %v2793, %v2794
    %v2796 = vrot.slane %v2795, 1
    %v2797 = vmax.f32 %v2795, %v2796
    %v2798 = vsel %vm2069, %v1259, -inf
    %v2799 = vrot.slane %v2798, 4
    %v2800 = vmax.f32 %v2798, %v2799
    %v2801 = vrot.slane %v2800, 2
    %v2802 = vmax.f32 %v2800, %v2801
    %v2803 = vrot.slane %v2802, 1
    %v2804 = vmax.f32 %v2802, %v2803
    %v2805 = vsel %vm2069, %v1261, -inf
    %v2806 = vrot.slane %v2805, 4
    %v2807 = vmax.f32 %v2805, %v2806
    %v2808 = vrot.slane %v2807, 2
    %v2809 = vmax.f32 %v2807, %v2808
    %v2810 = vrot.slane %v2809, 1
    %v2811 = vmax.f32 %v2809, %v2810
    %v2812 = vsel %vm2069, %v1269, -inf
    %v2813 = vrot.slane %v2812, 4
    %v2814 = vmax.f32 %v2812, %v2813
    %v2815 = vrot.slane %v2814, 2
    %v2816 = vmax.f32 %v2814, %v2815
    %v2817 = vrot.slane %v2816, 1
    %v2818 = vmax.f32 %v2816, %v2817
    %v2819 = vsel %vm2069, %v1277, -inf
    %v2820 = vrot.slane %v2819, 4
    %v2821 = vmax.f32 %v2819, %v2820
    %v2822 = vrot.slane %v2821, 2
    %v2823 = vmax.f32 %v2821, %v2822
    %v2824 = vrot.slane %v2823, 1
    %v2825 = vmax.f32 %v2823, %v2824
    %v2826 = vsel %vm2069, %v1276, -inf
    %v2827 = vrot.slane %v2826, 4
    %v2828 = vmax.f32 %v2826, %v2827
    %v2829 = vrot.slane %v2828, 2
    %v2830 = vmax.f32 %v2828, %v2829
    %v2831 = vrot.slane %v2830, 1
    %v2832 = vmax.f32 %v2830, %v2831
    %v2833 = vsel %vm2069, %v1278, -inf
    %v2834 = vrot.slane %v2833, 4
    %v2835 = vmax.f32 %v2833, %v2834
    %v2836 = vrot.slane %v2835, 2
    %v2837 = vmax.f32 %v2835, %v2836
    %v2838 = vrot.slane %v2837, 1
    %v2839 = vmax.f32 %v2837, %v2838
    %v2840 = vsel %vm2069, %v1286, -inf
    %v2841 = vrot.slane %v2840, 4
    %v2842 = vmax.f32 %v2840, %v2841
    %v2843 = vrot.slane %v2842, 2
    %v2844 = vmax.f32 %v2842, %v2843
    %v2845 = vrot.slane %v2844, 1
    %v2846 = vmax.f32 %v2844, %v2845
    %v2847 = vsel %vm2069, %v1294, -inf
    %v2848 = vrot.slane %v2847, 4
    %v2849 = vmax.f32 %v2847, %v2848
    %v2850 = vrot.slane %v2849, 2
    %v2851 = vmax.f32 %v2849, %v2850
    %v2852 = vrot.slane %v2851, 1
    %v2853 = vmax.f32 %v2851, %v2852
    %v2854 = vsel %vm2069, %v1293, -inf
    %v2855 = vrot.slane %v2854, 4
    %v2856 = vmax.f32 %v2854, %v2855
    %v2857 = vrot.slane %v2856, 2
    %v2858 = vmax.f32 %v2856, %v2857
    %v2859 = vrot.slane %v2858, 1
    %v2860 = vmax.f32 %v2858, %v2859
    %v2861 = vsel %vm2069, %v1295, -inf
    %v2862 = vrot.slane %v2861, 4
    %v2863 = vmax.f32 %v2861, %v2862
    %v2864 = vrot.slane %v2863, 2
    %v2865 = vmax.f32 %v2863, %v2864
    %v2866 = vrot.slane %v2865, 1
    %v2867 = vmax.f32 %v2865, %v2866
    %v2868 = vsel %vm2069, %v1303, -inf
    %v2869 = vrot.slane %v2868, 4
    %v2870 = vmax.f32 %v2868, %v2869
    %v2871 = vrot.slane %v2870, 2
    %v2872 = vmax.f32 %v2870, %v2871
    %v2873 = vrot.slane %v2872, 1
    %v2874 = vmax.f32 %v2872, %v2873
    %v2875 = vsel %vm2069, %v1311, -inf
    %v2876 = vrot.slane %v2875, 4
    %v2877 = vmax.f32 %v2875, %v2876
    %v2878 = vrot.slane %v2877, 2
    %v2879 = vmax.f32 %v2877, %v2878
    %v2880 = vrot.slane %v2879, 1
    %v2881 = vmax.f32 %v2879, %v2880
    %v2882 = vsel %vm2069, %v1310, -inf
    %v2883 = vrot.slane %v2882, 4
    %v2884 = vmax.f32 %v2882, %v2883
    %v2885 = vrot.slane %v2884, 2
    %v2886 = vmax.f32 %v2884, %v2885
    %v2887 = vrot.slane %v2886, 1
    %v2888 = vmax.f32 %v2886, %v2887
    %v2889 = vsel %vm2069, %v1312, -inf
    %v2890 = vrot.slane %v2889, 4
    %v2891 = vmax.f32 %v2889, %v2890
    %v2892 = vrot.slane %v2891, 2
    %v2893 = vmax.f32 %v2891, %v2892
    %v2894 = vrot.slane %v2893, 1
    %v2895 = vmax.f32 %v2893, %v2894
    %v2896 = vsel %vm2069, %v1319, -inf
    %v2897 = vrot.slane %v2896, 4
    %v2898 = vmax.f32 %v2896, %v2897
    %v2899 = vrot.slane %v2898, 2
    %v2900 = vmax.f32 %v2898, %v2899
    %v2901 = vrot.slane %v2900, 1
    %v2902 = vmax.f32 %v2900, %v2901
    %v2903 = vsel %vm2069, %v1320, -inf
    %v2904 = vrot.slane %v2903, 4
    %v2905 = vmax.f32 %v2903, %v2904
    %v2906 = vrot.slane %v2905, 2
    %v2907 = vmax.f32 %v2905, %v2906
    %v2908 = vrot.slane %v2907, 1
    %v2909 = vmax.f32 %v2907, %v2908
    %v2910 = vsel %vm2069, %v1328, -inf
    %v2911 = vrot.slane %v2910, 4
    %v2912 = vmax.f32 %v2910, %v2911
    %v2913 = vrot.slane %v2912, 2
    %v2914 = vmax.f32 %v2912, %v2913
    %v2915 = vrot.slane %v2914, 1
    %v2916 = vmax.f32 %v2914, %v2915
    %v2917 = vsel %vm2069, %v1336, -inf
    %v2918 = vrot.slane %v2917, 4
    %v2919 = vmax.f32 %v2917, %v2918
    %v2920 = vrot.slane %v2919, 2
    %v2921 = vmax.f32 %v2919, %v2920
    %v2922 = vrot.slane %v2921, 1
    %v2923 = vmax.f32 %v2921, %v2922
    %v2924 = vsel %vm2069, %v1335, -inf
    %v2925 = vrot.slane %v2924, 4
    %v2926 = vmax.f32 %v2924, %v2925
    %v2927 = vrot.slane %v2926, 2
    %v2928 = vmax.f32 %v2926, %v2927
    %v2929 = vrot.slane %v2928, 1
    %v2930 = vmax.f32 %v2928, %v2929
    %v2931 = vsel %vm2069, %v1337, -inf
    %v2932 = vrot.slane %v2931, 4
    %v2933 = vmax.f32 %v2931, %v2932
    %v2934 = vrot.slane %v2933, 2
    %v2935 = vmax.f32 %v2933, %v2934
    %v2936 = vrot.slane %v2935, 1
    %v2937 = vmax.f32 %v2935, %v2936
    %v2938 = vsel %vm2069, %v1345, -inf
    %v2939 = vrot.slane %v2938, 4
    %v2940 = vmax.f32 %v2938, %v2939
    %v2941 = vrot.slane %v2940, 2
    %v2942 = vmax.f32 %v2940, %v2941
    %v2943 = vrot.slane %v2942, 1
    %v2944 = vmax.f32 %v2942, %v2943
    %v2945 = vsel %vm2069, %v1353, -inf
    %v2946 = vrot.slane %v2945, 4
    %v2947 = vmax.f32 %v2945, %v2946
    %v2948 = vrot.slane %v2947, 2
    %v2949 = vmax.f32 %v2947, %v2948
    %v2950 = vrot.slane %v2949, 1
    %v2951 = vmax.f32 %v2949, %v2950
    %v2952 = vsel %vm2069, %v1352, -inf
    %v2953 = vrot.slane %v2952, 4
    %v2954 = vmax.f32 %v2952, %v2953
    %v2955 = vrot.slane %v2954, 2
    %v2956 = vmax.f32 %v2954, %v2955
    %v2957 = vrot.slane %v2956, 1
    %v2958 = vmax.f32 %v2956, %v2957
    %v2959 = vsel %vm2069, %v1354, -inf
    %v2960 = vrot.slane %v2959, 4
    %v2961 = vmax.f32 %v2959, %v2960
    %v2962 = vrot.slane %v2961, 2
    %v2963 = vmax.f32 %v2961, %v2962
    %v2964 = vrot.slane %v2963, 1
    %v2965 = vmax.f32 %v2963, %v2964
    %v2966 = vsel %vm2069, %v1362, -inf
    %v2967 = vrot.slane %v2966, 4
    %v2968 = vmax.f32 %v2966, %v2967
    %v2969 = vrot.slane %v2968, 2
    %v2970 = vmax.f32 %v2968, %v2969
    %v2971 = vrot.slane %v2970, 1
    %v2972 = vmax.f32 %v2970, %v2971
    %v2973 = vsel %vm2069, %v1370, -inf
    %v2974 = vrot.slane %v2973, 4
    %v2975 = vmax.f32 %v2973, %v2974
    %v2976 = vrot.slane %v2975, 2
    %v2977 = vmax.f32 %v2975, %v2976
    %v2978 = vrot.slane %v2977, 1
    %v2979 = vmax.f32 %v2977, %v2978
    %v2980 = vsel %vm2069, %v1369, -inf
    %v2981 = vrot.slane %v2980, 4
    %v2982 = vmax.f32 %v2980, %v2981
    %v2983 = vrot.slane %v2982, 2
    %v2984 = vmax.f32 %v2982, %v2983
    %v2985 = vrot.slane %v2984, 1
    %v2986 = vmax.f32 %v2984, %v2985
    %v2987 = vsel %vm2069, %v1371, -inf
    %v2988 = vrot.slane %v2987, 4
    %v2989 = vmax.f32 %v2987, %v2988
    %v2990 = vrot.slane %v2989, 2
    %v2991 = vmax.f32 %v2989, %v2990
    %v2992 = vrot.slane %v2991, 1
    %v2993 = vmax.f32 %v2991, %v2992
    %v2994 = vsel %vm2069, %v1379, -inf
    %v2995 = vrot.slane %v2994, 4
    %v2996 = vmax.f32 %v2994, %v2995
    %v2997 = vrot.slane %v2996, 2
    %v2998 = vmax.f32 %v2996, %v2997
    %v2999 = vrot.slane %v2998, 1
    %v3000 = vmax.f32 %v2998, %v2999
    %v3001 = vsel %vm2069, %v1387, -inf
    %v3002 = vrot.slane %v3001, 4
    %v3003 = vmax.f32 %v3001, %v3002
    %v3004 = vrot.slane %v3003, 2
    %v3005 = vmax.f32 %v3003, %v3004
    %v3006 = vrot.slane %v3005, 1
    %v3007 = vmax.f32 %v3005, %v3006
    %v3008 = vsel %vm2069, %v1386, -inf
    %v3009 = vrot.slane %v3008, 4
    %v3010 = vmax.f32 %v3008, %v3009
    %v3011 = vrot.slane %v3010, 2
    %v3012 = vmax.f32 %v3010, %v3011
    %v3013 = vrot.slane %v3012, 1
    %v3014 = vmax.f32 %v3012, %v3013
    %v3015 = vsel %vm2069, %v1388, -inf
    %v3016 = vrot.slane %v3015, 4
    %v3017 = vmax.f32 %v3015, %v3016
    %v3018 = vrot.slane %v3017, 2
    %v3019 = vmax.f32 %v3017, %v3018
    %v3020 = vrot.slane %v3019, 1
    %v3021 = vmax.f32 %v3019, %v3020
    %v3022 = vsel %vm2069, %v1396, -inf
    %v3023 = vrot.slane %v3022, 4
    %v3024 = vmax.f32 %v3022, %v3023
    %v3025 = vrot.slane %v3024, 2
    %v3026 = vmax.f32 %v3024, %v3025
    %v3027 = vrot.slane %v3026, 1
    %v3028 = vmax.f32 %v3026, %v3027
    %v3029 = vsel %vm2069, %v1404, -inf
    %v3030 = vrot.slane %v3029, 4
    %v3031 = vmax.f32 %v3029, %v3030
    %v3032 = vrot.slane %v3031, 2
    %v3033 = vmax.f32 %v3031, %v3032
    %v3034 = vrot.slane %v3033, 1
    %v3035 = vmax.f32 %v3033, %v3034
    %v3036 = vsel %vm2069, %v1403, -inf
    %v3037 = vrot.slane %v3036, 4
    %v3038 = vmax.f32 %v3036, %v3037
    %v3039 = vrot.slane %v3038, 2
    %v3040 = vmax.f32 %v3038, %v3039
    %v3041 = vrot.slane %v3040, 1
    %v3042 = vmax.f32 %v3040, %v3041
    %v3043 = vsel %vm2069, %v1405, -inf
    %v3044 = vrot.slane %v3043, 4
    %v3045 = vmax.f32 %v3043, %v3044
    %v3046 = vrot.slane %v3045, 2
    %v3047 = vmax.f32 %v3045, %v3046
    %v3048 = vrot.slane %v3047, 1
    %v3049 = vmax.f32 %v3047, %v3048
    %v3050 = vsel %vm2069, %v1413, -inf
    %v3051 = vrot.slane %v3050, 4
    %v3052 = vmax.f32 %v3050, %v3051
    %v3053 = vrot.slane %v3052, 2
    %v3054 = vmax.f32 %v3052, %v3053
    %v3055 = vrot.slane %v3054, 1
    %v3056 = vmax.f32 %v3054, %v3055
    %v3057 = vsel %vm2069, %v1421, -inf
    %v3058 = vrot.slane %v3057, 4
    %v3059 = vmax.f32 %v3057, %v3058
    %v3060 = vrot.slane %v3059, 2
    %v3061 = vmax.f32 %v3059, %v3060
    %v3062 = vrot.slane %v3061, 1
    %v3063 = vmax.f32 %v3061, %v3062
    %v3064 = vsel %vm2069, %v1420, -inf
    %v3065 = vrot.slane %v3064, 4
    %v3066 = vmax.f32 %v3064, %v3065
    %v3067 = vrot.slane %v3066, 2
    %v3068 = vmax.f32 %v3066, %v3067
    %v3069 = vrot.slane %v3068, 1
    %v3070 = vmax.f32 %v3068, %v3069
    %v3071 = vsel %vm2069, %v1422, -inf
    %v3072 = vrot.slane %v3071, 4
    %v3073 = vmax.f32 %v3071, %v3072
    %v3074 = vrot.slane %v3073, 2
    %v3075 = vmax.f32 %v3073, %v3074
    %v3076 = vrot.slane %v3075, 1
    %v3077 = vmax.f32 %v3075, %v3076
    %v3078 = vsel %vm2069, %v1430, -inf
    %v3079 = vrot.slane %v3078, 4
    %v3080 = vmax.f32 %v3078, %v3079
    %v3081 = vrot.slane %v3080, 2
    %v3082 = vmax.f32 %v3080, %v3081
    %v3083 = vrot.slane %v3082, 1
    %v3084 = vmax.f32 %v3082, %v3083
    %v3085 = vsel %vm2069, %v1438, -inf
    %v3086 = vrot.slane %v3085, 4
    %v3087 = vmax.f32 %v3085, %v3086
    %v3088 = vrot.slane %v3087, 2
    %v3089 = vmax.f32 %v3087, %v3088
    %v3090 = vrot.slane %v3089, 1
    %v3091 = vmax.f32 %v3089, %v3090
    %v3092 = vsel %vm2069, %v1437, -inf
    %v3093 = vrot.slane %v3092, 4
    %v3094 = vmax.f32 %v3092, %v3093
    %v3095 = vrot.slane %v3094, 2
    %v3096 = vmax.f32 %v3094, %v3095
    %v3097 = vrot.slane %v3096, 1
    %v3098 = vmax.f32 %v3096, %v3097
    %v3099 = vsel %vm2069, %v1439, -inf
    %v3100 = vrot.slane %v3099, 4
    %v3101 = vmax.f32 %v3099, %v3100
    %v3102 = vrot.slane %v3101, 2
    %v3103 = vmax.f32 %v3101, %v3102
    %v3104 = vrot.slane %v3103, 1
    %v3105 = vmax.f32 %v3103, %v3104
    %v3106 = vsel %vm2069, %v1446, -inf
    %v3107 = vrot.slane %v3106, 4
    %v3108 = vmax.f32 %v3106, %v3107
    %v3109 = vrot.slane %v3108, 2
    %v3110 = vmax.f32 %v3108, %v3109
    %v3111 = vrot.slane %v3110, 1
    %v3112 = vmax.f32 %v3110, %v3111
    %v3113 = vsel %vm2069, %v1447, -inf
    %v3114 = vrot.slane %v3113, 4
    %v3115 = vmax.f32 %v3113, %v3114
    %v3116 = vrot.slane %v3115, 2
    %v3117 = vmax.f32 %v3115, %v3116
    %v3118 = vrot.slane %v3117, 1
    %v3119 = vmax.f32 %v3117, %v3118
    %v3120 = vsel %vm2069, %v1455, -inf
    %v3121 = vrot.slane %v3120, 4
    %v3122 = vmax.f32 %v3120, %v3121
    %v3123 = vrot.slane %v3122, 2
    %v3124 = vmax.f32 %v3122, %v3123
    %v3125 = vrot.slane %v3124, 1
    %v3126 = vmax.f32 %v3124, %v3125
    %v3127 = vsel %vm2069, %v1463, -inf
    %v3128 = vrot.slane %v3127, 4
    %v3129 = vmax.f32 %v3127, %v3128
    %v3130 = vrot.slane %v3129, 2
    %v3131 = vmax.f32 %v3129, %v3130
    %v3132 = vrot.slane %v3131, 1
    %v3133 = vmax.f32 %v3131, %v3132
    %v3134 = vsel %vm2069, %v1462, -inf
    %v3135 = vrot.slane %v3134, 4
    %v3136 = vmax.f32 %v3134, %v3135
    %v3137 = vrot.slane %v3136, 2
    %v3138 = vmax.f32 %v3136, %v3137
    %v3139 = vrot.slane %v3138, 1
    %v3140 = vmax.f32 %v3138, %v3139
    %v3141 = vsel %vm2069, %v1464, -inf
    %v3142 = vrot.slane %v3141, 4
    %v3143 = vmax.f32 %v3141, %v3142
    %v3144 = vrot.slane %v3143, 2
    %v3145 = vmax.f32 %v3143, %v3144
    %v3146 = vrot.slane %v3145, 1
    %v3147 = vmax.f32 %v3145, %v3146
    %v3148 = vsel %vm2069, %v1472, -inf
    %v3149 = vrot.slane %v3148, 4
    %v3150 = vmax.f32 %v3148, %v3149
    %v3151 = vrot.slane %v3150, 2
    %v3152 = vmax.f32 %v3150, %v3151
    %v3153 = vrot.slane %v3152, 1
    %v3154 = vmax.f32 %v3152, %v3153
    %v3155 = vsel %vm2069, %v1480, -inf
    %v3156 = vrot.slane %v3155, 4
    %v3157 = vmax.f32 %v3155, %v3156
    %v3158 = vrot.slane %v3157, 2
    %v3159 = vmax.f32 %v3157, %v3158
    %v3160 = vrot.slane %v3159, 1
    %v3161 = vmax.f32 %v3159, %v3160
    %v3162 = vsel %vm2069, %v1479, -inf
    %v3163 = vrot.slane %v3162, 4
    %v3164 = vmax.f32 %v3162, %v3163
    %v3165 = vrot.slane %v3164, 2
    %v3166 = vmax.f32 %v3164, %v3165
    %v3167 = vrot.slane %v3166, 1
    %v3168 = vmax.f32 %v3166, %v3167
    %v3169 = vsel %vm2069, %v1481, -inf
    %v3170 = vrot.slane %v3169, 4
    %v3171 = vmax.f32 %v3169, %v3170
    %v3172 = vrot.slane %v3171, 2
    %v3173 = vmax.f32 %v3171, %v3172
    %v3174 = vrot.slane %v3173, 1
    %v3175 = vmax.f32 %v3173, %v3174
    %v3176 = vsel %vm2069, %v1489, -inf
    %v3177 = vrot.slane %v3176, 4
    %v3178 = vmax.f32 %v3176, %v3177
    %v3179 = vrot.slane %v3178, 2
    %v3180 = vmax.f32 %v3178, %v3179
    %v3181 = vrot.slane %v3180, 1
    %v3182 = vmax.f32 %v3180, %v3181
    %v3183 = vsel %vm2069, %v1497, -inf
    %v3184 = vrot.slane %v3183, 4
    %v3185 = vmax.f32 %v3183, %v3184
    %v3186 = vrot.slane %v3185, 2
    %v3187 = vmax.f32 %v3185, %v3186
    %v3188 = vrot.slane %v3187, 1
    %v3189 = vmax.f32 %v3187, %v3188
    %v3190 = vsel %vm2069, %v1496, -inf
    %v3191 = vrot.slane %v3190, 4
    %v3192 = vmax.f32 %v3190, %v3191
    %v3193 = vrot.slane %v3192, 2
    %v3194 = vmax.f32 %v3192, %v3193
    %v3195 = vrot.slane %v3194, 1
    %v3196 = vmax.f32 %v3194, %v3195
    %v3197 = vsel %vm2069, %v1498, -inf
    %v3198 = vrot.slane %v3197, 4
    %v3199 = vmax.f32 %v3197, %v3198
    %v3200 = vrot.slane %v3199, 2
    %v3201 = vmax.f32 %v3199, %v3200
    %v3202 = vrot.slane %v3201, 1
    %v3203 = vmax.f32 %v3201, %v3202
    %v3204 = vsel %vm2069, %v1506, -inf
    %v3205 = vrot.slane %v3204, 4
    %v3206 = vmax.f32 %v3204, %v3205
    %v3207 = vrot.slane %v3206, 2
    %v3208 = vmax.f32 %v3206, %v3207
    %v3209 = vrot.slane %v3208, 1
    %v3210 = vmax.f32 %v3208, %v3209
    %v3211 = vsel %vm2069, %v1514, -inf
    %v3212 = vrot.slane %v3211, 4
    %v3213 = vmax.f32 %v3211, %v3212
    %v3214 = vrot.slane %v3213, 2
    %v3215 = vmax.f32 %v3213, %v3214
    %v3216 = vrot.slane %v3215, 1
    %v3217 = vmax.f32 %v3215, %v3216
    %v3218 = vsel %vm2069, %v1513, -inf
    %v3219 = vrot.slane %v3218, 4
    %v3220 = vmax.f32 %v3218, %v3219
    %v3221 = vrot.slane %v3220, 2
    %v3222 = vmax.f32 %v3220, %v3221
    %v3223 = vrot.slane %v3222, 1
    %v3224 = vmax.f32 %v3222, %v3223
    %v3225 = vsel %vm2069, %v1515, -inf
    %v3226 = vrot.slane %v3225, 4
    %v3227 = vmax.f32 %v3225, %v3226
    %v3228 = vrot.slane %v3227, 2
    %v3229 = vmax.f32 %v3227, %v3228
    %v3230 = vrot.slane %v3229, 1
    %v3231 = vmax.f32 %v3229, %v3230
    %v3232 = vsel %vm2069, %v1523, -inf
    %v3233 = vrot.slane %v3232, 4
    %v3234 = vmax.f32 %v3232, %v3233
    %v3235 = vrot.slane %v3234, 2
    %v3236 = vmax.f32 %v3234, %v3235
    %v3237 = vrot.slane %v3236, 1
    %v3238 = vmax.f32 %v3236, %v3237
    %v3239 = vsel %vm2069, %v1531, -inf
    %v3240 = vrot.slane %v3239, 4
    %v3241 = vmax.f32 %v3239, %v3240
    %v3242 = vrot.slane %v3241, 2
    %v3243 = vmax.f32 %v3241, %v3242
    %v3244 = vrot.slane %v3243, 1
    %v3245 = vmax.f32 %v3243, %v3244
    %v3246 = vsel %vm2069, %v1530, -inf
    %v3247 = vrot.slane %v3246, 4
    %v3248 = vmax.f32 %v3246, %v3247
    %v3249 = vrot.slane %v3248, 2
    %v3250 = vmax.f32 %v3248, %v3249
    %v3251 = vrot.slane %v3250, 1
    %v3252 = vmax.f32 %v3250, %v3251
    %v3253 = vsel %vm2069, %v1532, -inf
    %v3254 = vrot.slane %v3253, 4
    %v3255 = vmax.f32 %v3253, %v3254
    %v3256 = vrot.slane %v3255, 2
    %v3257 = vmax.f32 %v3255, %v3256
    %v3258 = vrot.slane %v3257, 1
    %v3259 = vmax.f32 %v3257, %v3258
    %v3260 = vsel %vm2069, %v1540, -inf
    %v3261 = vrot.slane %v3260, 4
    %v3262 = vmax.f32 %v3260, %v3261
    %v3263 = vrot.slane %v3262, 2
    %v3264 = vmax.f32 %v3262, %v3263
    %v3265 = vrot.slane %v3264, 1
    %v3266 = vmax.f32 %v3264, %v3265
    %v3267 = vsel %vm2069, %v1548, -inf
    %v3268 = vrot.slane %v3267, 4
    %v3269 = vmax.f32 %v3267, %v3268
    %v3270 = vrot.slane %v3269, 2
    %v3271 = vmax.f32 %v3269, %v3270
    %v3272 = vrot.slane %v3271, 1
    %v3273 = vmax.f32 %v3271, %v3272
    %v3274 = vsel %vm2069, %v1547, -inf
    %v3275 = vrot.slane %v3274, 4
    %v3276 = vmax.f32 %v3274, %v3275
    %v3277 = vrot.slane %v3276, 2
    %v3278 = vmax.f32 %v3276, %v3277
    %v3279 = vrot.slane %v3278, 1
    %v3280 = vmax.f32 %v3278, %v3279
    %v3281 = vsel %vm2069, %v1549, -inf
    %v3282 = vrot.slane %v3281, 4
    %v3283 = vmax.f32 %v3281, %v3282
    %v3284 = vrot.slane %v3283, 2
    %v3285 = vmax.f32 %v3283, %v3284
    %v3286 = vrot.slane %v3285, 1
    %v3287 = vmax.f32 %v3285, %v3286
    %v3288 = vsel %vm2069, %v1557, -inf
    %v3289 = vrot.slane %v3288, 4
    %v3290 = vmax.f32 %v3288, %v3289
    %v3291 = vrot.slane %v3290, 2
    %v3292 = vmax.f32 %v3290, %v3291
    %v3293 = vrot.slane %v3292, 1
    %v3294 = vmax.f32 %v3292, %v3293
    %v3295 = vsel %vm2069, %v1565, -inf
    %v3296 = vrot.slane %v3295, 4
    %v3297 = vmax.f32 %v3295, %v3296
    %v3298 = vrot.slane %v3297, 2
    %v3299 = vmax.f32 %v3297, %v3298
    %v3300 = vrot.slane %v3299, 1
    %v3301 = vmax.f32 %v3299, %v3300
    %v3302 = vsel %vm2069, %v1564, -inf
    %v3303 = vrot.slane %v3302, 4
    %v3304 = vmax.f32 %v3302, %v3303
    %v3305 = vrot.slane %v3304, 2
    %v3306 = vmax.f32 %v3304, %v3305
    %v3307 = vrot.slane %v3306, 1
    %v3308 = vmax.f32 %v3306, %v3307
    %v3309 = vsel %vm2069, %v1566, -inf
    %v3310 = vrot.slane %v3309, 4
    %v3311 = vmax.f32 %v3309, %v3310
    %v3312 = vrot.slane %v3311, 2
    %v3313 = vmax.f32 %v3311, %v3312
    %v3314 = vrot.slane %v3313, 1
    %v3315 = vmax.f32 %v3313, %v3314
    %v3316 = vsel %vm2069, %v1573, -inf
    %v3317 = vrot.slane %v3316, 4
    %v3318 = vmax.f32 %v3316, %v3317
    %v3319 = vrot.slane %v3318, 2
    %v3320 = vmax.f32 %v3318, %v3319
    %v3321 = vrot.slane %v3320, 1
    %v3322 = vmax.f32 %v3320, %v3321
    %v3323 = vsel %vm2069, %v1574, -inf
    %v3324 = vrot.slane %v3323, 4
    %v3325 = vmax.f32 %v3323, %v3324
    %v3326 = vrot.slane %v3325, 2
    %v3327 = vmax.f32 %v3325, %v3326
    %v3328 = vrot.slane %v3327, 1
    %v3329 = vmax.f32 %v3327, %v3328
    %v3330 = vsel %vm2069, %v1582, -inf
    %v3331 = vrot.slane %v3330, 4
    %v3332 = vmax.f32 %v3330, %v3331
    %v3333 = vrot.slane %v3332, 2
    %v3334 = vmax.f32 %v3332, %v3333
    %v3335 = vrot.slane %v3334, 1
    %v3336 = vmax.f32 %v3334, %v3335
    %v3337 = vsel %vm2069, %v1590, -inf
    %v3338 = vrot.slane %v3337, 4
    %v3339 = vmax.f32 %v3337, %v3338
    %v3340 = vrot.slane %v3339, 2
    %v3341 = vmax.f32 %v3339, %v3340
    %v3342 = vrot.slane %v3341, 1
    %v3343 = vmax.f32 %v3341, %v3342
    %v3344 = vsel %vm2069, %v1589, -inf
    %v3345 = vrot.slane %v3344, 4
    %v3346 = vmax.f32 %v3344, %v3345
    %v3347 = vrot.slane %v3346, 2
    %v3348 = vmax.f32 %v3346, %v3347
    %v3349 = vrot.slane %v3348, 1
    %v3350 = vmax.f32 %v3348, %v3349
    %v3351 = vsel %vm2069, %v1591, -inf
    %v3352 = vrot.slane %v3351, 4
    %v3353 = vmax.f32 %v3351, %v3352
    %v3354 = vrot.slane %v3353, 2
    %v3355 = vmax.f32 %v3353, %v3354
    %v3356 = vrot.slane %v3355, 1
    %v3357 = vmax.f32 %v3355, %v3356
    %v3358 = vsel %vm2069, %v1599, -inf
    %v3359 = vrot.slane %v3358, 4
    %v3360 = vmax.f32 %v3358, %v3359
    %v3361 = vrot.slane %v3360, 2
    %v3362 = vmax.f32 %v3360, %v3361
    %v3363 = vrot.slane %v3362, 1
    %v3364 = vmax.f32 %v3362, %v3363
    %v3365 = vsel %vm2069, %v1607, -inf
    %v3366 = vrot.slane %v3365, 4
    %v3367 = vmax.f32 %v3365, %v3366
    %v3368 = vrot.slane %v3367, 2
    %v3369 = vmax.f32 %v3367, %v3368
    %v3370 = vrot.slane %v3369, 1
    %v3371 = vmax.f32 %v3369, %v3370
    %v3372 = vsel %vm2069, %v1606, -inf
    %v3373 = vrot.slane %v3372, 4
    %v3374 = vmax.f32 %v3372, %v3373
    %v3375 = vrot.slane %v3374, 2
    %v3376 = vmax.f32 %v3374, %v3375
    %v3377 = vrot.slane %v3376, 1
    %v3378 = vmax.f32 %v3376, %v3377
    %v3379 = vsel %vm2069, %v1608, -inf
    %v3380 = vrot.slane %v3379, 4
    %v3381 = vmax.f32 %v3379, %v3380
    %v3382 = vrot.slane %v3381, 2
    %v3383 = vmax.f32 %v3381, %v3382
    %v3384 = vrot.slane %v3383, 1
    %v3385 = vmax.f32 %v3383, %v3384
    %v3386 = vsel %vm2069, %v1616, -inf
    %v3387 = vrot.slane %v3386, 4
    %v3388 = vmax.f32 %v3386, %v3387
    %v3389 = vrot.slane %v3388, 2
    %v3390 = vmax.f32 %v3388, %v3389
    %v3391 = vrot.slane %v3390, 1
    %v3392 = vmax.f32 %v3390, %v3391
    %v3393 = vsel %vm2069, %v1624, -inf
    %v3394 = vrot.slane %v3393, 4
    %v3395 = vmax.f32 %v3393, %v3394
    %v3396 = vrot.slane %v3395, 2
    %v3397 = vmax.f32 %v3395, %v3396
    %v3398 = vrot.slane %v3397, 1
    %v3399 = vmax.f32 %v3397, %v3398
    %v3400 = vsel %vm2069, %v1623, -inf
    %v3401 = vrot.slane %v3400, 4
    %v3402 = vmax.f32 %v3400, %v3401
    %v3403 = vrot.slane %v3402, 2
    %v3404 = vmax.f32 %v3402, %v3403
    %v3405 = vrot.slane %v3404, 1
    %v3406 = vmax.f32 %v3404, %v3405
    %v3407 = vsel %vm2069, %v1625, -inf
    %v3408 = vrot.slane %v3407, 4
    %v3409 = vmax.f32 %v3407, %v3408
    %v3410 = vrot.slane %v3409, 2
    %v3411 = vmax.f32 %v3409, %v3410
    %v3412 = vrot.slane %v3411, 1
    %v3413 = vmax.f32 %v3411, %v3412
    %v3414 = vsel %vm2069, %v1633, -inf
    %v3415 = vrot.slane %v3414, 4
    %v3416 = vmax.f32 %v3414, %v3415
    %v3417 = vrot.slane %v3416, 2
    %v3418 = vmax.f32 %v3416, %v3417
    %v3419 = vrot.slane %v3418, 1
    %v3420 = vmax.f32 %v3418, %v3419
    %v3421 = vsel %vm2069, %v1641, -inf
    %v3422 = vrot.slane %v3421, 4
    %v3423 = vmax.f32 %v3421, %v3422
    %v3424 = vrot.slane %v3423, 2
    %v3425 = vmax.f32 %v3423, %v3424
    %v3426 = vrot.slane %v3425, 1
    %v3427 = vmax.f32 %v3425, %v3426
    %v3428 = vsel %vm2069, %v1640, -inf
    %v3429 = vrot.slane %v3428, 4
    %v3430 = vmax.f32 %v3428, %v3429
    %v3431 = vrot.slane %v3430, 2
    %v3432 = vmax.f32 %v3430, %v3431
    %v3433 = vrot.slane %v3432, 1
    %v3434 = vmax.f32 %v3432, %v3433
    %v3435 = vsel %vm2069, %v1642, -inf
    %v3436 = vrot.slane %v3435, 4
    %v3437 = vmax.f32 %v3435, %v3436
    %v3438 = vrot.slane %v3437, 2
    %v3439 = vmax.f32 %v3437, %v3438
    %v3440 = vrot.slane %v3439, 1
    %v3441 = vmax.f32 %v3439, %v3440
    %v3442 = vsel %vm2069, %v1650, -inf
    %v3443 = vrot.slane %v3442, 4
    %v3444 = vmax.f32 %v3442, %v3443
    %v3445 = vrot.slane %v3444, 2
    %v3446 = vmax.f32 %v3444, %v3445
    %v3447 = vrot.slane %v3446, 1
    %v3448 = vmax.f32 %v3446, %v3447
    %v3449 = vsel %vm2069, %v1658, -inf
    %v3450 = vrot.slane %v3449, 4
    %v3451 = vmax.f32 %v3449, %v3450
    %v3452 = vrot.slane %v3451, 2
    %v3453 = vmax.f32 %v3451, %v3452
    %v3454 = vrot.slane %v3453, 1
    %v3455 = vmax.f32 %v3453, %v3454
    %v3456 = vsel %vm2069, %v1657, -inf
    %v3457 = vrot.slane %v3456, 4
    %v3458 = vmax.f32 %v3456, %v3457
    %v3459 = vrot.slane %v3458, 2
    %v3460 = vmax.f32 %v3458, %v3459
    %v3461 = vrot.slane %v3460, 1
    %v3462 = vmax.f32 %v3460, %v3461
    %v3463 = vsel %vm2069, %v1659, -inf
    %v3464 = vrot.slane %v3463, 4
    %v3465 = vmax.f32 %v3463, %v3464
    %v3466 = vrot.slane %v3465, 2
    %v3467 = vmax.f32 %v3465, %v3466
    %v3468 = vrot.slane %v3467, 1
    %v3469 = vmax.f32 %v3467, %v3468
    %v3470 = vsel %vm2069, %v1667, -inf
    %v3471 = vrot.slane %v3470, 4
    %v3472 = vmax.f32 %v3470, %v3471
    %v3473 = vrot.slane %v3472, 2
    %v3474 = vmax.f32 %v3472, %v3473
    %v3475 = vrot.slane %v3474, 1
    %v3476 = vmax.f32 %v3474, %v3475
    %v3477 = vsel %vm2069, %v1675, -inf
    %v3478 = vrot.slane %v3477, 4
    %v3479 = vmax.f32 %v3477, %v3478
    %v3480 = vrot.slane %v3479, 2
    %v3481 = vmax.f32 %v3479, %v3480
    %v3482 = vrot.slane %v3481, 1
    %v3483 = vmax.f32 %v3481, %v3482
    %v3484 = vsel %vm2069, %v1674, -inf
    %v3485 = vrot.slane %v3484, 4
    %v3486 = vmax.f32 %v3484, %v3485
    %v3487 = vrot.slane %v3486, 2
    %v3488 = vmax.f32 %v3486, %v3487
    %v3489 = vrot.slane %v3488, 1
    %v3490 = vmax.f32 %v3488, %v3489
    %v3491 = vsel %vm2069, %v1676, -inf
    %v3492 = vrot.slane %v3491, 4
    %v3493 = vmax.f32 %v3491, %v3492
    %v3494 = vrot.slane %v3493, 2
    %v3495 = vmax.f32 %v3493, %v3494
    %v3496 = vrot.slane %v3495, 1
    %v3497 = vmax.f32 %v3495, %v3496
    %v3498 = vsel %vm2069, %v1684, -inf
    %v3499 = vrot.slane %v3498, 4
    %v3500 = vmax.f32 %v3498, %v3499
    %v3501 = vrot.slane %v3500, 2
    %v3502 = vmax.f32 %v3500, %v3501
    %v3503 = vrot.slane %v3502, 1
    %v3504 = vmax.f32 %v3502, %v3503
    %v3505 = vsel %vm2069, %v1692, -inf
    %v3506 = vrot.slane %v3505, 4
    %v3507 = vmax.f32 %v3505, %v3506
    %v3508 = vrot.slane %v3507, 2
    %v3509 = vmax.f32 %v3507, %v3508
    %v3510 = vrot.slane %v3509, 1
    %v3511 = vmax.f32 %v3509, %v3510
    %v3512 = vsel %vm2069, %v1691, -inf
    %v3513 = vrot.slane %v3512, 4
    %v3514 = vmax.f32 %v3512, %v3513
    %v3515 = vrot.slane %v3514, 2
    %v3516 = vmax.f32 %v3514, %v3515
    %v3517 = vrot.slane %v3516, 1
    %v3518 = vmax.f32 %v3516, %v3517
    %v3519 = vsel %vm2069, %v1693, -inf
    %v3520 = vrot.slane %v3519, 4
    %v3521 = vmax.f32 %v3519, %v3520
    %v3522 = vrot.slane %v3521, 2
    %v3523 = vmax.f32 %v3521, %v3522
    %v3524 = vrot.slane %v3523, 1
    %v3525 = vmax.f32 %v3523, %v3524
    %v3526 = vsel %vm2069, %v1700, -inf
    %v3527 = vrot.slane %v3526, 4
    %v3528 = vmax.f32 %v3526, %v3527
    %v3529 = vrot.slane %v3528, 2
    %v3530 = vmax.f32 %v3528, %v3529
    %v3531 = vrot.slane %v3530, 1
    %v3532 = vmax.f32 %v3530, %v3531
    %v3533 = vsel %vm2069, %v1701, -inf
    %v3534 = vrot.slane %v3533, 4
    %v3535 = vmax.f32 %v3533, %v3534
    %v3536 = vrot.slane %v3535, 2
    %v3537 = vmax.f32 %v3535, %v3536
    %v3538 = vrot.slane %v3537, 1
    %v3539 = vmax.f32 %v3537, %v3538
    %v3540 = vsel %vm2069, %v1709, -inf
    %v3541 = vrot.slane %v3540, 4
    %v3542 = vmax.f32 %v3540, %v3541
    %v3543 = vrot.slane %v3542, 2
    %v3544 = vmax.f32 %v3542, %v3543
    %v3545 = vrot.slane %v3544, 1
    %v3546 = vmax.f32 %v3544, %v3545
    %v3547 = vsel %vm2069, %v1717, -inf
    %v3548 = vrot.slane %v3547, 4
    %v3549 = vmax.f32 %v3547, %v3548
    %v3550 = vrot.slane %v3549, 2
    %v3551 = vmax.f32 %v3549, %v3550
    %v3552 = vrot.slane %v3551, 1
    %v3553 = vmax.f32 %v3551, %v3552
    %v3554 = vsel %vm2069, %v1716, -inf
    %v3555 = vrot.slane %v3554, 4
    %v3556 = vmax.f32 %v3554, %v3555
    %v3557 = vrot.slane %v3556, 2
    %v3558 = vmax.f32 %v3556, %v3557
    %v3559 = vrot.slane %v3558, 1
    %v3560 = vmax.f32 %v3558, %v3559
    %v3561 = vsel %vm2069, %v1718, -inf
    %v3562 = vrot.slane %v3561, 4
    %v3563 = vmax.f32 %v3561, %v3562
    %v3564 = vrot.slane %v3563, 2
    %v3565 = vmax.f32 %v3563, %v3564
    %v3566 = vrot.slane %v3565, 1
    %v3567 = vmax.f32 %v3565, %v3566
    %v3568 = vsel %vm2069, %v1726, -inf
    %v3569 = vrot.slane %v3568, 4
    %v3570 = vmax.f32 %v3568, %v3569
    %v3571 = vrot.slane %v3570, 2
    %v3572 = vmax.f32 %v3570, %v3571
    %v3573 = vrot.slane %v3572, 1
    %v3574 = vmax.f32 %v3572, %v3573
    %v3575 = vsel %vm2069, %v1734, -inf
    %v3576 = vrot.slane %v3575, 4
    %v3577 = vmax.f32 %v3575, %v3576
    %v3578 = vrot.slane %v3577, 2
    %v3579 = vmax.f32 %v3577, %v3578
    %v3580 = vrot.slane %v3579, 1
    %v3581 = vmax.f32 %v3579, %v3580
    %v3582 = vsel %vm2069, %v1733, -inf
    %v3583 = vrot.slane %v3582, 4
    %v3584 = vmax.f32 %v3582, %v3583
    %v3585 = vrot.slane %v3584, 2
    %v3586 = vmax.f32 %v3584, %v3585
    %v3587 = vrot.slane %v3586, 1
    %v3588 = vmax.f32 %v3586, %v3587
    %v3589 = vsel %vm2069, %v1735, -inf
    %v3590 = vrot.slane %v3589, 4
    %v3591 = vmax.f32 %v3589, %v3590
    %v3592 = vrot.slane %v3591, 2
    %v3593 = vmax.f32 %v3591, %v3592
    %v3594 = vrot.slane %v3593, 1
    %v3595 = vmax.f32 %v3593, %v3594
    %v3596 = vsel %vm2069, %v1743, -inf
    %v3597 = vrot.slane %v3596, 4
    %v3598 = vmax.f32 %v3596, %v3597
    %v3599 = vrot.slane %v3598, 2
    %v3600 = vmax.f32 %v3598, %v3599
    %v3601 = vrot.slane %v3600, 1
    %v3602 = vmax.f32 %v3600, %v3601
    %v3603 = vsel %vm2069, %v1751, -inf
    %v3604 = vrot.slane %v3603, 4
    %v3605 = vmax.f32 %v3603, %v3604
    %v3606 = vrot.slane %v3605, 2
    %v3607 = vmax.f32 %v3605, %v3606
    %v3608 = vrot.slane %v3607, 1
    %v3609 = vmax.f32 %v3607, %v3608
    %v3610 = vsel %vm2069, %v1750, -inf
    %v3611 = vrot.slane %v3610, 4
    %v3612 = vmax.f32 %v3610, %v3611
    %v3613 = vrot.slane %v3612, 2
    %v3614 = vmax.f32 %v3612, %v3613
    %v3615 = vrot.slane %v3614, 1
    %v3616 = vmax.f32 %v3614, %v3615
    %v3617 = vsel %vm2069, %v1752, -inf
    %v3618 = vrot.slane %v3617, 4
    %v3619 = vmax.f32 %v3617, %v3618
    %v3620 = vrot.slane %v3619, 2
    %v3621 = vmax.f32 %v3619, %v3620
    %v3622 = vrot.slane %v3621, 1
    %v3623 = vmax.f32 %v3621, %v3622
    %v3624 = vsel %vm2069, %v1760, -inf
    %v3625 = vrot.slane %v3624, 4
    %v3626 = vmax.f32 %v3624, %v3625
    %v3627 = vrot.slane %v3626, 2
    %v3628 = vmax.f32 %v3626, %v3627
    %v3629 = vrot.slane %v3628, 1
    %v3630 = vmax.f32 %v3628, %v3629
    %v3631 = vsel %vm2069, %v1768, -inf
    %v3632 = vrot.slane %v3631, 4
    %v3633 = vmax.f32 %v3631, %v3632
    %v3634 = vrot.slane %v3633, 2
    %v3635 = vmax.f32 %v3633, %v3634
    %v3636 = vrot.slane %v3635, 1
    %v3637 = vmax.f32 %v3635, %v3636
    %v3638 = vsel %vm2069, %v1767, -inf
    %v3639 = vrot.slane %v3638, 4
    %v3640 = vmax.f32 %v3638, %v3639
    %v3641 = vrot.slane %v3640, 2
    %v3642 = vmax.f32 %v3640, %v3641
    %v3643 = vrot.slane %v3642, 1
    %v3644 = vmax.f32 %v3642, %v3643
    %v3645 = vsel %vm2069, %v1769, -inf
    %v3646 = vrot.slane %v3645, 4
    %v3647 = vmax.f32 %v3645, %v3646
    %v3648 = vrot.slane %v3647, 2
    %v3649 = vmax.f32 %v3647, %v3648
    %v3650 = vrot.slane %v3649, 1
    %v3651 = vmax.f32 %v3649, %v3650
    %v3652 = vsel %vm2069, %v1777, -inf
    %v3653 = vrot.slane %v3652, 4
    %v3654 = vmax.f32 %v3652, %v3653
    %v3655 = vrot.slane %v3654, 2
    %v3656 = vmax.f32 %v3654, %v3655
    %v3657 = vrot.slane %v3656, 1
    %v3658 = vmax.f32 %v3656, %v3657
    %v3659 = vsel %vm2069, %v1785, -inf
    %v3660 = vrot.slane %v3659, 4
    %v3661 = vmax.f32 %v3659, %v3660
    %v3662 = vrot.slane %v3661, 2
    %v3663 = vmax.f32 %v3661, %v3662
    %v3664 = vrot.slane %v3663, 1
    %v3665 = vmax.f32 %v3663, %v3664
    %v3666 = vsel %vm2069, %v1784, -inf
    %v3667 = vrot.slane %v3666, 4
    %v3668 = vmax.f32 %v3666, %v3667
    %v3669 = vrot.slane %v3668, 2
    %v3670 = vmax.f32 %v3668, %v3669
    %v3671 = vrot.slane %v3670, 1
    %v3672 = vmax.f32 %v3670, %v3671
    %v3673 = vsel %vm2069, %v1786, -inf
    %v3674 = vrot.slane %v3673, 4
    %v3675 = vmax.f32 %v3673, %v3674
    %v3676 = vrot.slane %v3675, 2
    %v3677 = vmax.f32 %v3675, %v3676
    %v3678 = vrot.slane %v3677, 1
    %v3679 = vmax.f32 %v3677, %v3678
    %v3680 = vsel %vm2069, %v1794, -inf
    %v3681 = vrot.slane %v3680, 4
    %v3682 = vmax.f32 %v3680, %v3681
    %v3683 = vrot.slane %v3682, 2
    %v3684 = vmax.f32 %v3682, %v3683
    %v3685 = vrot.slane %v3684, 1
    %v3686 = vmax.f32 %v3684, %v3685
    %v3687 = vsel %vm2069, %v1802, -inf
    %v3688 = vrot.slane %v3687, 4
    %v3689 = vmax.f32 %v3687, %v3688
    %v3690 = vrot.slane %v3689, 2
    %v3691 = vmax.f32 %v3689, %v3690
    %v3692 = vrot.slane %v3691, 1
    %v3693 = vmax.f32 %v3691, %v3692
    %v3694 = vsel %vm2069, %v1801, -inf
    %v3695 = vrot.slane %v3694, 4
    %v3696 = vmax.f32 %v3694, %v3695
    %v3697 = vrot.slane %v3696, 2
    %v3698 = vmax.f32 %v3696, %v3697
    %v3699 = vrot.slane %v3698, 1
    %v3700 = vmax.f32 %v3698, %v3699
    %v3701 = vsel %vm2069, %v1803, -inf
    %v3702 = vrot.slane %v3701, 4
    %v3703 = vmax.f32 %v3701, %v3702
    %v3704 = vrot.slane %v3703, 2
    %v3705 = vmax.f32 %v3703, %v3704
    %v3706 = vrot.slane %v3705, 1
    %v3707 = vmax.f32 %v3705, %v3706
    %v3708 = vsel %vm2069, %v1811, -inf
    %v3709 = vrot.slane %v3708, 4
    %v3710 = vmax.f32 %v3708, %v3709
    %v3711 = vrot.slane %v3710, 2
    %v3712 = vmax.f32 %v3710, %v3711
    %v3713 = vrot.slane %v3712, 1
    %v3714 = vmax.f32 %v3712, %v3713
    %v3715 = vsel %vm2069, %v1819, -inf
    %v3716 = vrot.slane %v3715, 4
    %v3717 = vmax.f32 %v3715, %v3716
    %v3718 = vrot.slane %v3717, 2
    %v3719 = vmax.f32 %v3717, %v3718
    %v3720 = vrot.slane %v3719, 1
    %v3721 = vmax.f32 %v3719, %v3720
    %v3722 = vsel %vm2069, %v1818, -inf
    %v3723 = vrot.slane %v3722, 4
    %v3724 = vmax.f32 %v3722, %v3723
    %v3725 = vrot.slane %v3724, 2
    %v3726 = vmax.f32 %v3724, %v3725
    %v3727 = vrot.slane %v3726, 1
    %v3728 = vmax.f32 %v3726, %v3727
    %v3729 = vsel %vm2069, %v1820, -inf
    %v3730 = vrot.slane %v3729, 4
    %v3731 = vmax.f32 %v3729, %v3730
    %v3732 = vrot.slane %v3731, 2
    %v3733 = vmax.f32 %v3731, %v3732
    %v3734 = vrot.slane %v3733, 1
    %v3735 = vmax.f32 %v3733, %v3734
    %v3736 = vsel %vm2069, %v1827, -inf
    %v3737 = vrot.slane %v3736, 4
    %v3738 = vmax.f32 %v3736, %v3737
    %v3739 = vrot.slane %v3738, 2
    %v3740 = vmax.f32 %v3738, %v3739
    %v3741 = vrot.slane %v3740, 1
    %v3742 = vmax.f32 %v3740, %v3741
    %v3743 = vsel %vm2069, %v1828, -inf
    %v3744 = vrot.slane %v3743, 4
    %v3745 = vmax.f32 %v3743, %v3744
    %v3746 = vrot.slane %v3745, 2
    %v3747 = vmax.f32 %v3745, %v3746
    %v3748 = vrot.slane %v3747, 1
    %v3749 = vmax.f32 %v3747, %v3748
    %vm3990 = vcmask 1041409
    %v3991 = vsel %vm3990, %v2083, %v2076
    %vm3992 = vcmask 1042434
    %v3993 = vsel %vm3992, %v2090, %v3991
    %vm3994 = vcmask 1043459
    %v3995 = vsel %vm3994, %v2097, %v3993
    %vm3996 = vcmask 1044484
    %v3997 = vsel %vm3996, %v2104, %v3995
    %vm3998 = vcmask 1045509
    %v3999 = vsel %vm3998, %v2111, %v3997
    %vm4000 = vcmask 1046534
    %v4001 = vsel %vm4000, %v2118, %v3999
    %vm4002 = vcmask 1047559
    %v4003 = vsel %vm4002, %v2125, %v4001
    %v4004 = vsel %vm3990, %v2139, %v2132
    %v4005 = vsel %vm3992, %v2146, %v4004
    %v4006 = vsel %vm3994, %v2153, %v4005
    %v4007 = vsel %vm3996, %v2160, %v4006
    %v4008 = vsel %vm3998, %v2167, %v4007
    %v4009 = vsel %vm4000, %v2174, %v4008
    %v4010 = vsel %vm4002, %v2181, %v4009
    %v4011 = vsel %vm3990, %v2195, %v2188
    %v4012 = vsel %vm3992, %v2202, %v4011
    %v4013 = vsel %vm3994, %v2209, %v4012
    %v4014 = vsel %vm3996, %v2216, %v4013
    %v4015 = vsel %vm3998, %v2223, %v4014
    %v4016 = vsel %vm4000, %v2230, %v4015
    %v4017 = vsel %vm4002, %v2237, %v4016
    %v4018 = vsel %vm3990, %v2251, %v2244
    %v4019 = vsel %vm3992, %v2258, %v4018
    %v4020 = vsel %vm3994, %v2265, %v4019
    %v4021 = vsel %vm3996, %v2272, %v4020
    %v4022 = vsel %vm3998, %v2279, %v4021
    %v4023 = vsel %vm3990, %v2293, %v2286
    %v4024 = vsel %vm3992, %v2300, %v4023
    %v4025 = vsel %vm3994, %v2307, %v4024
    %v4026 = vsel %vm3996, %v2314, %v4025
    %v4027 = vsel %vm3998, %v2321, %v4026
    %v4028 = vsel %vm4000, %v2328, %v4027
    %v4029 = vsel %vm4002, %v2335, %v4028
    %v4030 = vsel %vm3990, %v2349, %v2342
    %v4031 = vsel %vm3992, %v2356, %v4030
    %v4032 = vsel %vm3994, %v2363, %v4031
    %v4033 = vsel %vm3996, %v2370, %v4032
    %v4034 = vsel %vm3998, %v2377, %v4033
    %v4035 = vsel %vm4000, %v2384, %v4034
    %v4036 = vsel %vm4002, %v2391, %v4035
    %v4037 = vsel %vm3990, %v2405, %v2398
    %v4038 = vsel %vm3992, %v2412, %v4037
    %v4039 = vsel %vm3994, %v2419, %v4038
    %v4040 = vsel %vm3996, %v2426, %v4039
    %v4041 = vsel %vm3998, %v2433, %v4040
    %v4042 = vsel %vm4000, %v2440, %v4041
    %v4043 = vsel %vm4002, %v2447, %v4042
    %v4044 = vsel %vm3990, %v2461, %v2454
    %v4045 = vsel %vm3992, %v2468, %v4044
    %v4046 = vsel %vm3994, %v2475, %v4045
    %v4047 = vsel %vm3996, %v2482, %v4046
    %v4048 = vsel %vm3998, %v2489, %v4047
    %v4049 = vsel %vm3990, %v2503, %v2496
    %v4050 = vsel %vm3992, %v2510, %v4049
    %v4051 = vsel %vm3994, %v2517, %v4050
    %v4052 = vsel %vm3996, %v2524, %v4051
    %v4053 = vsel %vm3998, %v2531, %v4052
    %v4054 = vsel %vm4000, %v2538, %v4053
    %v4055 = vsel %vm4002, %v2545, %v4054
    %v4056 = vsel %vm3990, %v2559, %v2552
    %v4057 = vsel %vm3992, %v2566, %v4056
    %v4058 = vsel %vm3994, %v2573, %v4057
    %v4059 = vsel %vm3996, %v2580, %v4058
    %v4060 = vsel %vm3998, %v2587, %v4059
    %v4061 = vsel %vm4000, %v2594, %v4060
    %v4062 = vsel %vm4002, %v2601, %v4061
    %v4063 = vsel %vm3990, %v2615, %v2608
    %v4064 = vsel %vm3992, %v2622, %v4063
    %v4065 = vsel %vm3994, %v2629, %v4064
    %v4066 = vsel %vm3996, %v2636, %v4065
    %v4067 = vsel %vm3998, %v2643, %v4066
    %v4068 = vsel %vm4000, %v2650, %v4067
    %v4069 = vsel %vm4002, %v2657, %v4068
    %v4070 = vsel %vm3990, %v2671, %v2664
    %v4071 = vsel %vm3992, %v2678, %v4070
    %v4072 = vsel %vm3994, %v2685, %v4071
    %v4073 = vsel %vm3996, %v2692, %v4072
    %v4074 = vsel %vm3998, %v2699, %v4073
    %v4075 = vsel %vm3990, %v2713, %v2706
    %v4076 = vsel %vm3992, %v2720, %v4075
    %v4077 = vsel %vm3994, %v2727, %v4076
    %v4078 = vsel %vm3996, %v2734, %v4077
    %v4079 = vsel %vm3998, %v2741, %v4078
    %v4080 = vsel %vm4000, %v2748, %v4079
    %v4081 = vsel %vm4002, %v2755, %v4080
    %v4082 = vsel %vm3990, %v2769, %v2762
    %v4083 = vsel %vm3992, %v2776, %v4082
    %v4084 = vsel %vm3994, %v2783, %v4083
    %v4085 = vsel %vm3996, %v2790, %v4084
    %v4086 = vsel %vm3998, %v2797, %v4085
    %v4087 = vsel %vm4000, %v2804, %v4086
    %v4088 = vsel %vm4002, %v2811, %v4087
    %v4089 = vsel %vm3990, %v2825, %v2818
    %v4090 = vsel %vm3992, %v2832, %v4089
    %v4091 = vsel %vm3994, %v2839, %v4090
    %v4092 = vsel %vm3996, %v2846, %v4091
    %v4093 = vsel %vm3998, %v2853, %v4092
    %v4094 = vsel %vm4000, %v2860, %v4093
    %v4095 = vsel %vm4002, %v2867, %v4094
    %v4096 = vsel %vm3990, %v2881, %v2874
    %v4097 = vsel %vm3992, %v2888, %v4096
    %v4098 = vsel %vm3994, %v2895, %v4097
    %v4099 = vsel %vm3996, %v2902, %v4098
    %v4100 = vsel %vm3998, %v2909, %v4099
    %v4101 = vsel %vm3990, %v2923, %v2916
    %v4102 = vsel %vm3992, %v2930, %v4101
    %v4103 = vsel %vm3994, %v2937, %v4102
    %v4104 = vsel %vm3996, %v2944, %v4103
    %v4105 = vsel %vm3998, %v2951, %v4104
    %v4106 = vsel %vm4000, %v2958, %v4105
    %v4107 = vsel %vm4002, %v2965, %v4106
    %v4108 = vsel %vm3990, %v2979, %v2972
    %v4109 = vsel %vm3992, %v2986, %v4108
    %v4110 = vsel %vm3994, %v2993, %v4109
    %v4111 = vsel %vm3996, %v3000, %v4110
    %v4112 = vsel %vm3998, %v3007, %v4111
    %v4113 = vsel %vm4000, %v3014, %v4112
    %v4114 = vsel %vm4002, %v3021, %v4113
    %v4115 = vsel %vm3990, %v3035, %v3028
    %v4116 = vsel %vm3992, %v3042, %v4115
    %v4117 = vsel %vm3994, %v3049, %v4116
    %v4118 = vsel %vm3996, %v3056, %v4117
    %v4119 = vsel %vm3998, %v3063, %v4118
    %v4120 = vsel %vm4000, %v3070, %v4119
    %v4121 = vsel %vm4002, %v3077, %v4120
    %v4122 = vsel %vm3990, %v3091, %v3084
    %v4123 = vsel %vm3992, %v3098, %v4122
    %v4124 = vsel %vm3994, %v3105, %v4123
    %v4125 = vsel %vm3996, %v3112, %v4124
    %v4126 = vsel %vm3998, %v3119, %v4125
    %v4127 = vsel %vm3990, %v3133, %v3126
    %v4128 = vsel %vm3992, %v3140, %v4127
    %v4129 = vsel %vm3994, %v3147, %v4128
    %v4130 = vsel %vm3996, %v3154, %v4129
    %v4131 = vsel %vm3998, %v3161, %v4130
    %v4132 = vsel %vm4000, %v3168, %v4131
    %v4133 = vsel %vm4002, %v3175, %v4132
    %v4134 = vsel %vm3990, %v3189, %v3182
    %v4135 = vsel %vm3992, %v3196, %v4134
    %v4136 = vsel %vm3994, %v3203, %v4135
    %v4137 = vsel %vm3996, %v3210, %v4136
    %v4138 = vsel %vm3998, %v3217, %v4137
    %v4139 = vsel %vm4000, %v3224, %v4138
    %v4140 = vsel %vm4002, %v3231, %v4139
    %v4141 = vsel %vm3990, %v3245, %v3238
    %v4142 = vsel %vm3992, %v3252, %v4141
    %v4143 = vsel %vm3994, %v3259, %v4142
    %v4144 = vsel %vm3996, %v3266, %v4143
    %v4145 = vsel %vm3998, %v3273, %v4144
    %v4146 = vsel %vm4000, %v3280, %v4145
    %v4147 = vsel %vm4002, %v3287, %v4146
    %v4148 = vsel %vm3990, %v3301, %v3294
    %v4149 = vsel %vm3992, %v3308, %v4148
    %v4150 = vsel %vm3994, %v3315, %v4149
    %v4151 = vsel %vm3996, %v3322, %v4150
    %v4152 = vsel %vm3998, %v3329, %v4151
    %v4153 = vsel %vm3990, %v3343, %v3336
    %v4154 = vsel %vm3992, %v3350, %v4153
    %v4155 = vsel %vm3994, %v3357, %v4154
    %v4156 = vsel %vm3996, %v3364, %v4155
    %v4157 = vsel %vm3998, %v3371, %v4156
    %v4158 = vsel %vm4000, %v3378, %v4157
    %v4159 = vsel %vm4002, %v3385, %v4158
    %v4160 = vsel %vm3990, %v3399, %v3392
    %v4161 = vsel %vm3992, %v3406, %v4160
    %v4162 = vsel %vm3994, %v3413, %v4161
    %v4163 = vsel %vm3996, %v3420, %v4162
    %v4164 = vsel %vm3998, %v3427, %v4163
    %v4165 = vsel %vm4000, %v3434, %v4164
    %v4166 = vsel %vm4002, %v3441, %v4165
    %v4167 = vsel %vm3990, %v3455, %v3448
    %v4168 = vsel %vm3992, %v3462, %v4167
    %v4169 = vsel %vm3994, %v3469, %v4168
    %v4170 = vsel %vm3996, %v3476, %v4169
    %v4171 = vsel %vm3998, %v3483, %v4170
    %v4172 = vsel %vm4000, %v3490, %v4171
    %v4173 = vsel %vm4002, %v3497, %v4172
    %v4174 = vsel %vm3990, %v3511, %v3504
    %v4175 = vsel %vm3992, %v3518, %v4174
    %v4176 = vsel %vm3994, %v3525, %v4175
    %v4177 = vsel %vm3996, %v3532, %v4176
    %v4178 = vsel %vm3998, %v3539, %v4177
    %v4179 = vsel %vm3990, %v3553, %v3546
    %v4180 = vsel %vm3992, %v3560, %v4179
    %v4181 = vsel %vm3994, %v3567, %v4180
    %v4182 = vsel %vm3996, %v3574, %v4181
    %v4183 = vsel %vm3998, %v3581, %v4182
    %v4184 = vsel %vm4000, %v3588, %v4183
    %v4185 = vsel %vm4002, %v3595, %v4184
    %v4186 = vsel %vm3990, %v3609, %v3602
    %v4187 = vsel %vm3992, %v3616, %v4186
    %v4188 = vsel %vm3994, %v3623, %v4187
    %v4189 = vsel %vm3996, %v3630, %v4188
    %v4190 = vsel %vm3998, %v3637, %v4189
    %v4191 = vsel %vm4000, %v3644, %v4190
    %v4192 = vsel %vm4002, %v3651, %v4191
    %v4193 = vsel %vm3990, %v3665, %v3658
    %v4194 = vsel %vm3992, %v3672, %v4193
    %v4195 = vsel %vm3994, %v3679, %v4194
    %v4196 = vsel %vm3996, %v3686, %v4195
    %v4197 = vsel %vm3998, %v3693, %v4196
    %v4198 = vsel %vm4000, %v3700, %v4197
    %v4199 = vsel %vm4002, %v3707, %v4198
    %v4200 = vsel %vm3990, %v3721, %v3714
    %v4201 = vsel %vm3992, %v3728, %v4200
    %v4202 = vsel %vm3994, %v3735, %v4201
    %v4203 = vsel %vm3996, %v3742, %v4202
    %v4204 = vsel %vm3998, %v3749, %v4203
    %vm4237 = vcmask 1045504
    %v4238 = vsel %vm4237, %v4022, 0.0
    %v4239 = vsel %vm4237, %v4048, 0.0
    %v4240 = vsel %vm4237, %v4074, 0.0
    %v4241 = vsel %vm4237, %v4100, 0.0
    %v4242 = vsel %vm4237, %v4126, 0.0
    %v4243 = vsel %vm4237, %v4152, 0.0
    %v4244 = vsel %vm4237, %v4178, 0.0
    %v4245 = vsel %vm4237, %v4204, 0.0
    %vm4255 = vcmask 1046528
    %v4256 = vrot.slane %v4003, 1
    %v4257 = vrot.slane %v4010, 1
    %v4258 = vsel %vm4255, %v4256, %v4257
    %v4259 = vrot.slane %v4017, 1
    %v4260 = vsel %vm4255, %v4257, %v4259
    %v4261 = vrot.slane %v4238, 1
    %v4262 = vsel %vm4255, %v4259, %v4261
    %v4263 = vrot.slane 0.0, 1
    %v4264 = vsel %vm4255, %v4261, %v4263
    %v4265 = vrot.slane %v4029, 1
    %v4266 = vrot.slane %v4036, 1
    %v4267 = vsel %vm4255, %v4265, %v4266
    %v4268 = vrot.slane %v4043, 1
    %v4269 = vsel %vm4255, %v4266, %v4268
    %v4270 = vrot.slane %v4239, 1
    %v4271 = vsel %vm4255, %v4268, %v4270
    %v4272 = vsel %vm4255, %v4270, %v4263
    %v4273 = vrot.slane %v4055, 1
    %v4274 = vrot.slane %v4062, 1
    %v4275 = vsel %vm4255, %v4273, %v4274
    %v4276 = vrot.slane %v4069, 1
    %v4277 = vsel %vm4255, %v4274, %v4276
    %v4278 = vrot.slane %v4240, 1
    %v4279 = vsel %vm4255, %v4276, %v4278
    %v4280 = vsel %vm4255, %v4278, %v4263
    %v4281 = vrot.slane %v4081, 1
    %v4282 = vrot.slane %v4088, 1
    %v4283 = vsel %vm4255, %v4281, %v4282
    %v4284 = vrot.slane %v4095, 1
    %v4285 = vsel %vm4255, %v4282, %v4284
    %v4286 = vrot.slane %v4241, 1
    %v4287 = vsel %vm4255, %v4284, %v4286
    %v4288 = vsel %vm4255, %v4286, %v4263
    %v4289 = vrot.slane %v4107, 1
    %v4290 = vrot.slane %v4114, 1
    %v4291 = vsel %vm4255, %v4289, %v4290
    %v4292 = vrot.slane %v4121, 1
    %v4293 = vsel %vm4255, %v4290, %v4292
    %v4294 = vrot.slane %v4242, 1
    %v4295 = vsel %vm4255, %v4292, %v4294
    %v4296 = vsel %vm4255, %v4294, %v4263
    %v4297 = vrot.slane %v4133, 1
    %v4298 = vrot.slane %v4140, 1
    %v4299 = vsel %vm4255, %v4297, %v4298
    %v4300 = vrot.slane %v4147, 1
    %v4301 = vsel %vm4255, %v4298, %v4300
    %v4302 = vrot.slane %v4243, 1
    %v4303 = vsel %vm4255, %v4300, %v4302
    %v4304 = vsel %vm4255, %v4302, %v4263
    %v4305 = vrot.slane %v4159, 1
    %v4306 = vrot.slane %v4166, 1
    %v4307 = vsel %vm4255, %v4305, %v4306
    %v4308 = vrot.slane %v4173, 1
    %v4309 = vsel %vm4255, %v4306, %v4308
    %v4310 = vrot.slane %v4244, 1
    %v4311 = vsel %vm4255, %v4308, %v4310
    %v4312 = vsel %vm4255, %v4310, %v4263
    %v4313 = vrot.slane %v4185, 1
    %v4314 = vrot.slane %v4192, 1
    %v4315 = vsel %vm4255, %v4313, %v4314
    %v4316 = vrot.slane %v4199, 1
    %v4317 = vsel %vm4255, %v4314, %v4316
    %v4318 = vrot.slane %v4245, 1
    %v4319 = vsel %vm4255, %v4316, %v4318
    %v4320 = vsel %vm4255, %v4318, %v4263
    %v4353 = vld [vmem:[#allocation2] sm:$0xff]
    %v4354 = vld [vmem:[#allocation2 + $0x8] sm:$0xff]
    %v4355 = vld [vmem:[#allocation2 + $0x10] sm:$0xff]
    %v4356 = vld [vmem:[#allocation2 + $0x18] sm:$0xff]
    %v4357 = vld [vmem:[#allocation2 + $0x20] sm:$0xff]
    %v4358 = vld [vmem:[#allocation2 + $0x28] sm:$0xff]
    %v4359 = vld [vmem:[#allocation2 + $0x30] sm:$0xff]
    %v4360 = vld [vmem:[#allocation2 + $0x38] sm:$0xff]
    %v4361 = vld [vmem:[#allocation2 + $0x40] sm:$0xff]
    %v4362 = vld [vmem:[#allocation2 + $0x48] sm:$0xff]
    %v4363 = vld [vmem:[#allocation2 + $0x50] sm:$0xff]
    %v4364 = vld [vmem:[#allocation2 + $0x58] sm:$0xff]
    %v4365 = vld [vmem:[#allocation2 + $0x60] sm:$0xff]
    %v4366 = vld [vmem:[#allocation2 + $0x68] sm:$0xff]
    %v4367 = vld [vmem:[#allocation2 + $0x70] sm:$0xff]
    %v4368 = vld [vmem:[#allocation2 + $0x78] sm:$0xff]
    %v4369 = vld [vmem:[#allocation2 + $0x80] sm:$0xff]
    %v4370 = vld [vmem:[#allocation2 + $0x88] sm:$0xff]
    %v4371 = vld [vmem:[#allocation2 + $0x90] sm:$0xff]
    %v4372 = vld [vmem:[#allocation2 + $0x98] sm:$0xff]
    %v4373 = vld [vmem:[#allocation2 + $0xa0] sm:$0xff]
    %v4374 = vld [vmem:[#allocation2 + $0xa8] sm:$0xff]
    %v4375 = vld [vmem:[#allocation2 + $0xb0] sm:$0xff]
    %v4376 = vld [vmem:[#allocation2 + $0xb8] sm:$0xff]
    %v4377 = vld [vmem:[#allocation2 + $0xc0] sm:$0xff]
    %v4378 = vld [vmem:[#allocation2 + $0xc8] sm:$0xff]
    %v4379 = vld [vmem:[#allocation2 + $0xd0] sm:$0xff]
    %v4380 = vld [vmem:[#allocation2 + $0xd8] sm:$0xff]
    %v4381 = vld [vmem:[#allocation2 + $0xe0] sm:$0xff]
    %v4382 = vld [vmem:[#allocation2 + $0xe8] sm:$0xff]
    %v4383 = vld [vmem:[#allocation2 + $0xf0] sm:$0xff]
    %v4384 = vld [vmem:[#allocation2 + $0xf8] sm:$0xff]
    %v4385 = vrot.slane %v4003, 2
    %v4386 = vrot.slane %v4010, 2
    %v4387 = vsel %vm4237, %v4385, %v4386
    %v4388 = vrot.slane %v4258, 2
    %v4389 = vrot.slane %v4260, 2
    %v4390 = vsel %vm4237, %v4388, %v4389
    %v4391 = vrot.slane %v4017, 2
    %v4392 = vsel %vm4237, %v4386, %v4391
    %v4393 = vrot.slane %v4262, 2
    %v4394 = vsel %vm4237, %v4389, %v4393
    %v4395 = vrot.slane %v4238, 2
    %v4396 = vsel %vm4237, %v4391, %v4395
    %v4397 = vrot.slane %v4264, 2
    %v4398 = vsel %vm4237, %v4393, %v4397
    %v4399 = vrot.slane 0.0, 2
    %v4400 = vsel %vm4237, %v4395, %v4399
    %v4401 = vrot.slane %v4263, 2
    %v4402 = vsel %vm4237, %v4397, %v4401
    %v4403 = vrot.slane %v4029, 2
    %v4404 = vrot.slane %v4036, 2
    %v4405 = vsel %vm4237, %v4403, %v4404
    %v4406 = vrot.slane %v4267, 2
    %v4407 = vrot.slane %v4269, 2
    %v4408 = vsel %vm4237, %v4406, %v4407
    %v4409 = vrot.slane %v4043, 2
    %v4410 = vsel %vm4237, %v4404, %v4409
    %v4411 = vrot.slane %v4271, 2
    %v4412 = vsel %vm4237, %v4407, %v4411
    %v4413 = vrot.slane %v4239, 2
    %v4414 = vsel %vm4237, %v4409, %v4413
    %v4415 = vrot.slane %v4272, 2
    %v4416 = vsel %vm4237, %v4411, %v4415
    %v4417 = vsel %vm4237, %v4413, %v4399
    %v4418 = vsel %vm4237, %v4415, %v4401
    %v4419 = vrot.slane %v4055, 2
    %v4420 = vrot.slane %v4062, 2
    %v4421 = vsel %vm4237, %v4419, %v4420
    %v4422 = vrot.slane %v4275, 2
    %v4423 = vrot.slane %v4277, 2
    %v4424 = vsel %vm4237, %v4422, %v4423
    %v4425 = vrot.slane %v4069, 2
    %v4426 = vsel %vm4237, %v4420, %v4425
    %v4427 = vrot.slane %v4279, 2
    %v4428 = vsel %vm4237, %v4423, %v4427
    %v4429 = vrot.slane %v4240, 2
    %v4430 = vsel %vm4237, %v4425, %v4429
    %v4431 = vrot.slane %v4280, 2
    %v4432 = vsel %vm4237, %v4427, %v4431
    %v4433 = vsel %vm4237, %v4429, %v4399
    %v4434 = vsel %vm4237, %v4431, %v4401
    %v4435 = vrot.slane %v4081, 2
    %v4436 = vrot.slane %v4088, 2
    %v4437 = vsel %vm4237, %v4435, %v4436
    %v4438 = vrot.slane %v4283, 2
    %v4439 = vrot.slane %v4285, 2
    %v4440 = vsel %vm4237, %v4438, %v4439
    %v4441 = vrot.slane %v4095, 2
    %v4442 = vsel %vm4237, %v4436, %v4441
    %v4443 = vrot.slane %v4287, 2
    %v4444 = vsel %vm4237, %v4439, %v4443
    %v4445 = vrot.slane %v4241, 2
    %v4446 = vsel %vm4237, %v4441, %v4445
    %v4447 = vrot.slane %v4288, 2
    %v4448 = vsel %vm4237, %v4443, %v4447
    %v4449 = vsel %vm4237, %v4445, %v4399
    %v4450 = vsel %vm4237, %v4447, %v4401
    %v4451 = vrot.slane %v4107, 2
    %v4452 = vrot.slane %v4114, 2
    %v4453 = vsel %vm4237, %v4451, %v4452
    %v4454 = vrot.slane %v4291, 2
    %v4455 = vrot.slane %v4293, 2
    %v4456 = vsel %vm4237, %v4454, %v4455
    %v4457 = vrot.slane %v4121, 2
    %v4458 = vsel %vm4237, %v4452, %v4457
    %v4459 = vrot.slane %v4295, 2
    %v4460 = vsel %vm4237, %v4455, %v4459
    %v4461 = vrot.slane %v4242, 2
    %v4462 = vsel %vm4237, %v4457, %v4461
    %v4463 = vrot.slane %v4296, 2
    %v4464 = vsel %vm4237, %v4459, %v4463
    %v4465 = vsel %vm4237, %v4461, %v4399
    %v4466 = vsel %vm4237, %v4463, %v4401
    %v4467 = vrot.slane %v4133, 2
    %v4468 = vrot.slane %v4140, 2
    %v4469 = vsel %vm4237, %v4467, %v4468
    %v4470 = vrot.slane %v4299, 2
    %v4471 = vrot.slane %v4301, 2
    %v4472 = vsel %vm4237, %v4470, %v4471
    %v4473 = vrot.slane %v4147, 2
    %v4474 = vsel %vm4237, %v4468, %v4473
    %v4475 = vrot.slane %v4303, 2
    %v4476 = vsel %vm4237, %v4471, %v4475
    %v4477 = vrot.slane %v4243, 2
    %v4478 = vsel %vm4237, %v4473, %v4477
    %v4479 = vrot.slane %v4304, 2
    %v4480 = vsel %vm4237, %v4475, %v4479
    %v4481 = vsel %vm4237, %v4477, %v4399
    %v4482 = vsel %vm4237, %v4479, %v4401
    %v4483 = vrot.slane %v4159, 2
    %v4484 = vrot.slane %v4166, 2
    %v4485 = vsel %vm4237, %v4483, %v4484
    %v4486 = vrot.slane %v4307, 2
    %v4487 = vrot.slane %v4309, 2
    %v4488 = vsel %vm4237, %v4486, %v4487
    %v4489 = vrot.slane %v4173, 2
    %v4490 = vsel %vm4237, %v4484, %v4489
    %v4491 = vrot.slane %v4311, 2
    %v4492 = vsel %vm4237, %v4487, %v4491
    %v4493 = vrot.slane %v4244, 2
    %v4494 = vsel %vm4237, %v4489, %v4493
    %v4495 = vrot.slane %v4312, 2
    %v4496 = vsel %vm4237, %v4491, %v4495
    %v4497 = vsel %vm4237, %v4493, %v4399
    %v4498 = vsel %vm4237, %v4495, %v4401
    %v4499 = vrot.slane %v4185, 2
    %v4500 = vrot.slane %v4192, 2
    %v4501 = vsel %vm4237, %v4499, %v4500
    %v4502 = vrot.slane %v4315, 2
    %v4503 = vrot.slane %v4317, 2
    %v4504 = vsel %vm4237, %v4502, %v4503
    %v4505 = vrot.slane %v4199, 2
    %v4506 = vsel %vm4237, %v4500, %v4505
    %v4507 = vrot.slane %v4319, 2
    %v4508 = vsel %vm4237, %v4503, %v4507
    %v4509 = vrot.slane %v4245, 2
    %v4510 = vsel %vm4237, %v4505, %v4509
    %v4511 = vrot.slane %v4320, 2
    %v4512 = vsel %vm4237, %v4507, %v4511
    %v4513 = vsel %vm4237, %v4509, %v4399
    %v4514 = vsel %vm4237, %v4511, %v4401
    %v4579 = vld [vmem:[#allocation2 + $0x100] sm:$0xff]
    %v4580 = vld [vmem:[#allocation2 + $0x108] sm:$0xff]
    %v4581 = vld [vmem:[#allocation2 + $0x110] sm:$0xff]
    %v4582 = vld [vmem:[#allocation2 + $0x118] sm:$0xff]
    %v4583 = vld [vmem:[#allocation2 + $0x120] sm:$0xff]
    %v4584 = vld [vmem:[#allocation2 + $0x128] sm:$0xff]
    %v4585 = vld [vmem:[#allocation2 + $0x130] sm:$0xff]
    %v4586 = vld [vmem:[#allocation2 + $0x138] sm:$0xff]
    %v4587 = vld [vmem:[#allocation2 + $0x140] sm:$0xff]
    %v4588 = vld [vmem:[#allocation2 + $0x148] sm:$0xff]
    %v4589 = vld [vmem:[#allocation2 + $0x150] sm:$0xff]
    %v4590 = vld [vmem:[#allocation2 + $0x158] sm:$0xff]
    %v4591 = vld [vmem:[#allocation2 + $0x160] sm:$0xff]
    %v4592 = vld [vmem:[#allocation2 + $0x168] sm:$0xff]
    %v4593 = vld [vmem:[#allocation2 + $0x170] sm:$0xff]
    %v4594 = vld [vmem:[#allocation2 + $0x178] sm:$0xff]
    %v4595 = vld [vmem:[#allocation2 + $0x180] sm:$0xff]
    %v4596 = vld [vmem:[#allocation2 + $0x188] sm:$0xff]
    %v4597 = vld [vmem:[#allocation2 + $0x190] sm:$0xff]
    %v4598 = vld [vmem:[#allocation2 + $0x198] sm:$0xff]
    %v4599 = vld [vmem:[#allocation2 + $0x1a0] sm:$0xff]
    %v4600 = vld [vmem:[#allocation2 + $0x1a8] sm:$0xff]
    %v4601 = vld [vmem:[#allocation2 + $0x1b0] sm:$0xff]
    %v4602 = vld [vmem:[#allocation2 + $0x1b8] sm:$0xff]
    %v4603 = vld [vmem:[#allocation2 + $0x1c0] sm:$0xff]
    %v4604 = vld [vmem:[#allocation2 + $0x1c8] sm:$0xff]
    %v4605 = vld [vmem:[#allocation2 + $0x1d0] sm:$0xff]
    %v4606 = vld [vmem:[#allocation2 + $0x1d8] sm:$0xff]
    %v4607 = vld [vmem:[#allocation2 + $0x1e0] sm:$0xff]
    %v4608 = vld [vmem:[#allocation2 + $0x1e8] sm:$0xff]
    %v4609 = vld [vmem:[#allocation2 + $0x1f0] sm:$0xff]
    %v4610 = vld [vmem:[#allocation2 + $0x1f8] sm:$0xff]
    %4611 = vmatprep.subr.mxu0 0.0
    %4612 = vmatpush1.msra.mxu0 %v4594
    %4613 = vmatprep.subr.mxu0 0.0
    %4614 = vmatpush1.msra.mxu0 %v4593
    %4615 = vmatprep.subr.mxu0 0.0
    %4616 = vmatpush1.msra.mxu0 %v4592
    %4617 = vmatprep.subr.mxu0 0.0
    %4618 = vmatpush1.msra.mxu0 %v4591
    %4619 = vmatprep.subr.mxu0 0.0
    %4620 = vmatpush1.msra.mxu0 %v4590
    %4621 = vmatprep.subr.mxu0 0.0
    %4622 = vmatpush1.msra.mxu0 %v4589
    %4623 = vmatprep.subr.mxu0 0.0
    %4624 = vmatpush1.msra.mxu0 %v4588
    %4625 = vmatprep.subr.mxu0 0.0
    %4626 = vmatpush1.msra.mxu0 %v4587
    %4627 = vmatprep.subr.mxu0 0.0
    %4628 = vmatpush1.msra.mxu0 %v4586
    %4629 = vmatprep.subr.mxu0 0.0
    %4630 = vmatpush1.msra.mxu0 %v4585
    %4631 = vmatprep.subr.mxu0 0.0
    %4632 = vmatpush1.msra.mxu0 %v4584
    %4633 = vmatprep.subr.mxu0 0.0
    %4634 = vmatpush1.msra.mxu0 %v4583
    %4635 = vmatprep.subr.mxu0 0.0
    %4636 = vmatpush1.msra.mxu0 %v4582
    %4637 = vmatprep.subr.mxu0 0.0
    %4638 = vmatpush1.msra.mxu0 %v4581
    %4639 = vmatprep.subr.mxu0 0.0
    %4640 = vmatpush1.msra.mxu0 %v4580
    %4641 = vmatprep.subr.mxu0 0.0
    %4642 = vmatpush1.msra.mxu0 %v4579
    %4643 = vmatprep.subr.mxu0 0.0
    %4644 = vmatpush2.msra.mxu0 %v4610
    %4645 = vmatprep.subr.mxu0 0.0
    %4646 = vmatpush2.msra.mxu0 %v4609
    %4647 = vmatprep.subr.mxu0 0.0
    %4648 = vmatpush2.msra.mxu0 %v4608
    %4649 = vmatprep.subr.mxu0 0.0
    %4650 = vmatpush2.msra.mxu0 %v4607
    %4651 = vmatprep.subr.mxu0 0.0
    %4652 = vmatpush2.msra.mxu0 %v4606
    %4653 = vmatprep.subr.mxu0 0.0
    %4654 = vmatpush2.msra.mxu0 %v4605
    %4655 = vmatprep.subr.mxu0 0.0
    %4656 = vmatpush2.msra.mxu0 %v4604
    %4657 = vmatprep.subr.mxu0 0.0
    %4658 = vmatpush2.msra.mxu0 %v4603
    %4659 = vmatprep.subr.mxu0 0.0
    %4660 = vmatpush2.msra.mxu0 %v4602
    %4661 = vmatprep.subr.mxu0 0.0
    %4662 = vmatpush2.msra.mxu0 %v4601
    %4663 = vmatprep.subr.mxu0 0.0
    %4664 = vmatpush2.msra.mxu0 %v4600
    %4665 = vmatprep.subr.mxu0 0.0
    %4666 = vmatpush2.msra.mxu0 %v4599
    %4667 = vmatprep.subr.mxu0 0.0
    %4668 = vmatpush2.msra.mxu0 %v4598
    %4669 = vmatprep.subr.mxu0 0.0
    %4670 = vmatpush2.msra.mxu0 %v4597
    %4671 = vmatprep.subr.mxu0 0.0
    %4672 = vmatpush2.msra.mxu0 %v4596
    %4673 = vmatprep.subr.mxu0 0.0
    %4674 = vmatpush2.msra.mxu0 %v4595
    %4675 = vmatprep.mubr.f32.mxu0 %v4390
    %4676 = vmatmul.mubr.f32.gmra.mxu0 %v4387
    %v4677 = vpop.f32.mrf.mxu0
    %v4678 = vadd.f32 0.0, %v4677
    %v4679 = vpop.f32.mrf.mxu0
    %4680 = vmatprep.mubr.f32.mxu0 %v4394
    %4681 = vmatmul.mubr.f32.gmra.mxu0 %v4392
    %v4682 = vpop.f32.mrf.mxu0
    %v4683 = vadd.f32 0.0, %v4682
    %v4684 = vpop.f32.mrf.mxu0
    %4685 = vmatprep.mubr.f32.mxu0 %v4398
    %4686 = vmatmul.mubr.f32.gmra.mxu0 %v4396
    %v4687 = vpop.f32.mrf.mxu0
    %v4688 = vadd.f32 0.0, %v4687
    %v4689 = vpop.f32.mrf.mxu0
    %4690 = vmatprep.mubr.f32.mxu0 %v4402
    %4691 = vmatmul.mubr.f32.gmra.mxu0 %v4400
    %v4692 = vpop.f32.mrf.mxu0
    %v4693 = vadd.f32 0.0, %v4692
    %v4694 = vpop.f32.mrf.mxu0
    %4695 = vmatprep.mubr.f32.mxu0 %v4408
    %4696 = vmatmul.mubr.f32.gmra.mxu0 %v4405
    %v4697 = vpop.f32.mrf.mxu0
    %v4698 = vadd.f32 0.0, %v4697
    %v4699 = vpop.f32.mrf.mxu0
    %4700 = vmatprep.mubr.f32.mxu0 %v4412
    %4701 = vmatmul.mubr.f32.gmra.mxu0 %v4410
    %v4702 = vpop.f32.mrf.mxu0
    %v4703 = vadd.f32 0.0, %v4702
    %v4704 = vpop.f32.mrf.mxu0
    %4705 = vmatprep.mubr.f32.mxu0 %v4416
    %4706 = vmatmul.mubr.f32.gmra.mxu0 %v4414
    %v4707 = vpop.f32.mrf.mxu0
    %v4708 = vadd.f32 0.0, %v4707
    %v4709 = vpop.f32.mrf.mxu0
    %4710 = vmatprep.mubr.f32.mxu0 %v4418
    %4711 = vmatmul.mubr.f32.gmra.mxu0 %v4417
    %v4712 = vpop.f32.mrf.mxu0
    %v4713 = vadd.f32 0.0, %v4712
    %v4714 = vpop.f32.mrf.mxu0
    %4715 = vmatprep.mubr.f32.mxu0 %v4424
    %4716 = vmatmul.mubr.f32.gmra.mxu0 %v4421
    %v4717 = vpop.f32.mrf.mxu0
    %v4718 = vadd.f32 0.0, %v4717
    %v4719 = vpop.f32.mrf.mxu0
    %4720 = vmatprep.mubr.f32.mxu0 %v4428
    %4721 = vmatmul.mubr.f32.gmra.mxu0 %v4426
    %v4722 = vpop.f32.mrf.mxu0
    %v4723 = vadd.f32 0.0, %v4722
    %v4724 = vpop.f32.mrf.mxu0
    %4725 = vmatprep.mubr.f32.mxu0 %v4432
    %4726 = vmatmul.mubr.f32.gmra.mxu0 %v4430
    %v4727 = vpop.f32.mrf.mxu0
    %v4728 = vadd.f32 0.0, %v4727
    %v4729 = vpop.f32.mrf.mxu0
    %4730 = vmatprep.mubr.f32.mxu0 %v4434
    %4731 = vmatmul.mubr.f32.gmra.mxu0 %v4433
    %v4732 = vpop.f32.mrf.mxu0
    %v4733 = vadd.f32 0.0, %v4732
    %v4734 = vpop.f32.mrf.mxu0
    %4735 = vmatprep.mubr.f32.mxu0 %v4440
    %4736 = vmatmul.mubr.f32.gmra.mxu0 %v4437
    %v4737 = vpop.f32.mrf.mxu0
    %v4738 = vadd.f32 0.0, %v4737
    %v4739 = vpop.f32.mrf.mxu0
    %4740 = vmatprep.mubr.f32.mxu0 %v4444
    %4741 = vmatmul.mubr.f32.gmra.mxu0 %v4442
    %v4742 = vpop.f32.mrf.mxu0
    %v4743 = vadd.f32 0.0, %v4742
    %v4744 = vpop.f32.mrf.mxu0
    %4745 = vmatprep.mubr.f32.mxu0 %v4448
    %4746 = vmatmul.mubr.f32.gmra.mxu0 %v4446
    %v4747 = vpop.f32.mrf.mxu0
    %v4748 = vadd.f32 0.0, %v4747
    %v4749 = vpop.f32.mrf.mxu0
    %4750 = vmatprep.mubr.f32.mxu0 %v4450
    %4751 = vmatmul.mubr.f32.gmra.mxu0 %v4449
    %v4752 = vpop.f32.mrf.mxu0
    %v4753 = vadd.f32 0.0, %v4752
    %v4754 = vpop.f32.mrf.mxu0
    %4755 = vmatprep.mubr.f32.mxu0 %v4456
    %4756 = vmatmul.mubr.f32.gmra.mxu0 %v4453
    %v4757 = vpop.f32.mrf.mxu0
    %v4758 = vadd.f32 0.0, %v4757
    %v4759 = vpop.f32.mrf.mxu0
    %4760 = vmatprep.mubr.f32.mxu0 %v4460
    %4761 = vmatmul.mubr.f32.gmra.mxu0 %v4458
    %v4762 = vpop.f32.mrf.mxu0
    %v4763 = vadd.f32 0.0, %v4762
    %v4764 = vpop.f32.mrf.mxu0
    %4765 = vmatprep.mubr.f32.mxu0 %v4464
    %4766 = vmatmul.mubr.f32.gmra.mxu0 %v4462
    %v4767 = vpop.f32.mrf.mxu0
    %v4768 = vadd.f32 0.0, %v4767
    %v4769 = vpop.f32.mrf.mxu0
    %4770 = vmatprep.mubr.f32.mxu0 %v4466
    %4771 = vmatmul.mubr.f32.gmra.mxu0 %v4465
    %v4772 = vpop.f32.mrf.mxu0
    %v4773 = vadd.f32 0.0, %v4772
    %v4774 = vpop.f32.mrf.mxu0
    %4775 = vmatprep.mubr.f32.mxu0 %v4472
    %4776 = vmatmul.mubr.f32.gmra.mxu0 %v4469
    %v4777 = vpop.f32.mrf.mxu0
    %v4778 = vadd.f32 0.0, %v4777
    %v4779 = vpop.f32.mrf.mxu0
    %4780 = vmatprep.mubr.f32.mxu0 %v4476
    %4781 = vmatmul.mubr.f32.gmra.mxu0 %v4474
    %v4782 = vpop.f32.mrf.mxu0
    %v4783 = vadd.f32 0.0, %v4782
    %v4784 = vpop.f32.mrf.mxu0
    %4785 = vmatprep.mubr.f32.mxu0 %v4480
    %4786 = vmatmul.mubr.f32.gmra.mxu0 %v4478
    %v4787 = vpop.f32.mrf.mxu0
    %v4788 = vadd.f32 0.0, %v4787
    %v4789 = vpop.f32.mrf.mxu0
    %4790 = vmatprep.mubr.f32.mxu0 %v4482
    %4791 = vmatmul.mubr.f32.gmra.mxu0 %v4481
    %v4792 = vpop.f32.mrf.mxu0
    %v4793 = vadd.f32 0.0, %v4792
    %v4794 = vpop.f32.mrf.mxu0
    %4795 = vmatprep.mubr.f32.mxu0 %v4488
    %4796 = vmatmul.mubr.f32.gmra.mxu0 %v4485
    %v4797 = vpop.f32.mrf.mxu0
    %v4798 = vadd.f32 0.0, %v4797
    %v4799 = vpop.f32.mrf.mxu0
    %4800 = vmatprep.mubr.f32.mxu0 %v4492
    %4801 = vmatmul.mubr.f32.gmra.mxu0 %v4490
    %v4802 = vpop.f32.mrf.mxu0
    %v4803 = vadd.f32 0.0, %v4802
    %v4804 = vpop.f32.mrf.mxu0
    %4805 = vmatprep.mubr.f32.mxu0 %v4496
    %4806 = vmatmul.mubr.f32.gmra.mxu0 %v4494
    %v4807 = vpop.f32.mrf.mxu0
    %v4808 = vadd.f32 0.0, %v4807
    %v4809 = vpop.f32.mrf.mxu0
    %4810 = vmatprep.mubr.f32.mxu0 %v4498
    %4811 = vmatmul.mubr.f32.gmra.mxu0 %v4497
    %v4812 = vpop.f32.mrf.mxu0
    %v4813 = vadd.f32 0.0, %v4812
    %v4814 = vpop.f32.mrf.mxu0
    %4815 = vmatprep.mubr.f32.mxu0 %v4504
    %4816 = vmatmul.mubr.f32.gmra.mxu0 %v4501
    %v4817 = vpop.f32.mrf.mxu0
    %v4818 = vadd.f32 0.0, %v4817
    %v4819 = vpop.f32.mrf.mxu0
    %4820 = vmatprep.mubr.f32.mxu0 %v4508
    %4821 = vmatmul.mubr.f32.gmra.mxu0 %v4506
    %v4822 = vpop.f32.mrf.mxu0
    %v4823 = vadd.f32 0.0, %v4822
    %v4824 = vpop.f32.mrf.mxu0
    %4825 = vmatprep.mubr.f32.mxu0 %v4512
    %4826 = vmatmul.mubr.f32.gmra.mxu0 %v4510
    %v4827 = vpop.f32.mrf.mxu0
    %v4828 = vadd.f32 0.0, %v4827
    %v4829 = vpop.f32.mrf.mxu0
    %4830 = vmatprep.mubr.f32.mxu0 %v4514
    %4831 = vmatmul.mubr.f32.gmra.mxu0 %v4513
    %v4832 = vpop.f32.mrf.mxu0
    %v4833 = vadd.f32 0.0, %v4832
    %v4834 = vpop.f32.mrf.mxu0
    %4835 = vdwg.mxu0
    %4836 = vmatprep.subr.mxu0 0.0
    %4837 = vmatpush1.msra.mxu0 %v4368
    %4838 = vmatprep.subr.mxu0 0.0
    %4839 = vmatpush1.msra.mxu0 %v4367
    %4840 = vmatprep.subr.mxu0 0.0
    %4841 = vmatpush1.msra.mxu0 %v4366
    %4842 = vmatprep.subr.mxu0 0.0
    %4843 = vmatpush1.msra.mxu0 %v4365
    %4844 = vmatprep.subr.mxu0 0.0
    %4845 = vmatpush1.msra.mxu0 %v4364
    %4846 = vmatprep.subr.mxu0 0.0
    %4847 = vmatpush1.msra.mxu0 %v4363
    %4848 = vmatprep.subr.mxu0 0.0
    %4849 = vmatpush1.msra.mxu0 %v4362
    %4850 = vmatprep.subr.mxu0 0.0
    %4851 = vmatpush1.msra.mxu0 %v4361
    %4852 = vmatprep.subr.mxu0 0.0
    %4853 = vmatpush1.msra.mxu0 %v4360
    %4854 = vmatprep.subr.mxu0 0.0
    %4855 = vmatpush1.msra.mxu0 %v4359
    %4856 = vmatprep.subr.mxu0 0.0
    %4857 = vmatpush1.msra.mxu0 %v4358
    %4858 = vmatprep.subr.mxu0 0.0
    %4859 = vmatpush1.msra.mxu0 %v4357
    %4860 = vmatprep.subr.mxu0 0.0
    %4861 = vmatpush1.msra.mxu0 %v4356
    %4862 = vmatprep.subr.mxu0 0.0
    %4863 = vmatpush1.msra.mxu0 %v4355
    %4864 = vmatprep.subr.mxu0 0.0
    %4865 = vmatpush1.msra.mxu0 %v4354
    %4866 = vmatprep.subr.mxu0 0.0
    %4867 = vmatpush1.msra.mxu0 %v4353
    %4868 = vmatprep.subr.mxu0 0.0
    %4869 = vmatpush2.msra.mxu0 %v4384
    %4870 = vmatprep.subr.mxu0 0.0
    %4871 = vmatpush2.msra.mxu0 %v4383
    %4872 = vmatprep.subr.mxu0 0.0
    %4873 = vmatpush2.msra.mxu0 %v4382
    %4874 = vmatprep.subr.mxu0 0.0
    %4875 = vmatpush2.msra.mxu0 %v4381
    %4876 = vmatprep.subr.mxu0 0.0
    %4877 = vmatpush2.msra.mxu0 %v4380
    %4878 = vmatprep.subr.mxu0 0.0
    %4879 = vmatpush2.msra.mxu0 %v4379
    %4880 = vmatprep.subr.mxu0 0.0
    %4881 = vmatpush2.msra.mxu0 %v4378
    %4882 = vmatprep.subr.mxu0 0.0
    %4883 = vmatpush2.msra.mxu0 %v4377
    %4884 = vmatprep.subr.mxu0 0.0
    %4885 = vmatpush2.msra.mxu0 %v4376
    %4886 = vmatprep.subr.mxu0 0.0
    %4887 = vmatpush2.msra.mxu0 %v4375
    %4888 = vmatprep.subr.mxu0 0.0
    %4889 = vmatpush2.msra.mxu0 %v4374
    %4890 = vmatprep.subr.mxu0 0.0
    %4891 = vmatpush2.msra.mxu0 %v4373
    %4892 = vmatprep.subr.mxu0 0.0
    %4893 = vmatpush2.msra.mxu0 %v4372
    %4894 = vmatprep.subr.mxu0 0.0
    %4895 = vmatpush2.msra.mxu0 %v4371
    %4896 = vmatprep.subr.mxu0 0.0
    %4897 = vmatpush2.msra.mxu0 %v4370
    %4898 = vmatprep.subr.mxu0 0.0
    %4899 = vmatpush2.msra.mxu0 %v4369
    %4900 = vmatprep.mubr.f32.mxu0 %v4258
    %4901 = vmatmul.mubr.f32.gmra.mxu0 %v4003
    %v4902 = vpop.f32.mrf.mxu0
    %v4903 = vadd.f32 %v4678, %v4902
    %v4904 = vpop.f32.mrf.mxu0
    %4905 = vmatprep.mubr.f32.mxu0 %v4260
    %4906 = vmatmul.mubr.f32.gmra.mxu0 %v4010
    %v4907 = vpop.f32.mrf.mxu0
    %v4908 = vadd.f32 %v4683, %v4907
    %v4909 = vpop.f32.mrf.mxu0
    %4910 = vmatprep.mubr.f32.mxu0 %v4262
    %4911 = vmatmul.mubr.f32.gmra.mxu0 %v4017
    %v4912 = vpop.f32.mrf.mxu0
    %v4913 = vadd.f32 %v4688, %v4912
    %v4914 = vpop.f32.mrf.mxu0
    %4915 = vmatprep.mubr.f32.mxu0 %v4264
    %4916 = vmatmul.mubr.f32.gmra.mxu0 %v4238
    %v4917 = vpop.f32.mrf.mxu0
    %v4918 = vadd.f32 %v4693, %v4917
    %v4919 = vpop.f32.mrf.mxu0
    %4920 = vmatprep.mubr.f32.mxu0 %v4267
    %4921 = vmatmul.mubr.f32.gmra.mxu0 %v4029
    %v4922 = vpop.f32.mrf.mxu0
    %v4923 = vadd.f32 %v4698, %v4922
    %v4924 = vpop.f32.mrf.mxu0
    %4925 = vmatprep.mubr.f32.mxu0 %v4269
    %4926 = vmatmul.mubr.f32.gmra.mxu0 %v4036
    %v4927 = vpop.f32.mrf.mxu0
    %v4928 = vadd.f32 %v4703, %v4927
    %v4929 = vpop.f32.mrf.mxu0
    %4930 = vmatprep.mubr.f32.mxu0 %v4271
    %4931 = vmatmul.mubr.f32.gmra.mxu0 %v4043
    %v4932 = vpop.f32.mrf.mxu0
    %v4933 = vadd.f32 %v4708, %v4932
    %v4934 = vpop.f32.mrf.mxu0
    %4935 = vmatprep.mubr.f32.mxu0 %v4272
    %4936 = vmatmul.mubr.f32.gmra.mxu0 %v4239
    %v4937 = vpop.f32.mrf.mxu0
    %v4938 = vadd.f32 %v4713, %v4937
    %v4939 = vpop.f32.mrf.mxu0
    %4940 = vmatprep.mubr.f32.mxu0 %v4275
    %4941 = vmatmul.mubr.f32.gmra.mxu0 %v4055
    %v4942 = vpop.f32.mrf.mxu0
    %v4943 = vadd.f32 %v4718, %v4942
    %v4944 = vpop.f32.mrf.mxu0
    %4945 = vmatprep.mubr.f32.mxu0 %v4277
    %4946 = vmatmul.mubr.f32.gmra.mxu0 %v4062
    %v4947 = vpop.f32.mrf.mxu0
    %v4948 = vadd.f32 %v4723, %v4947
    %v4949 = vpop.f32.mrf.mxu0
    %4950 = vmatprep.mubr.f32.mxu0 %v4279
    %4951 = vmatmul.mubr.f32.gmra.mxu0 %v4069
    %v4952 = vpop.f32.mrf.mxu0
    %v4953 = vadd.f32 %v4728, %v4952
    %v4954 = vpop.f32.mrf.mxu0
    %4955 = vmatprep.mubr.f32.mxu0 %v4280
    %4956 = vmatmul.mubr.f32.gmra.mxu0 %v4240
    %v4957 = vpop.f32.mrf.mxu0
    %v4958 = vadd.f32 %v4733, %v4957
    %v4959 = vpop.f32.mrf.mxu0
    %4960 = vmatprep.mubr.f32.mxu0 %v4283
    %4961 = vmatmul.mubr.f32.gmra.mxu0 %v4081
    %v4962 = vpop.f32.mrf.mxu0
    %v4963 = vadd.f32 %v4738, %v4962
    %v4964 = vpop.f32.mrf.mxu0
    %4965 = vmatprep.mubr.f32.mxu0 %v4285
    %4966 = vmatmul.mubr.f32.gmra.mxu0 %v4088
    %v4967 = vpop.f32.mrf.mxu0
    %v4968 = vadd.f32 %v4743, %v4967
    %v4969 = vpop.f32.mrf.mxu0
    %4970 = vmatprep.mubr.f32.mxu0 %v4287
    %4971 = vmatmul.mubr.f32.gmra.mxu0 %v4095
    %v4972 = vpop.f32.mrf.mxu0
    %v4973 = vadd.f32 %v4748, %v4972
    %v4974 = vpop.f32.mrf.mxu0
    %4975 = vmatprep.mubr.f32.mxu0 %v4288
    %4976 = vmatmul.mubr.f32.gmra.mxu0 %v4241
    %v4977 = vpop.f32.mrf.mxu0
    %v4978 = vadd.f32 %v4753, %v4977
    %v4979 = vpop.f32.mrf.mxu0
    %4980 = vmatprep.mubr.f32.mxu0 %v4291
    %4981 = vmatmul.mubr.f32.gmra.mxu0 %v4107
    %v4982 = vpop.f32.mrf.mxu0
    %v4983 = vadd.f32 %v4758, %v4982
    %v4984 = vpop.f32.mrf.mxu0
    %4985 = vmatprep.mubr.f32.mxu0 %v4293
    %4986 = vmatmul.mubr.f32.gmra.mxu0 %v4114
    %v4987 = vpop.f32.mrf.mxu0
    %v4988 = vadd.f32 %v4763, %v4987
    %v4989 = vpop.f32.mrf.mxu0
    %4990 = vmatprep.mubr.f32.mxu0 %v4295
    %4991 = vmatmul.mubr.f32.gmra.mxu0 %v4121
    %v4992 = vpop.f32.mrf.mxu0
    %v4993 = vadd.f32 %v4768, %v4992
    %v4994 = vpop.f32.mrf.mxu0
    %4995 = vmatprep.mubr.f32.mxu0 %v4296
    %4996 = vmatmul.mubr.f32.gmra.mxu0 %v4242
    %v4997 = vpop.f32.mrf.mxu0
    %v4998 = vadd.f32 %v4773, %v4997
    %v4999 = vpop.f32.mrf.mxu0
    %5000 = vmatprep.mubr.f32.mxu0 %v4299
    %5001 = vmatmul.mubr.f32.gmra.mxu0 %v4133
    %v5002 = vpop.f32.mrf.mxu0
    %v5003 = vadd.f32 %v4778, %v5002
    %v5004 = vpop.f32.mrf.mxu0
    %5005 = vmatprep.mubr.f32.mxu0 %v4301
    %5006 = vmatmul.mubr.f32.gmra.mxu0 %v4140
    %v5007 = vpop.f32.mrf.mxu0
    %v5008 = vadd.f32 %v4783, %v5007
    %v5009 = vpop.f32.mrf.mxu0
    %5010 = vmatprep.mubr.f32.mxu0 %v4303
    %5011 = vmatmul.mubr.f32.gmra.mxu0 %v4147
    %v5012 = vpop.f32.mrf.mxu0
    %v5013 = vadd.f32 %v4788, %v5012
    %v5014 = vpop.f32.mrf.mxu0
    %5015 = vmatprep.mubr.f32.mxu0 %v4304
    %5016 = vmatmul.mubr.f32.gmra.mxu0 %v4243
    %v5017 = vpop.f32.mrf.mxu0
    %v5018 = vadd.f32 %v4793, %v5017
    %v5019 = vpop.f32.mrf.mxu0
    %5020 = vmatprep.mubr.f32.mxu0 %v4307
    %5021 = vmatmul.mubr.f32.gmra.mxu0 %v4159
    %v5022 = vpop.f32.mrf.mxu0
    %v5023 = vadd.f32 %v4798, %v5022
    %v5024 = vpop.f32.mrf.mxu0
    %5025 = vmatprep.mubr.f32.mxu0 %v4309
    %5026 = vmatmul.mubr.f32.gmra.mxu0 %v4166
    %v5027 = vpop.f32.mrf.mxu0
    %v5028 = vadd.f32 %v4803, %v5027
    %v5029 = vpop.f32.mrf.mxu0
    %5030 = vmatprep.mubr.f32.mxu0 %v4311
    %5031 = vmatmul.mubr.f32.gmra.mxu0 %v4173
    %v5032 = vpop.f32.mrf.mxu0
    %v5033 = vadd.f32 %v4808, %v5032
    %v5034 = vpop.f32.mrf.mxu0
    %5035 = vmatprep.mubr.f32.mxu0 %v4312
    %5036 = vmatmul.mubr.f32.gmra.mxu0 %v4244
    %v5037 = vpop.f32.mrf.mxu0
    %v5038 = vadd.f32 %v4813, %v5037
    %v5039 = vpop.f32.mrf.mxu0
    %5040 = vmatprep.mubr.f32.mxu0 %v4315
    %5041 = vmatmul.mubr.f32.gmra.mxu0 %v4185
    %v5042 = vpop.f32.mrf.mxu0
    %v5043 = vadd.f32 %v4818, %v5042
    %v5044 = vpop.f32.mrf.mxu0
    %5045 = vmatprep.mubr.f32.mxu0 %v4317
    %5046 = vmatmul.mubr.f32.gmra.mxu0 %v4192
    %v5047 = vpop.f32.mrf.mxu0
    %v5048 = vadd.f32 %v4823, %v5047
    %v5049 = vpop.f32.mrf.mxu0
    %5050 = vmatprep.mubr.f32.mxu0 %v4319
    %5051 = vmatmul.mubr.f32.gmra.mxu0 %v4199
    %v5052 = vpop.f32.mrf.mxu0
    %v5053 = vadd.f32 %v4828, %v5052
    %v5054 = vpop.f32.mrf.mxu0
    %5055 = vmatprep.mubr.f32.mxu0 %v4320
    %5056 = vmatmul.mubr.f32.gmra.mxu0 %v4245
    %v5057 = vpop.f32.mrf.mxu0
    %v5058 = vadd.f32 %v4833, %v5057
    %v5059 = vpop.f32.mrf.mxu0
    %5060 = vdwg.mxu0
    %v5061 = vrot.slane %v4003, 4
    %v5062 = vrot.slane %v4010, 4
    %v5063 = vsel %vm296, %v5061, %v5062
    %v5064 = vrot.slane %v4017, 4
    %v5065 = vsel %vm296, %v5062, %v5064
    %v5066 = vrot.slane %v4238, 4
    %v5067 = vsel %vm296, %v5064, %v5066
    %v5068 = vrot.slane 0.0, 4
    %v5069 = vsel %vm296, %v5066, %v5068
    %v5070 = vrot.slane %v4029, 4
    %v5071 = vrot.slane %v4036, 4
    %v5072 = vsel %vm296, %v5070, %v5071
    %v5073 = vrot.slane %v4043, 4
    %v5074 = vsel %vm296, %v5071, %v5073
    %v5075 = vrot.slane %v4239, 4
    %v5076 = vsel %vm296, %v5073, %v5075
    %v5077 = vsel %vm296, %v5075, %v5068
    %v5078 = vrot.slane %v4055, 4
    %v5079 = vrot.slane %v4062, 4
    %v5080 = vsel %vm296, %v5078, %v5079
    %v5081 = vrot.slane %v4069, 4
    %v5082 = vsel %vm296, %v5079, %v5081
    %v5083 = vrot.slane %v4240, 4
    %v5084 = vsel %vm296, %v5081, %v5083
    %v5085 = vsel %vm296, %v5083, %v5068
    %v5086 = vrot.slane %v4081, 4
    %v5087 = vrot.slane %v4088, 4
    %v5088 = vsel %vm296, %v5086, %v5087
    %v5089 = vrot.slane %v4095, 4
    %v5090 = vsel %vm296, %v5087, %v5089
    %v5091 = vrot.slane %v4241, 4
    %v5092 = vsel %vm296, %v5089, %v5091
    %v5093 = vsel %vm296, %v5091, %v5068
    %v5094 = vrot.slane %v4107, 4
    %v5095 = vrot.slane %v4114, 4
    %v5096 = vsel %vm296, %v5094, %v5095
    %v5097 = vrot.slane %v4121, 4
    %v5098 = vsel %vm296, %v5095, %v5097
    %v5099 = vrot.slane %v4242, 4
    %v5100 = vsel %vm296, %v5097, %v5099
    %v5101 = vsel %vm296, %v5099, %v5068
    %v5102 = vrot.slane %v4133, 4
    %v5103 = vrot.slane %v4140, 4
    %v5104 = vsel %vm296, %v5102, %v5103
    %v5105 = vrot.slane %v4147, 4
    %v5106 = vsel %vm296, %v5103, %v5105
    %v5107 = vrot.slane %v4243, 4
    %v5108 = vsel %vm296, %v5105, %v5107
    %v5109 = vsel %vm296, %v5107, %v5068
    %v5110 = vrot.slane %v4159, 4
    %v5111 = vrot.slane %v4166, 4
    %v5112 = vsel %vm296, %v5110, %v5111
    %v5113 = vrot.slane %v4173, 4
    %v5114 = vsel %vm296, %v5111, %v5113
    %v5115 = vrot.slane %v4244, 4
    %v5116 = vsel %vm296, %v5113, %v5115
    %v5117 = vsel %vm296, %v5115, %v5068
    %v5118 = vrot.slane %v4185, 4
    %v5119 = vrot.slane %v4192, 4
    %v5120 = vsel %vm296, %v5118, %v5119
    %v5121 = vrot.slane %v4199, 4
    %v5122 = vsel %vm296, %v5119, %v5121
    %v5123 = vrot.slane %v4245, 4
    %v5124 = vsel %vm296, %v5121, %v5123
    %v5125 = vsel %vm296, %v5123, %v5068
    %v5158 = vld [vmem:[#allocation2 + $0x200] sm:$0xff]
    %v5159 = vld [vmem:[#allocation2 + $0x208] sm:$0xff]
    %v5160 = vld [vmem:[#allocation2 + $0x210] sm:$0xff]
    %v5161 = vld [vmem:[#allocation2 + $0x218] sm:$0xff]
    %v5162 = vld [vmem:[#allocation2 + $0x220] sm:$0xff]
    %v5163 = vld [vmem:[#allocation2 + $0x228] sm:$0xff]
    %v5164 = vld [vmem:[#allocation2 + $0x230] sm:$0xff]
    %v5165 = vld [vmem:[#allocation2 + $0x238] sm:$0xff]
    %v5166 = vld [vmem:[#allocation2 + $0x240] sm:$0xff]
    %v5167 = vld [vmem:[#allocation2 + $0x248] sm:$0xff]
    %v5168 = vld [vmem:[#allocation2 + $0x250] sm:$0xff]
    %v5169 = vld [vmem:[#allocation2 + $0x258] sm:$0xff]
    %v5170 = vld [vmem:[#allocation2 + $0x260] sm:$0xff]
    %v5171 = vld [vmem:[#allocation2 + $0x268] sm:$0xff]
    %v5172 = vld [vmem:[#allocation2 + $0x270] sm:$0xff]
    %v5173 = vld [vmem:[#allocation2 + $0x278] sm:$0xff]
    %5174 = vmatprep.subr.mxu0 0.0
    %5175 = vmatpush1.msra.mxu0 %v5173
    %5176 = vmatprep.subr.mxu0 0.0
    %5177 = vmatpush1.msra.mxu0 %v5172
    %5178 = vmatprep.subr.mxu0 0.0
    %5179 = vmatpush1.msra.mxu0 %v5171
    %5180 = vmatprep.subr.mxu0 0.0
    %5181 = vmatpush1.msra.mxu0 %v5170
    %5182 = vmatprep.subr.mxu0 0.0
    %5183 = vmatpush1.msra.mxu0 %v5169
    %5184 = vmatprep.subr.mxu0 0.0
    %5185 = vmatpush1.msra.mxu0 %v5168
    %5186 = vmatprep.subr.mxu0 0.0
    %5187 = vmatpush1.msra.mxu0 %v5167
    %5188 = vmatprep.subr.mxu0 0.0
    %5189 = vmatpush1.msra.mxu0 %v5166
    %5190 = vmatprep.subr.mxu0 0.0
    %5191 = vmatpush1.msra.mxu0 %v5165
    %5192 = vmatprep.subr.mxu0 0.0
    %5193 = vmatpush1.msra.mxu0 %v5164
    %5194 = vmatprep.subr.mxu0 0.0
    %5195 = vmatpush1.msra.mxu0 %v5163
    %5196 = vmatprep.subr.mxu0 0.0
    %5197 = vmatpush1.msra.mxu0 %v5162
    %5198 = vmatprep.subr.mxu0 0.0
    %5199 = vmatpush1.msra.mxu0 %v5161
    %5200 = vmatprep.subr.mxu0 0.0
    %5201 = vmatpush1.msra.mxu0 %v5160
    %5202 = vmatprep.subr.mxu0 0.0
    %5203 = vmatpush1.msra.mxu0 %v5159
    %5204 = vmatprep.subr.mxu0 0.0
    %5205 = vmatpush1.msra.mxu0 %v5158
    %5206 = vmatprep.subr.mxu0 0.0
    %5207 = vmatpush2.msra.mxu0 0.0
    %5208 = vmatprep.subr.mxu0 0.0
    %5209 = vmatpush2.msra.mxu0 0.0
    %5210 = vmatprep.subr.mxu0 0.0
    %5211 = vmatpush2.msra.mxu0 0.0
    %5212 = vmatprep.subr.mxu0 0.0
    %5213 = vmatpush2.msra.mxu0 0.0
    %5214 = vmatprep.subr.mxu0 0.0
    %5215 = vmatpush2.msra.mxu0 0.0
    %5216 = vmatprep.subr.mxu0 0.0
    %5217 = vmatpush2.msra.mxu0 0.0
    %5218 = vmatprep.subr.mxu0 0.0
    %5219 = vmatpush2.msra.mxu0 0.0
    %5220 = vmatprep.subr.mxu0 0.0
    %5221 = vmatpush2.msra.mxu0 0.0
    %5222 = vmatprep.subr.mxu0 0.0
    %5223 = vmatpush2.msra.mxu0 0.0
    %5224 = vmatprep.subr.mxu0 0.0
    %5225 = vmatpush2.msra.mxu0 0.0
    %5226 = vmatprep.subr.mxu0 0.0
    %5227 = vmatpush2.msra.mxu0 0.0
    %5228 = vmatprep.subr.mxu0 0.0
    %5229 = vmatpush2.msra.mxu0 0.0
    %5230 = vmatprep.subr.mxu0 0.0
    %5231 = vmatpush2.msra.mxu0 0.0
    %5232 = vmatprep.subr.mxu0 0.0
    %5233 = vmatpush2.msra.mxu0 0.0
    %5234 = vmatprep.subr.mxu0 0.0
    %5235 = vmatpush2.msra.mxu0 0.0
    %5236 = vmatprep.subr.mxu0 0.0
    %5237 = vmatpush2.msra.mxu0 0.0
    %5238 = vmatprep.mubr.f32.mxu0 0.0
    %5239 = vmatmul.mubr.f32.gmra.mxu0 %v5063
    %v5240 = vpop.f32.mrf.mxu0
    %v5241 = vadd.f32 0.0, %v5240
    %v5242 = vpop.f32.mrf.mxu0
    %5243 = vmatprep.mubr.f32.mxu0 0.0
    %5244 = vmatmul.mubr.f32.gmra.mxu0 %v5065
    %v5245 = vpop.f32.mrf.mxu0
    %v5246 = vadd.f32 0.0, %v5245
    %v5247 = vpop.f32.mrf.mxu0
    %5248 = vmatprep.mubr.f32.mxu0 0.0
    %5249 = vmatmul.mubr.f32.gmra.mxu0 %v5067
    %v5250 = vpop.f32.mrf.mxu0
    %v5251 = vadd.f32 0.0, %v5250
    %v5252 = vpop.f32.mrf.mxu0
    %5253 = vmatprep.mubr.f32.mxu0 0.0
    %5254 = vmatmul.mubr.f32.gmra.mxu0 %v5069
    %v5255 = vpop.f32.mrf.mxu0
    %v5256 = vadd.f32 0.0, %v5255
    %v5257 = vpop.f32.mrf.mxu0
    %5258 = vmatprep.mubr.f32.mxu0 0.0
    %5259 = vmatmul.mubr.f32.gmra.mxu0 %v5072
    %v5260 = vpop.f32.mrf.mxu0
    %v5261 = vadd.f32 0.0, %v5260
    %v5262 = vpop.f32.mrf.mxu0
    %5263 = vmatprep.mubr.f32.mxu0 0.0
    %5264 = vmatmul.mubr.f32.gmra.mxu0 %v5074
    %v5265 = vpop.f32.mrf.mxu0
    %v5266 = vadd.f32 0.0, %v5265
    %v5267 = vpop.f32.mrf.mxu0
    %5268 = vmatprep.mubr.f32.mxu0 0.0
    %5269 = vmatmul.mubr.f32.gmra.mxu0 %v5076
    %v5270 = vpop.f32.mrf.mxu0
    %v5271 = vadd.f32 0.0, %v5270
    %v5272 = vpop.f32.mrf.mxu0
    %5273 = vmatprep.mubr.f32.mxu0 0.0
    %5274 = vmatmul.mubr.f32.gmra.mxu0 %v5077
    %v5275 = vpop.f32.mrf.mxu0
    %v5276 = vadd.f32 0.0, %v5275
    %v5277 = vpop.f32.mrf.mxu0
    %5278 = vmatprep.mubr.f32.mxu0 0.0
    %5279 = vmatmul.mubr.f32.gmra.mxu0 %v5080
    %v5280 = vpop.f32.mrf.mxu0
    %v5281 = vadd.f32 0.0, %v5280
    %v5282 = vpop.f32.mrf.mxu0
    %5283 = vmatprep.mubr.f32.mxu0 0.0
    %5284 = vmatmul.mubr.f32.gmra.mxu0 %v5082
    %v5285 = vpop.f32.mrf.mxu0
    %v5286 = vadd.f32 0.0, %v5285
    %v5287 = vpop.f32.mrf.mxu0
    %5288 = vmatprep.mubr.f32.mxu0 0.0
    %5289 = vmatmul.mubr.f32.gmra.mxu0 %v5084
    %v5290 = vpop.f32.mrf.mxu0
    %v5291 = vadd.f32 0.0, %v5290
    %v5292 = vpop.f32.mrf.mxu0
    %5293 = vmatprep.mubr.f32.mxu0 0.0
    %5294 = vmatmul.mubr.f32.gmra.mxu0 %v5085
    %v5295 = vpop.f32.mrf.mxu0
    %v5296 = vadd.f32 0.0, %v5295
    %v5297 = vpop.f32.mrf.mxu0
    %5298 = vmatprep.mubr.f32.mxu0 0.0
    %5299 = vmatmul.mubr.f32.gmra.mxu0 %v5088
    %v5300 = vpop.f32.mrf.mxu0
    %v5301 = vadd.f32 0.0, %v5300
    %v5302 = vpop.f32.mrf.mxu0
    %5303 = vmatprep.mubr.f32.mxu0 0.0
    %5304 = vmatmul.mubr.f32.gmra.mxu0 %v5090
    %v5305 = vpop.f32.mrf.mxu0
    %v5306 = vadd.f32 0.0, %v5305
    %v5307 = vpop.f32.mrf.mxu0
    %5308 = vmatprep.mubr.f32.mxu0 0.0
    %5309 = vmatmul.mubr.f32.gmra.mxu0 %v5092
    %v5310 = vpop.f32.mrf.mxu0
    %v5311 = vadd.f32 0.0, %v5310
    %v5312 = vpop.f32.mrf.mxu0
    %5313 = vmatprep.mubr.f32.mxu0 0.0
    %5314 = vmatmul.mubr.f32.gmra.mxu0 %v5093
    %v5315 = vpop.f32.mrf.mxu0
    %v5316 = vadd.f32 0.0, %v5315
    %v5317 = vpop.f32.mrf.mxu0
    %5318 = vmatprep.mubr.f32.mxu0 0.0
    %5319 = vmatmul.mubr.f32.gmra.mxu0 %v5096
    %v5320 = vpop.f32.mrf.mxu0
    %v5321 = vadd.f32 0.0, %v5320
    %v5322 = vpop.f32.mrf.mxu0
    %5323 = vmatprep.mubr.f32.mxu0 0.0
    %5324 = vmatmul.mubr.f32.gmra.mxu0 %v5098
    %v5325 = vpop.f32.mrf.mxu0
    %v5326 = vadd.f32 0.0, %v5325
    %v5327 = vpop.f32.mrf.mxu0
    %5328 = vmatprep.mubr.f32.mxu0 0.0
    %5329 = vmatmul.mubr.f32.gmra.mxu0 %v5100
    %v5330 = vpop.f32.mrf.mxu0
    %v5331 = vadd.f32 0.0, %v5330
    %v5332 = vpop.f32.mrf.mxu0
    %5333 = vmatprep.mubr.f32.mxu0 0.0
    %5334 = vmatmul.mubr.f32.gmra.mxu0 %v5101
    %v5335 = vpop.f32.mrf.mxu0
    %v5336 = vadd.f32 0.0, %v5335
    %v5337 = vpop.f32.mrf.mxu0
    %5338 = vmatprep.mubr.f32.mxu0 0.0
    %5339 = vmatmul.mubr.f32.gmra.mxu0 %v5104
    %v5340 = vpop.f32.mrf.mxu0
    %v5341 = vadd.f32 0.0, %v5340
    %v5342 = vpop.f32.mrf.mxu0
    %5343 = vmatprep.mubr.f32.mxu0 0.0
    %5344 = vmatmul.mubr.f32.gmra.mxu0 %v5106
    %v5345 = vpop.f32.mrf.mxu0
    %v5346 = vadd.f32 0.0, %v5345
    %v5347 = vpop.f32.mrf.mxu0
    %5348 = vmatprep.mubr.f32.mxu0 0.0
    %5349 = vmatmul.mubr.f32.gmra.mxu0 %v5108
    %v5350 = vpop.f32.mrf.mxu0
    %v5351 = vadd.f32 0.0, %v5350
    %v5352 = vpop.f32.mrf.mxu0
    %5353 = vmatprep.mubr.f32.mxu0 0.0
    %5354 = vmatmul.mubr.f32.gmra.mxu0 %v5109
    %v5355 = vpop.f32.mrf.mxu0
    %v5356 = vadd.f32 0.0, %v5355
    %v5357 = vpop.f32.mrf.mxu0
    %5358 = vmatprep.mubr.f32.mxu0 0.0
    %5359 = vmatmul.mubr.f32.gmra.mxu0 %v5112
    %v5360 = vpop.f32.mrf.mxu0
    %v5361 = vadd.f32 0.0, %v5360
    %v5362 = vpop.f32.mrf.mxu0
    %5363 = vmatprep.mubr.f32.mxu0 0.0
    %5364 = vmatmul.mubr.f32.gmra.mxu0 %v5114
    %v5365 = vpop.f32.mrf.mxu0
    %v5366 = vadd.f32 0.0, %v5365
    %v5367 = vpop.f32.mrf.mxu0
    %5368 = vmatprep.mubr.f32.mxu0 0.0
    %5369 = vmatmul.mubr.f32.gmra.mxu0 %v5116
    %v5370 = vpop.f32.mrf.mxu0
    %v5371 = vadd.f32 0.0, %v5370
    %v5372 = vpop.f32.mrf.mxu0
    %5373 = vmatprep.mubr.f32.mxu0 0.0
    %5374 = vmatmul.mubr.f32.gmra.mxu0 %v5117
    %v5375 = vpop.f32.mrf.mxu0
    %v5376 = vadd.f32 0.0, %v5375
    %v5377 = vpop.f32.mrf.mxu0
    %5378 = vmatprep.mubr.f32.mxu0 0.0
    %5379 = vmatmul.mubr.f32.gmra.mxu0 %v5120
    %v5380 = vpop.f32.mrf.mxu0
    %v5381 = vadd.f32 0.0, %v5380
    %v5382 = vpop.f32.mrf.mxu0
    %5383 = vmatprep.mubr.f32.mxu0 0.0
    %5384 = vmatmul.mubr.f32.gmra.mxu0 %v5122
    %v5385 = vpop.f32.mrf.mxu0
    %v5386 = vadd.f32 0.0, %v5385
    %v5387 = vpop.f32.mrf.mxu0
    %5388 = vmatprep.mubr.f32.mxu0 0.0
    %5389 = vmatmul.mubr.f32.gmra.mxu0 %v5124
    %v5390 = vpop.f32.mrf.mxu0
    %v5391 = vadd.f32 0.0, %v5390
    %v5392 = vpop.f32.mrf.mxu0
    %5393 = vmatprep.mubr.f32.mxu0 0.0
    %5394 = vmatmul.mubr.f32.gmra.mxu0 %v5125
    %v5395 = vpop.f32.mrf.mxu0
    %v5396 = vadd.f32 0.0, %v5395
    %v5397 = vpop.f32.mrf.mxu0
    %5398 = vdwg.mxu0
    %v5399 = vadd.f32 %v4903, %v5241
    %v5400 = vadd.f32 %v4908, %v5246
    %v5401 = vadd.f32 %v4913, %v5251
    %v5402 = vadd.f32 %v4918, %v5256
    %v5403 = vadd.f32 %v4923, %v5261
    %v5404 = vadd.f32 %v4928, %v5266
    %v5405 = vadd.f32 %v4933, %v5271
    %v5406 = vadd.f32 %v4938, %v5276
    %v5407 = vadd.f32 %v4943, %v5281
    %v5408 = vadd.f32 %v4948, %v5286
    %v5409 = vadd.f32 %v4953, %v5291
    %v5410 = vadd.f32 %v4958, %v5296
    %v5411 = vadd.f32 %v4963, %v5301
    %v5412 = vadd.f32 %v4968, %v5306
    %v5413 = vadd.f32 %v4973, %v5311
    %v5414 = vadd.f32 %v4978, %v5316
    %v5415 = vadd.f32 %v4983, %v5321
    %v5416 = vadd.f32 %v4988, %v5326
    %v5417 = vadd.f32 %v4993, %v5331
    %v5418 = vadd.f32 %v4998, %v5336
    %v5419 = vadd.f32 %v5003, %v5341
    %v5420 = vadd.f32 %v5008, %v5346
    %v5421 = vadd.f32 %v5013, %v5351
    %v5422 = vadd.f32 %v5018, %v5356
    %v5423 = vadd.f32 %v5023, %v5361
    %v5424 = vadd.f32 %v5028, %v5366
    %v5425 = vadd.f32 %v5033, %v5371
    %v5426 = vadd.f32 %v5038, %v5376
    %v5427 = vadd.f32 %v5043, %v5381
    %v5428 = vadd.f32 %v5048, %v5386
    %v5429 = vadd.f32 %v5053, %v5391
    %v5430 = vadd.f32 %v5058, %v5396
    %v5431 = vld [vmem:[%s3 + $0x1] sm:$0x1]
    %v5432 = vlaneseq
    %v5433 = vshrl.u32 %v5432, 7
    %v5434 = vsub.s32 0, %v5433
    %v5435 = vrot.slane %v5431, %v5434
    %v5436 = vadd.f32 %v5399, %v5435
    %v5437 = vadd.f32 %v5400, %v5435
    %v5438 = vadd.f32 %v5401, %v5435
    %v5439 = vadd.f32 %v5402, %v5435
    %v5440 = vadd.f32 %v5403, %v5435
    %v5441 = vadd.f32 %v5404, %v5435
    %v5442 = vadd.f32 %v5405, %v5435
    %v5443 = vadd.f32 %v5406, %v5435
    %v5444 = vadd.f32 %v5407, %v5435
    %v5445 = vadd.f32 %v5408, %v5435
    %v5446 = vadd.f32 %v5409, %v5435
    %v5447 = vadd.f32 %v5410, %v5435
    %v5448 = vadd.f32 %v5411, %v5435
    %v5449 = vadd.f32 %v5412, %v5435
    %v5450 = vadd.f32 %v5413, %v5435
    %v5451 = vadd.f32 %v5414, %v5435
    %v5452 = vadd.f32 %v5415, %v5435
    %v5453 = vadd.f32 %v5416, %v5435
    %v5454 = vadd.f32 %v5417, %v5435
    %v5455 = vadd.f32 %v5418, %v5435
    %v5456 = vadd.f32 %v5419, %v5435
    %v5457 = vadd.f32 %v5420, %v5435
    %v5458 = vadd.f32 %v5421, %v5435
    %v5459 = vadd.f32 %v5422, %v5435
    %v5460 = vadd.f32 %v5423, %v5435
    %v5461 = vadd.f32 %v5424, %v5435
    %v5462 = vadd.f32 %v5425, %v5435
    %v5463 = vadd.f32 %v5426, %v5435
    %v5464 = vadd.f32 %v5427, %v5435
    %v5465 = vadd.f32 %v5428, %v5435
    %v5466 = vadd.f32 %v5429, %v5435
    %v5467 = vadd.f32 %v5430, %v5435
    %v5468 = vmax.f32 %v5436, 0.0
    %v5469 = vmax.f32 %v5437, 0.0
    %v5470 = vmax.f32 %v5438, 0.0
    %v5471 = vmax.f32 %v5439, 0.0
    %v5472 = vmax.f32 %v5440, 0.0
    %v5473 = vmax.f32 %v5441, 0.0
    %v5474 = vmax.f32 %v5442, 0.0
    %v5475 = vmax.f32 %v5443, 0.0
    %v5476 = vmax.f32 %v5444, 0.0
    %v5477 = vmax.f32 %v5445, 0.0
    %v5478 = vmax.f32 %v5446, 0.0
    %v5479 = vmax.f32 %v5447, 0.0
    %v5480 = vmax.f32 %v5448, 0.0
    %v5481 = vmax.f32 %v5449, 0.0
    %v5482 = vmax.f32 %v5450, 0.0
    %v5483 = vmax.f32 %v5451, 0.0
    %v5484 = vmax.f32 %v5452, 0.0
    %v5485 = vmax.f32 %v5453, 0.0
    %v5486 = vmax.f32 %v5454, 0.0
    %v5487 = vmax.f32 %v5455, 0.0
    %v5488 = vmax.f32 %v5456, 0.0
    %v5489 = vmax.f32 %v5457, 0.0
    %v5490 = vmax.f32 %v5458, 0.0
    %v5491 = vmax.f32 %v5459, 0.0
    %v5492 = vmax.f32 %v5460, 0.0
    %v5493 = vmax.f32 %v5461, 0.0
    %v5494 = vmax.f32 %v5462, 0.0
    %v5495 = vmax.f32 %v5463, 0.0
    %v5496 = vmax.f32 %v5464, 0.0
    %v5497 = vmax.f32 %v5465, 0.0
    %v5498 = vmax.f32 %v5466, 0.0
    %v5499 = vmax.f32 %v5467, 0.0
    %v5532 = vcombine.high %v5468, %v5468
    %v5534 = vunpack.c.l.s4 1983009808
    %v5535 = vunpack.c.0.s8 %v5534
    %v5536 = vlaneseq
    %v5537 = vshrl.u32 %v5536, 7
    %v5538 = vsub.s32 %v5535, %v5537
    %v5539 = vrot.slane %v5468, %v5538
    %v5541 = vunpack.c.l.s4 1983009808
    %v5542 = vunpack.c.0.s8 %v5541
    %v5543 = vlaneseq
    %v5544 = vshrl.u32 %v5543, 7
    %v5545 = vsub.s32 %v5542, %v5544
    %v5546 = vrot.slane %v5532, %v5545
    %v5547 = vcombine.high %v5539, %v5539
    %v5548 = vcombine.high %v5546, %v5546
    %v5549 = vcombine.high %v5469, %v5469
    %v5551 = vunpack.c.l.s4 1983009808
    %v5552 = vunpack.c.0.s8 %v5551
    %v5553 = vlaneseq
    %v5554 = vshrl.u32 %v5553, 7
    %v5555 = vsub.s32 %v5552, %v5554
    %v5556 = vrot.slane %v5469, %v5555
    %v5558 = vunpack.c.l.s4 1983009808
    %v5559 = vunpack.c.0.s8 %v5558
    %v5560 = vlaneseq
    %v5561 = vshrl.u32 %v5560, 7
    %v5562 = vsub.s32 %v5559, %v5561
    %v5563 = vrot.slane %v5549, %v5562
    %v5564 = vcombine.high %v5556, %v5556
    %v5565 = vcombine.high %v5563, %v5563
    %v5566 = vcombine.high %v5470, %v5470
    %v5568 = vunpack.c.l.s4 1983009808
    %v5569 = vunpack.c.0.s8 %v5568
    %v5570 = vlaneseq
    %v5571 = vshrl.u32 %v5570, 7
    %v5572 = vsub.s32 %v5569, %v5571
    %v5573 = vrot.slane %v5470, %v5572
    %v5575 = vunpack.c.l.s4 1983009808
    %v5576 = vunpack.c.0.s8 %v5575
    %v5577 = vlaneseq
    %v5578 = vshrl.u32 %v5577, 7
    %v5579 = vsub.s32 %v5576, %v5578
    %v5580 = vrot.slane %v5566, %v5579
    %v5581 = vcombine.high %v5573, %v5573
    %v5582 = vcombine.high %v5580, %v5580
    %v5584 = vunpack.c.l.s4 1983009808
    %v5585 = vunpack.c.0.s8 %v5584
    %v5586 = vlaneseq
    %v5587 = vshrl.u32 %v5586, 7
    %v5588 = vsub.s32 %v5585, %v5587
    %v5589 = vrot.slane %v5471, %v5588
    %v5590 = vcombine.high %v5472, %v5472
    %v5592 = vunpack.c.l.s4 1983009808
    %v5593 = vunpack.c.0.s8 %v5592
    %v5594 = vlaneseq
    %v5595 = vshrl.u32 %v5594, 7
    %v5596 = vsub.s32 %v5593, %v5595
    %v5597 = vrot.slane %v5472, %v5596
    %v5599 = vunpack.c.l.s4 1983009808
    %v5600 = vunpack.c.0.s8 %v5599
    %v5601 = vlaneseq
    %v5602 = vshrl.u32 %v5601, 7
    %v5603 = vsub.s32 %v5600, %v5602
    %v5604 = vrot.slane %v5590, %v5603
    %v5605 = vcombine.high %v5597, %v5597
    %v5606 = vcombine.high %v5604, %v5604
    %v5607 = vcombine.high %v5473, %v5473
    %v5609 = vunpack.c.l.s4 1983009808
    %v5610 = vunpack.c.0.s8 %v5609
    %v5611 = vlaneseq
    %v5612 = vshrl.u32 %v5611, 7
    %v5613 = vsub.s32 %v5610, %v5612
    %v5614 = vrot.slane %v5473, %v5613
    %v5616 = vunpack.c.l.s4 1983009808
    %v5617 = vunpack.c.0.s8 %v5616
    %v5618 = vlaneseq
    %v5619 = vshrl.u32 %v5618, 7
    %v5620 = vsub.s32 %v5617, %v5619
    %v5621 = vrot.slane %v5607, %v5620
    %v5622 = vcombine.high %v5614, %v5614
    %v5623 = vcombine.high %v5621, %v5621
    %v5624 = vcombine.high %v5474, %v5474
    %v5626 = vunpack.c.l.s4 1983009808
    %v5627 = vunpack.c.0.s8 %v5626
    %v5628 = vlaneseq
    %v5629 = vshrl.u32 %v5628, 7
    %v5630 = vsub.s32 %v5627, %v5629
    %v5631 = vrot.slane %v5474, %v5630
    %v5633 = vunpack.c.l.s4 1983009808
    %v5634 = vunpack.c.0.s8 %v5633
    %v5635 = vlaneseq
    %v5636 = vshrl.u32 %v5635, 7
    %v5637 = vsub.s32 %v5634, %v5636
    %v5638 = vrot.slane %v5624, %v5637
    %v5639 = vcombine.high %v5631, %v5631
    %v5640 = vcombine.high %v5638, %v5638
    %v5642 = vunpack.c.l.s4 1983009808
    %v5643 = vunpack.c.0.s8 %v5642
    %v5644 = vlaneseq
    %v5645 = vshrl.u32 %v5644, 7
    %v5646 = vsub.s32 %v5643, %v5645
    %v5647 = vrot.slane %v5475, %v5646
    %v5648 = vcombine.high %v5476, %v5476
    %v5650 = vunpack.c.l.s4 1983009808
    %v5651 = vunpack.c.0.s8 %v5650
    %v5652 = vlaneseq
    %v5653 = vshrl.u32 %v5652, 7
    %v5654 = vsub.s32 %v5651, %v5653
    %v5655 = vrot.slane %v5476, %v5654
    %v5657 = vunpack.c.l.s4 1983009808
    %v5658 = vunpack.c.0.s8 %v5657
    %v5659 = vlaneseq
    %v5660 = vshrl.u32 %v5659, 7
    %v5661 = vsub.s32 %v5658, %v5660
    %v5662 = vrot.slane %v5648, %v5661
    %v5663 = vcombine.high %v5655, %v5655
    %v5664 = vcombine.high %v5662, %v5662
    %v5665 = vcombine.high %v5477, %v5477
    %v5667 = vunpack.c.l.s4 1983009808
    %v5668 = vunpack.c.0.s8 %v5667
    %v5669 = vlaneseq
    %v5670 = vshrl.u32 %v5669, 7
    %v5671 = vsub.s32 %v5668, %v5670
    %v5672 = vrot.slane %v5477, %v5671
    %v5674 = vunpack.c.l.s4 1983009808
    %v5675 = vunpack.c.0.s8 %v5674
    %v5676 = vlaneseq
    %v5677 = vshrl.u32 %v5676, 7
    %v5678 = vsub.s32 %v5675, %v5677
    %v5679 = vrot.slane %v5665, %v5678
    %v5680 = vcombine.high %v5672, %v5672
    %v5681 = vcombine.high %v5679, %v5679
    %v5682 = vcombine.high %v5478, %v5478
    %v5684 = vunpack.c.l.s4 1983009808
    %v5685 = vunpack.c.0.s8 %v5684
    %v5686 = vlaneseq
    %v5687 = vshrl.u32 %v5686, 7
    %v5688 = vsub.s32 %v5685, %v5687
    %v5689 = vrot.slane %v5478, %v5688
    %v5691 = vunpack.c.l.s4 1983009808
    %v5692 = vunpack.c.0.s8 %v5691
    %v5693 = vlaneseq
    %v5694 = vshrl.u32 %v5693, 7
    %v5695 = vsub.s32 %v5692, %v5694
    %v5696 = vrot.slane %v5682, %v5695
    %v5697 = vcombine.high %v5689, %v5689
    %v5698 = vcombine.high %v5696, %v5696
    %v5700 = vunpack.c.l.s4 1983009808
    %v5701 = vunpack.c.0.s8 %v5700
    %v5702 = vlaneseq
    %v5703 = vshrl.u32 %v5702, 7
    %v5704 = vsub.s32 %v5701, %v5703
    %v5705 = vrot.slane %v5479, %v5704
    %v5706 = vcombine.high %v5480, %v5480
    %v5708 = vunpack.c.l.s4 1983009808
    %v5709 = vunpack.c.0.s8 %v5708
    %v5710 = vlaneseq
    %v5711 = vshrl.u32 %v5710, 7
    %v5712 = vsub.s32 %v5709, %v5711
    %v5713 = vrot.slane %v5480, %v5712
    %v5715 = vunpack.c.l.s4 1983009808
    %v5716 = vunpack.c.0.s8 %v5715
    %v5717 = vlaneseq
    %v5718 = vshrl.u32 %v5717, 7
    %v5719 = vsub.s32 %v5716, %v5718
    %v5720 = vrot.slane %v5706, %v5719
    %v5721 = vcombine.high %v5713, %v5713
    %v5722 = vcombine.high %v5720, %v5720
    %v5723 = vcombine.high %v5481, %v5481
    %v5725 = vunpack.c.l.s4 1983009808
    %v5726 = vunpack.c.0.s8 %v5725
    %v5727 = vlaneseq
    %v5728 = vshrl.u32 %v5727, 7
    %v5729 = vsub.s32 %v5726, %v5728
    %v5730 = vrot.slane %v5481, %v5729
    %v5732 = vunpack.c.l.s4 1983009808
    %v5733 = vunpack.c.0.s8 %v5732
    %v5734 = vlaneseq
    %v5735 = vshrl.u32 %v5734, 7
    %v5736 = vsub.s32 %v5733, %v5735
    %v5737 = vrot.slane %v5723, %v5736
    %v5738 = vcombine.high %v5730, %v5730
    %v5739 = vcombine.high %v5737, %v5737
    %v5740 = vcombine.high %v5482, %v5482
    %v5742 = vunpack.c.l.s4 1983009808
    %v5743 = vunpack.c.0.s8 %v5742
    %v5744 = vlaneseq
    %v5745 = vshrl.u32 %v5744, 7
    %v5746 = vsub.s32 %v5743, %v5745
    %v5747 = vrot.slane %v5482, %v5746
    %v5749 = vunpack.c.l.s4 1983009808
    %v5750 = vunpack.c.0.s8 %v5749
    %v5751 = vlaneseq
    %v5752 = vshrl.u32 %v5751, 7
    %v5753 = vsub.s32 %v5750, %v5752
    %v5754 = vrot.slane %v5740, %v5753
    %v5755 = vcombine.high %v5747, %v5747
    %v5756 = vcombine.high %v5754, %v5754
    %v5758 = vunpack.c.l.s4 1983009808
    %v5759 = vunpack.c.0.s8 %v5758
    %v5760 = vlaneseq
    %v5761 = vshrl.u32 %v5760, 7
    %v5762 = vsub.s32 %v5759, %v5761
    %v5763 = vrot.slane %v5483, %v5762
    %v5764 = vcombine.high %v5484, %v5484
    %v5766 = vunpack.c.l.s4 1983009808
    %v5767 = vunpack.c.0.s8 %v5766
    %v5768 = vlaneseq
    %v5769 = vshrl.u32 %v5768, 7
    %v5770 = vsub.s32 %v5767, %v5769
    %v5771 = vrot.slane %v5484, %v5770
    %v5773 = vunpack.c.l.s4 1983009808
    %v5774 = vunpack.c.0.s8 %v5773
    %v5775 = vlaneseq
    %v5776 = vshrl.u32 %v5775, 7
    %v5777 = vsub.s32 %v5774, %v5776
    %v5778 = vrot.slane %v5764, %v5777
    %v5779 = vcombine.high %v5771, %v5771
    %v5780 = vcombine.high %v5778, %v5778
    %v5781 = vcombine.high %v5485, %v5485
    %v5783 = vunpack.c.l.s4 1983009808
    %v5784 = vunpack.c.0.s8 %v5783
    %v5785 = vlaneseq
    %v5786 = vshrl.u32 %v5785, 7
    %v5787 = vsub.s32 %v5784, %v5786
    %v5788 = vrot.slane %v5485, %v5787
    %v5790 = vunpack.c.l.s4 1983009808
    %v5791 = vunpack.c.0.s8 %v5790
    %v5792 = vlaneseq
    %v5793 = vshrl.u32 %v5792, 7
    %v5794 = vsub.s32 %v5791, %v5793
    %v5795 = vrot.slane %v5781, %v5794
    %v5796 = vcombine.high %v5788, %v5788
    %v5797 = vcombine.high %v5795, %v5795
    %v5798 = vcombine.high %v5486, %v5486
    %v5800 = vunpack.c.l.s4 1983009808
    %v5801 = vunpack.c.0.s8 %v5800
    %v5802 = vlaneseq
    %v5803 = vshrl.u32 %v5802, 7
    %v5804 = vsub.s32 %v5801, %v5803
    %v5805 = vrot.slane %v5486, %v5804
    %v5807 = vunpack.c.l.s4 1983009808
    %v5808 = vunpack.c.0.s8 %v5807
    %v5809 = vlaneseq
    %v5810 = vshrl.u32 %v5809, 7
    %v5811 = vsub.s32 %v5808, %v5810
    %v5812 = vrot.slane %v5798, %v5811
    %v5813 = vcombine.high %v5805, %v5805
    %v5814 = vcombine.high %v5812, %v5812
    %v5816 = vunpack.c.l.s4 1983009808
    %v5817 = vunpack.c.0.s8 %v5816
    %v5818 = vlaneseq
    %v5819 = vshrl.u32 %v5818, 7
    %v5820 = vsub.s32 %v5817, %v5819
    %v5821 = vrot.slane %v5487, %v5820
    %v5822 = vcombine.high %v5488, %v5488
    %v5824 = vunpack.c.l.s4 1983009808
    %v5825 = vunpack.c.0.s8 %v5824
    %v5826 = vlaneseq
    %v5827 = vshrl.u32 %v5826, 7
    %v5828 = vsub.s32 %v5825, %v5827
    %v5829 = vrot.slane %v5488, %v5828
    %v5831 = vunpack.c.l.s4 1983009808
    %v5832 = vunpack.c.0.s8 %v5831
    %v5833 = vlaneseq
    %v5834 = vshrl.u32 %v5833, 7
    %v5835 = vsub.s32 %v5832, %v5834
    %v5836 = vrot.slane %v5822, %v5835
    %v5837 = vcombine.high %v5829, %v5829
    %v5838 = vcombine.high %v5836, %v5836
    %v5839 = vcombine.high %v5489, %v5489
    %v5841 = vunpack.c.l.s4 1983009808
    %v5842 = vunpack.c.0.s8 %v5841
    %v5843 = vlaneseq
    %v5844 = vshrl.u32 %v5843, 7
    %v5845 = vsub.s32 %v5842, %v5844
    %v5846 = vrot.slane %v5489, %v5845
    %v5848 = vunpack.c.l.s4 1983009808
    %v5849 = vunpack.c.0.s8 %v5848
    %v5850 = vlaneseq
    %v5851 = vshrl.u32 %v5850, 7
    %v5852 = vsub.s32 %v5849, %v5851
    %v5853 = vrot.slane %v5839, %v5852
    %v5854 = vcombine.high %v5846, %v5846
    %v5855 = vcombine.high %v5853, %v5853
    %v5856 = vcombine.high %v5490, %v5490
    %v5858 = vunpack.c.l.s4 1983009808
    %v5859 = vunpack.c.0.s8 %v5858
    %v5860 = vlaneseq
    %v5861 = vshrl.u32 %v5860, 7
    %v5862 = vsub.s32 %v5859, %v5861
    %v5863 = vrot.slane %v5490, %v5862
    %v5865 = vunpack.c.l.s4 1983009808
    %v5866 = vunpack.c.0.s8 %v5865
    %v5867 = vlaneseq
    %v5868 = vshrl.u32 %v5867, 7
    %v5869 = vsub.s32 %v5866, %v5868
    %v5870 = vrot.slane %v5856, %v5869
    %v5871 = vcombine.high %v5863, %v5863
    %v5872 = vcombine.high %v5870, %v5870
    %v5874 = vunpack.c.l.s4 1983009808
    %v5875 = vunpack.c.0.s8 %v5874
    %v5876 = vlaneseq
    %v5877 = vshrl.u32 %v5876, 7
    %v5878 = vsub.s32 %v5875, %v5877
    %v5879 = vrot.slane %v5491, %v5878
    %v5880 = vcombine.high %v5492, %v5492
    %v5882 = vunpack.c.l.s4 1983009808
    %v5883 = vunpack.c.0.s8 %v5882
    %v5884 = vlaneseq
    %v5885 = vshrl.u32 %v5884, 7
    %v5886 = vsub.s32 %v5883, %v5885
    %v5887 = vrot.slane %v5492, %v5886
    %v5889 = vunpack.c.l.s4 1983009808
    %v5890 = vunpack.c.0.s8 %v5889
    %v5891 = vlaneseq
    %v5892 = vshrl.u32 %v5891, 7
    %v5893 = vsub.s32 %v5890, %v5892
    %v5894 = vrot.slane %v5880, %v5893
    %v5895 = vcombine.high %v5887, %v5887
    %v5896 = vcombine.high %v5894, %v5894
    %v5897 = vcombine.high %v5493, %v5493
    %v5899 = vunpack.c.l.s4 1983009808
    %v5900 = vunpack.c.0.s8 %v5899
    %v5901 = vlaneseq
    %v5902 = vshrl.u32 %v5901, 7
    %v5903 = vsub.s32 %v5900, %v5902
    %v5904 = vrot.slane %v5493, %v5903
    %v5906 = vunpack.c.l.s4 1983009808
    %v5907 = vunpack.c.0.s8 %v5906
    %v5908 = vlaneseq
    %v5909 = vshrl.u32 %v5908, 7
    %v5910 = vsub.s32 %v5907, %v5909
    %v5911 = vrot.slane %v5897, %v5910
    %v5912 = vcombine.high %v5904, %v5904
    %v5913 = vcombine.high %v5911, %v5911
    %v5914 = vcombine.high %v5494, %v5494
    %v5916 = vunpack.c.l.s4 1983009808
    %v5917 = vunpack.c.0.s8 %v5916
    %v5918 = vlaneseq
    %v5919 = vshrl.u32 %v5918, 7
    %v5920 = vsub.s32 %v5917, %v5919
    %v5921 = vrot.slane %v5494, %v5920
    %v5923 = vunpack.c.l.s4 1983009808
    %v5924 = vunpack.c.0.s8 %v5923
    %v5925 = vlaneseq
    %v5926 = vshrl.u32 %v5925, 7
    %v5927 = vsub.s32 %v5924, %v5926
    %v5928 = vrot.slane %v5914, %v5927
    %v5929 = vcombine.high %v5921, %v5921
    %v5930 = vcombine.high %v5928, %v5928
    %v5932 = vunpack.c.l.s4 1983009808
    %v5933 = vunpack.c.0.s8 %v5932
    %v5934 = vlaneseq
    %v5935 = vshrl.u32 %v5934, 7
    %v5936 = vsub.s32 %v5933, %v5935
    %v5937 = vrot.slane %v5495, %v5936
    %v5938 = vcombine.high %v5496, %v5496
    %v5940 = vunpack.c.l.s4 1983009808
    %v5941 = vunpack.c.0.s8 %v5940
    %v5942 = vlaneseq
    %v5943 = vshrl.u32 %v5942, 7
    %v5944 = vsub.s32 %v5941, %v5943
    %v5945 = vrot.slane %v5496, %v5944
    %v5947 = vunpack.c.l.s4 1983009808
    %v5948 = vunpack.c.0.s8 %v5947
    %v5949 = vlaneseq
    %v5950 = vshrl.u32 %v5949, 7
    %v5951 = vsub.s32 %v5948, %v5950
    %v5952 = vrot.slane %v5938, %v5951
    %v5953 = vcombine.high %v5945, %v5945
    %v5954 = vcombine.high %v5952, %v5952
    %v5955 = vcombine.high %v5497, %v5497
    %v5957 = vunpack.c.l.s4 1983009808
    %v5958 = vunpack.c.0.s8 %v5957
    %v5959 = vlaneseq
    %v5960 = vshrl.u32 %v5959, 7
    %v5961 = vsub.s32 %v5958, %v5960
    %v5962 = vrot.slane %v5497, %v5961
    %v5964 = vunpack.c.l.s4 1983009808
    %v5965 = vunpack.c.0.s8 %v5964
    %v5966 = vlaneseq
    %v5967 = vshrl.u32 %v5966, 7
    %v5968 = vsub.s32 %v5965, %v5967
    %v5969 = vrot.slane %v5955, %v5968
    %v5970 = vcombine.high %v5962, %v5962
    %v5971 = vcombine.high %v5969, %v5969
    %v5972 = vcombine.high %v5498, %v5498
    %v5974 = vunpack.c.l.s4 1983009808
    %v5975 = vunpack.c.0.s8 %v5974
    %v5976 = vlaneseq
    %v5977 = vshrl.u32 %v5976, 7
    %v5978 = vsub.s32 %v5975, %v5977
    %v5979 = vrot.slane %v5498, %v5978
    %v5981 = vunpack.c.l.s4 1983009808
    %v5982 = vunpack.c.0.s8 %v5981
    %v5983 = vlaneseq
    %v5984 = vshrl.u32 %v5983, 7
    %v5985 = vsub.s32 %v5982, %v5984
    %v5986 = vrot.slane %v5972, %v5985
    %v5987 = vcombine.high %v5979, %v5979
    %v5988 = vcombine.high %v5986, %v5986
    %v5990 = vunpack.c.l.s4 1983009808
    %v5991 = vunpack.c.0.s8 %v5990
    %v5992 = vlaneseq
    %v5993 = vshrl.u32 %v5992, 7
    %v5994 = vsub.s32 %v5991, %v5993
    %v5995 = vrot.slane %v5499, %v5994
    %v6100 = vsel %vm2069, %v5539, -inf
    %v6101 = vrot.slane %v6100, 4
    %v6102 = vmax.f32 %v6100, %v6101
    %v6103 = vrot.slane %v6102, 2
    %v6104 = vmax.f32 %v6102, %v6103
    %v6105 = vrot.slane %v6104, 1
    %v6106 = vmax.f32 %v6104, %v6105
    %v6107 = vsel %vm2069, %v5547, -inf
    %v6108 = vrot.slane %v6107, 4
    %v6109 = vmax.f32 %v6107, %v6108
    %v6110 = vrot.slane %v6109, 2
    %v6111 = vmax.f32 %v6109, %v6110
    %v6112 = vrot.slane %v6111, 1
    %v6113 = vmax.f32 %v6111, %v6112
    %v6114 = vsel %vm2069, %v5546, -inf
    %v6115 = vrot.slane %v6114, 4
    %v6116 = vmax.f32 %v6114, %v6115
    %v6117 = vrot.slane %v6116, 2
    %v6118 = vmax.f32 %v6116, %v6117
    %v6119 = vrot.slane %v6118, 1
    %v6120 = vmax.f32 %v6118, %v6119
    %v6121 = vsel %vm2069, %v5548, -inf
    %v6122 = vrot.slane %v6121, 4
    %v6123 = vmax.f32 %v6121, %v6122
    %v6124 = vrot.slane %v6123, 2
    %v6125 = vmax.f32 %v6123, %v6124
    %v6126 = vrot.slane %v6125, 1
    %v6127 = vmax.f32 %v6125, %v6126
    %v6128 = vsel %vm2069, %v5556, -inf
    %v6129 = vrot.slane %v6128, 4
    %v6130 = vmax.f32 %v6128, %v6129
    %v6131 = vrot.slane %v6130, 2
    %v6132 = vmax.f32 %v6130, %v6131
    %v6133 = vrot.slane %v6132, 1
    %v6134 = vmax.f32 %v6132, %v6133
    %v6135 = vsel %vm2069, %v5564, -inf
    %v6136 = vrot.slane %v6135, 4
    %v6137 = vmax.f32 %v6135, %v6136
    %v6138 = vrot.slane %v6137, 2
    %v6139 = vmax.f32 %v6137, %v6138
    %v6140 = vrot.slane %v6139, 1
    %v6141 = vmax.f32 %v6139, %v6140
    %v6142 = vsel %vm2069, %v5563, -inf
    %v6143 = vrot.slane %v6142, 4
    %v6144 = vmax.f32 %v6142, %v6143
    %v6145 = vrot.slane %v6144, 2
    %v6146 = vmax.f32 %v6144, %v6145
    %v6147 = vrot.slane %v6146, 1
    %v6148 = vmax.f32 %v6146, %v6147
    %v6149 = vsel %vm2069, %v5565, -inf
    %v6150 = vrot.slane %v6149, 4
    %v6151 = vmax.f32 %v6149, %v6150
    %v6152 = vrot.slane %v6151, 2
    %v6153 = vmax.f32 %v6151, %v6152
    %v6154 = vrot.slane %v6153, 1
    %v6155 = vmax.f32 %v6153, %v6154
    %v6156 = vsel %vm2069, %v5573, -inf
    %v6157 = vrot.slane %v6156, 4
    %v6158 = vmax.f32 %v6156, %v6157
    %v6159 = vrot.slane %v6158, 2
    %v6160 = vmax.f32 %v6158, %v6159
    %v6161 = vrot.slane %v6160, 1
    %v6162 = vmax.f32 %v6160, %v6161
    %v6163 = vsel %vm2069, %v5581, -inf
    %v6164 = vrot.slane %v6163, 4
    %v6165 = vmax.f32 %v6163, %v6164
    %v6166 = vrot.slane %v6165, 2
    %v6167 = vmax.f32 %v6165, %v6166
    %v6168 = vrot.slane %v6167, 1
    %v6169 = vmax.f32 %v6167, %v6168
    %v6170 = vsel %vm2069, %v5580, -inf
    %v6171 = vrot.slane %v6170, 4
    %v6172 = vmax.f32 %v6170, %v6171
    %v6173 = vrot.slane %v6172, 2
    %v6174 = vmax.f32 %v6172, %v6173
    %v6175 = vrot.slane %v6174, 1
    %v6176 = vmax.f32 %v6174, %v6175
    %v6177 = vsel %vm2069, %v5582, -inf
    %v6178 = vrot.slane %v6177, 4
    %v6179 = vmax.f32 %v6177, %v6178
    %v6180 = vrot.slane %v6179, 2
    %v6181 = vmax.f32 %v6179, %v6180
    %v6182 = vrot.slane %v6181, 1
    %v6183 = vmax.f32 %v6181, %v6182
    %v6184 = vsel %vm2069, %v5589, -inf
    %v6185 = vrot.slane %v6184, 4
    %v6186 = vmax.f32 %v6184, %v6185
    %v6187 = vrot.slane %v6186, 2
    %v6188 = vmax.f32 %v6186, %v6187
    %v6189 = vrot.slane %v6188, 1
    %v6190 = vmax.f32 %v6188, %v6189
    %v6191 = vsel %vm2069, %v5597, -inf
    %v6192 = vrot.slane %v6191, 4
    %v6193 = vmax.f32 %v6191, %v6192
    %v6194 = vrot.slane %v6193, 2
    %v6195 = vmax.f32 %v6193, %v6194
    %v6196 = vrot.slane %v6195, 1
    %v6197 = vmax.f32 %v6195, %v6196
    %v6198 = vsel %vm2069, %v5605, -inf
    %v6199 = vrot.slane %v6198, 4
    %v6200 = vmax.f32 %v6198, %v6199
    %v6201 = vrot.slane %v6200, 2
    %v6202 = vmax.f32 %v6200, %v6201
    %v6203 = vrot.slane %v6202, 1
    %v6204 = vmax.f32 %v6202, %v6203
    %v6205 = vsel %vm2069, %v5604, -inf
    %v6206 = vrot.slane %v6205, 4
    %v6207 = vmax.f32 %v6205, %v6206
    %v6208 = vrot.slane %v6207, 2
    %v6209 = vmax.f32 %v6207, %v6208
    %v6210 = vrot.slane %v6209, 1
    %v6211 = vmax.f32 %v6209, %v6210
    %v6212 = vsel %vm2069, %v5606, -inf
    %v6213 = vrot.slane %v6212, 4
    %v6214 = vmax.f32 %v6212, %v6213
    %v6215 = vrot.slane %v6214, 2
    %v6216 = vmax.f32 %v6214, %v6215
    %v6217 = vrot.slane %v6216, 1
    %v6218 = vmax.f32 %v6216, %v6217
    %v6219 = vsel %vm2069, %v5614, -inf
    %v6220 = vrot.slane %v6219, 4
    %v6221 = vmax.f32 %v6219, %v6220
    %v6222 = vrot.slane %v6221, 2
    %v6223 = vmax.f32 %v6221, %v6222
    %v6224 = vrot.slane %v6223, 1
    %v6225 = vmax.f32 %v6223, %v6224
    %v6226 = vsel %vm2069, %v5622, -inf
    %v6227 = vrot.slane %v6226, 4
    %v6228 = vmax.f32 %v6226, %v6227
    %v6229 = vrot.slane %v6228, 2
    %v6230 = vmax.f32 %v6228, %v6229
    %v6231 = vrot.slane %v6230, 1
    %v6232 = vmax.f32 %v6230, %v6231
    %v6233 = vsel %vm2069, %v5621, -inf
    %v6234 = vrot.slane %v6233, 4
    %v6235 = vmax.f32 %v6233, %v6234
    %v6236 = vrot.slane %v6235, 2
    %v6237 = vmax.f32 %v6235, %v6236
    %v6238 = vrot.slane %v6237, 1
    %v6239 = vmax.f32 %v6237, %v6238
    %v6240 = vsel %vm2069, %v5623, -inf
    %v6241 = vrot.slane %v6240, 4
    %v6242 = vmax.f32 %v6240, %v6241
    %v6243 = vrot.slane %v6242, 2
    %v6244 = vmax.f32 %v6242, %v6243
    %v6245 = vrot.slane %v6244, 1
    %v6246 = vmax.f32 %v6244, %v6245
    %v6247 = vsel %vm2069, %v5631, -inf
    %v6248 = vrot.slane %v6247, 4
    %v6249 = vmax.f32 %v6247, %v6248
    %v6250 = vrot.slane %v6249, 2
    %v6251 = vmax.f32 %v6249, %v6250
    %v6252 = vrot.slane %v6251, 1
    %v6253 = vmax.f32 %v6251, %v6252
    %v6254 = vsel %vm2069, %v5639, -inf
    %v6255 = vrot.slane %v6254, 4
    %v6256 = vmax.f32 %v6254, %v6255
    %v6257 = vrot.slane %v6256, 2
    %v6258 = vmax.f32 %v6256, %v6257
    %v6259 = vrot.slane %v6258, 1
    %v6260 = vmax.f32 %v6258, %v6259
    %v6261 = vsel %vm2069, %v5638, -inf
    %v6262 = vrot.slane %v6261, 4
    %v6263 = vmax.f32 %v6261, %v6262
    %v6264 = vrot.slane %v6263, 2
    %v6265 = vmax.f32 %v6263, %v6264
    %v6266 = vrot.slane %v6265, 1
    %v6267 = vmax.f32 %v6265, %v6266
    %v6268 = vsel %vm2069, %v5640, -inf
    %v6269 = vrot.slane %v6268, 4
    %v6270 = vmax.f32 %v6268, %v6269
    %v6271 = vrot.slane %v6270, 2
    %v6272 = vmax.f32 %v6270, %v6271
    %v6273 = vrot.slane %v6272, 1
    %v6274 = vmax.f32 %v6272, %v6273
    %v6275 = vsel %vm2069, %v5647, -inf
    %v6276 = vrot.slane %v6275, 4
    %v6277 = vmax.f32 %v6275, %v6276
    %v6278 = vrot.slane %v6277, 2
    %v6279 = vmax.f32 %v6277, %v6278
    %v6280 = vrot.slane %v6279, 1
    %v6281 = vmax.f32 %v6279, %v6280
    %v6282 = vsel %vm2069, %v5655, -inf
    %v6283 = vrot.slane %v6282, 4
    %v6284 = vmax.f32 %v6282, %v6283
    %v6285 = vrot.slane %v6284, 2
    %v6286 = vmax.f32 %v6284, %v6285
    %v6287 = vrot.slane %v6286, 1
    %v6288 = vmax.f32 %v6286, %v6287
    %v6289 = vsel %vm2069, %v5663, -inf
    %v6290 = vrot.slane %v6289, 4
    %v6291 = vmax.f32 %v6289, %v6290
    %v6292 = vrot.slane %v6291, 2
    %v6293 = vmax.f32 %v6291, %v6292
    %v6294 = vrot.slane %v6293, 1
    %v6295 = vmax.f32 %v6293, %v6294
    %v6296 = vsel %vm2069, %v5662, -inf
    %v6297 = vrot.slane %v6296, 4
    %v6298 = vmax.f32 %v6296, %v6297
    %v6299 = vrot.slane %v6298, 2
    %v6300 = vmax.f32 %v6298, %v6299
    %v6301 = vrot.slane %v6300, 1
    %v6302 = vmax.f32 %v6300, %v6301
    %v6303 = vsel %vm2069, %v5664, -inf
    %v6304 = vrot.slane %v6303, 4
    %v6305 = vmax.f32 %v6303, %v6304
    %v6306 = vrot.slane %v6305, 2
    %v6307 = vmax.f32 %v6305, %v6306
    %v6308 = vrot.slane %v6307, 1
    %v6309 = vmax.f32 %v6307, %v6308
    %v6310 = vsel %vm2069, %v5672, -inf
    %v6311 = vrot.slane %v6310, 4
    %v6312 = vmax.f32 %v6310, %v6311
    %v6313 = vrot.slane %v6312, 2
    %v6314 = vmax.f32 %v6312, %v6313
    %v6315 = vrot.slane %v6314, 1
    %v6316 = vmax.f32 %v6314, %v6315
    %v6317 = vsel %vm2069, %v5680, -inf
    %v6318 = vrot.slane %v6317, 4
    %v6319 = vmax.f32 %v6317, %v6318
    %v6320 = vrot.slane %v6319, 2
    %v6321 = vmax.f32 %v6319, %v6320
    %v6322 = vrot.slane %v6321, 1
    %v6323 = vmax.f32 %v6321, %v6322
    %v6324 = vsel %vm2069, %v5679, -inf
    %v6325 = vrot.slane %v6324, 4
    %v6326 = vmax.f32 %v6324, %v6325
    %v6327 = vrot.slane %v6326, 2
    %v6328 = vmax.f32 %v6326, %v6327
    %v6329 = vrot.slane %v6328, 1
    %v6330 = vmax.f32 %v6328, %v6329
    %v6331 = vsel %vm2069, %v5681, -inf
    %v6332 = vrot.slane %v6331, 4
    %v6333 = vmax.f32 %v6331, %v6332
    %v6334 = vrot.slane %v6333, 2
    %v6335 = vmax.f32 %v6333, %v6334
    %v6336 = vrot.slane %v6335, 1
    %v6337 = vmax.f32 %v6335, %v6336
    %v6338 = vsel %vm2069, %v5689, -inf
    %v6339 = vrot.slane %v6338, 4
    %v6340 = vmax.f32 %v6338, %v6339
    %v6341 = vrot.slane %v6340, 2
    %v6342 = vmax.f32 %v6340, %v6341
    %v6343 = vrot.slane %v6342, 1
    %v6344 = vmax.f32 %v6342, %v6343
    %v6345 = vsel %vm2069, %v5697, -inf
    %v6346 = vrot.slane %v6345, 4
    %v6347 = vmax.f32 %v6345, %v6346
    %v6348 = vrot.slane %v6347, 2
    %v6349 = vmax.f32 %v6347, %v6348
    %v6350 = vrot.slane %v6349, 1
    %v6351 = vmax.f32 %v6349, %v6350
    %v6352 = vsel %vm2069, %v5696, -inf
    %v6353 = vrot.slane %v6352, 4
    %v6354 = vmax.f32 %v6352, %v6353
    %v6355 = vrot.slane %v6354, 2
    %v6356 = vmax.f32 %v6354, %v6355
    %v6357 = vrot.slane %v6356, 1
    %v6358 = vmax.f32 %v6356, %v6357
    %v6359 = vsel %vm2069, %v5698, -inf
    %v6360 = vrot.slane %v6359, 4
    %v6361 = vmax.f32 %v6359, %v6360
    %v6362 = vrot.slane %v6361, 2
    %v6363 = vmax.f32 %v6361, %v6362
    %v6364 = vrot.slane %v6363, 1
    %v6365 = vmax.f32 %v6363, %v6364
    %v6366 = vsel %vm2069, %v5705, -inf
    %v6367 = vrot.slane %v6366, 4
    %v6368 = vmax.f32 %v6366, %v6367
    %v6369 = vrot.slane %v6368, 2
    %v6370 = vmax.f32 %v6368, %v6369
    %v6371 = vrot.slane %v6370, 1
    %v6372 = vmax.f32 %v6370, %v6371
    %v6373 = vsel %vm2069, %v5713, -inf
    %v6374 = vrot.slane %v6373, 4
    %v6375 = vmax.f32 %v6373, %v6374
    %v6376 = vrot.slane %v6375, 2
    %v6377 = vmax.f32 %v6375, %v6376
    %v6378 = vrot.slane %v6377, 1
    %v6379 = vmax.f32 %v6377, %v6378
    %v6380 = vsel %vm2069, %v5721, -inf
    %v6381 = vrot.slane %v6380, 4
    %v6382 = vmax.f32 %v6380, %v6381
    %v6383 = vrot.slane %v6382, 2
    %v6384 = vmax.f32 %v6382, %v6383
    %v6385 = vrot.slane %v6384, 1
    %v6386 = vmax.f32 %v6384, %v6385
    %v6387 = vsel %vm2069, %v5720, -inf
    %v6388 = vrot.slane %v6387, 4
    %v6389 = vmax.f32 %v6387, %v6388
    %v6390 = vrot.slane %v6389, 2
    %v6391 = vmax.f32 %v6389, %v6390
    %v6392 = vrot.slane %v6391, 1
    %v6393 = vmax.f32 %v6391, %v6392
    %v6394 = vsel %vm2069, %v5722, -inf
    %v6395 = vrot.slane %v6394, 4
    %v6396 = vmax.f32 %v6394, %v6395
    %v6397 = vrot.slane %v6396, 2
    %v6398 = vmax.f32 %v6396, %v6397
    %v6399 = vrot.slane %v6398, 1
    %v6400 = vmax.f32 %v6398, %v6399
    %v6401 = vsel %vm2069, %v5730, -inf
    %v6402 = vrot.slane %v6401, 4
    %v6403 = vmax.f32 %v6401, %v6402
    %v6404 = vrot.slane %v6403, 2
    %v6405 = vmax.f32 %v6403, %v6404
    %v6406 = vrot.slane %v6405, 1
    %v6407 = vmax.f32 %v6405, %v6406
    %v6408 = vsel %vm2069, %v5738, -inf
    %v6409 = vrot.slane %v6408, 4
    %v6410 = vmax.f32 %v6408, %v6409
    %v6411 = vrot.slane %v6410, 2
    %v6412 = vmax.f32 %v6410, %v6411
    %v6413 = vrot.slane %v6412, 1
    %v6414 = vmax.f32 %v6412, %v6413
    %v6415 = vsel %vm2069, %v5737, -inf
    %v6416 = vrot.slane %v6415, 4
    %v6417 = vmax.f32 %v6415, %v6416
    %v6418 = vrot.slane %v6417, 2
    %v6419 = vmax.f32 %v6417, %v6418
    %v6420 = vrot.slane %v6419, 1
    %v6421 = vmax.f32 %v6419, %v6420
    %v6422 = vsel %vm2069, %v5739, -inf
    %v6423 = vrot.slane %v6422, 4
    %v6424 = vmax.f32 %v6422, %v6423
    %v6425 = vrot.slane %v6424, 2
    %v6426 = vmax.f32 %v6424, %v6425
    %v6427 = vrot.slane %v6426, 1
    %v6428 = vmax.f32 %v6426, %v6427
    %v6429 = vsel %vm2069, %v5747, -inf
    %v6430 = vrot.slane %v6429, 4
    %v6431 = vmax.f32 %v6429, %v6430
    %v6432 = vrot.slane %v6431, 2
    %v6433 = vmax.f32 %v6431, %v6432
    %v6434 = vrot.slane %v6433, 1
    %v6435 = vmax.f32 %v6433, %v6434
    %v6436 = vsel %vm2069, %v5755, -inf
    %v6437 = vrot.slane %v6436, 4
    %v6438 = vmax.f32 %v6436, %v6437
    %v6439 = vrot.slane %v6438, 2
    %v6440 = vmax.f32 %v6438, %v6439
    %v6441 = vrot.slane %v6440, 1
    %v6442 = vmax.f32 %v6440, %v6441
    %v6443 = vsel %vm2069, %v5754, -inf
    %v6444 = vrot.slane %v6443, 4
    %v6445 = vmax.f32 %v6443, %v6444
    %v6446 = vrot.slane %v6445, 2
    %v6447 = vmax.f32 %v6445, %v6446
    %v6448 = vrot.slane %v6447, 1
    %v6449 = vmax.f32 %v6447, %v6448
    %v6450 = vsel %vm2069, %v5756, -inf
    %v6451 = vrot.slane %v6450, 4
    %v6452 = vmax.f32 %v6450, %v6451
    %v6453 = vrot.slane %v6452, 2
    %v6454 = vmax.f32 %v6452, %v6453
    %v6455 = vrot.slane %v6454, 1
    %v6456 = vmax.f32 %v6454, %v6455
    %v6457 = vsel %vm2069, %v5763, -inf
    %v6458 = vrot.slane %v6457, 4
    %v6459 = vmax.f32 %v6457, %v6458
    %v6460 = vrot.slane %v6459, 2
    %v6461 = vmax.f32 %v6459, %v6460
    %v6462 = vrot.slane %v6461, 1
    %v6463 = vmax.f32 %v6461, %v6462
    %v6464 = vsel %vm2069, %v5771, -inf
    %v6465 = vrot.slane %v6464, 4
    %v6466 = vmax.f32 %v6464, %v6465
    %v6467 = vrot.slane %v6466, 2
    %v6468 = vmax.f32 %v6466, %v6467
    %v6469 = vrot.slane %v6468, 1
    %v6470 = vmax.f32 %v6468, %v6469
    %v6471 = vsel %vm2069, %v5779, -inf
    %v6472 = vrot.slane %v6471, 4
    %v6473 = vmax.f32 %v6471, %v6472
    %v6474 = vrot.slane %v6473, 2
    %v6475 = vmax.f32 %v6473, %v6474
    %v6476 = vrot.slane %v6475, 1
    %v6477 = vmax.f32 %v6475, %v6476
    %v6478 = vsel %vm2069, %v5778, -inf
    %v6479 = vrot.slane %v6478, 4
    %v6480 = vmax.f32 %v6478, %v6479
    %v6481 = vrot.slane %v6480, 2
    %v6482 = vmax.f32 %v6480, %v6481
    %v6483 = vrot.slane %v6482, 1
    %v6484 = vmax.f32 %v6482, %v6483
    %v6485 = vsel %vm2069, %v5780, -inf
    %v6486 = vrot.slane %v6485, 4
    %v6487 = vmax.f32 %v6485, %v6486
    %v6488 = vrot.slane %v6487, 2
    %v6489 = vmax.f32 %v6487, %v6488
    %v6490 = vrot.slane %v6489, 1
    %v6491 = vmax.f32 %v6489, %v6490
    %v6492 = vsel %vm2069, %v5788, -inf
    %v6493 = vrot.slane %v6492, 4
    %v6494 = vmax.f32 %v6492, %v6493
    %v6495 = vrot.slane %v6494, 2
    %v6496 = vmax.f32 %v6494, %v6495
    %v6497 = vrot.slane %v6496, 1
    %v6498 = vmax.f32 %v6496, %v6497
    %v6499 = vsel %vm2069, %v5796, -inf
    %v6500 = vrot.slane %v6499, 4
    %v6501 = vmax.f32 %v6499, %v6500
    %v6502 = vrot.slane %v6501, 2
    %v6503 = vmax.f32 %v6501, %v6502
    %v6504 = vrot.slane %v6503, 1
    %v6505 = vmax.f32 %v6503, %v6504
    %v6506 = vsel %vm2069, %v5795, -inf
    %v6507 = vrot.slane %v6506, 4
    %v6508 = vmax.f32 %v6506, %v6507
    %v6509 = vrot.slane %v6508, 2
    %v6510 = vmax.f32 %v6508, %v6509
    %v6511 = vrot.slane %v6510, 1
    %v6512 = vmax.f32 %v6510, %v6511
    %v6513 = vsel %vm2069, %v5797, -inf
    %v6514 = vrot.slane %v6513, 4
    %v6515 = vmax.f32 %v6513, %v6514
    %v6516 = vrot.slane %v6515, 2
    %v6517 = vmax.f32 %v6515, %v6516
    %v6518 = vrot.slane %v6517, 1
    %v6519 = vmax.f32 %v6517, %v6518
    %v6520 = vsel %vm2069, %v5805, -inf
    %v6521 = vrot.slane %v6520, 4
    %v6522 = vmax.f32 %v6520, %v6521
    %v6523 = vrot.slane %v6522, 2
    %v6524 = vmax.f32 %v6522, %v6523
    %v6525 = vrot.slane %v6524, 1
    %v6526 = vmax.f32 %v6524, %v6525
    %v6527 = vsel %vm2069, %v5813, -inf
    %v6528 = vrot.slane %v6527, 4
    %v6529 = vmax.f32 %v6527, %v6528
    %v6530 = vrot.slane %v6529, 2
    %v6531 = vmax.f32 %v6529, %v6530
    %v6532 = vrot.slane %v6531, 1
    %v6533 = vmax.f32 %v6531, %v6532
    %v6534 = vsel %vm2069, %v5812, -inf
    %v6535 = vrot.slane %v6534, 4
    %v6536 = vmax.f32 %v6534, %v6535
    %v6537 = vrot.slane %v6536, 2
    %v6538 = vmax.f32 %v6536, %v6537
    %v6539 = vrot.slane %v6538, 1
    %v6540 = vmax.f32 %v6538, %v6539
    %v6541 = vsel %vm2069, %v5814, -inf
    %v6542 = vrot.slane %v6541, 4
    %v6543 = vmax.f32 %v6541, %v6542
    %v6544 = vrot.slane %v6543, 2
    %v6545 = vmax.f32 %v6543, %v6544
    %v6546 = vrot.slane %v6545, 1
    %v6547 = vmax.f32 %v6545, %v6546
    %v6548 = vsel %vm2069, %v5821, -inf
    %v6549 = vrot.slane %v6548, 4
    %v6550 = vmax.f32 %v6548, %v6549
    %v6551 = vrot.slane %v6550, 2
    %v6552 = vmax.f32 %v6550, %v6551
    %v6553 = vrot.slane %v6552, 1
    %v6554 = vmax.f32 %v6552, %v6553
    %v6555 = vsel %vm2069, %v5829, -inf
    %v6556 = vrot.slane %v6555, 4
    %v6557 = vmax.f32 %v6555, %v6556
    %v6558 = vrot.slane %v6557, 2
    %v6559 = vmax.f32 %v6557, %v6558
    %v6560 = vrot.slane %v6559, 1
    %v6561 = vmax.f32 %v6559, %v6560
    %v6562 = vsel %vm2069, %v5837, -inf
    %v6563 = vrot.slane %v6562, 4
    %v6564 = vmax.f32 %v6562, %v6563
    %v6565 = vrot.slane %v6564, 2
    %v6566 = vmax.f32 %v6564, %v6565
    %v6567 = vrot.slane %v6566, 1
    %v6568 = vmax.f32 %v6566, %v6567
    %v6569 = vsel %vm2069, %v5836, -inf
    %v6570 = vrot.slane %v6569, 4
    %v6571 = vmax.f32 %v6569, %v6570
    %v6572 = vrot.slane %v6571, 2
    %v6573 = vmax.f32 %v6571, %v6572
    %v6574 = vrot.slane %v6573, 1
    %v6575 = vmax.f32 %v6573, %v6574
    %v6576 = vsel %vm2069, %v5838, -inf
    %v6577 = vrot.slane %v6576, 4
    %v6578 = vmax.f32 %v6576, %v6577
    %v6579 = vrot.slane %v6578, 2
    %v6580 = vmax.f32 %v6578, %v6579
    %v6581 = vrot.slane %v6580, 1
    %v6582 = vmax.f32 %v6580, %v6581
    %v6583 = vsel %vm2069, %v5846, -inf
    %v6584 = vrot.slane %v6583, 4
    %v6585 = vmax.f32 %v6583, %v6584
    %v6586 = vrot.slane %v6585, 2
    %v6587 = vmax.f32 %v6585, %v6586
    %v6588 = vrot.slane %v6587, 1
    %v6589 = vmax.f32 %v6587, %v6588
    %v6590 = vsel %vm2069, %v5854, -inf
    %v6591 = vrot.slane %v6590, 4
    %v6592 = vmax.f32 %v6590, %v6591
    %v6593 = vrot.slane %v6592, 2
    %v6594 = vmax.f32 %v6592, %v6593
    %v6595 = vrot.slane %v6594, 1
    %v6596 = vmax.f32 %v6594, %v6595
    %v6597 = vsel %vm2069, %v5853, -inf
    %v6598 = vrot.slane %v6597, 4
    %v6599 = vmax.f32 %v6597, %v6598
    %v6600 = vrot.slane %v6599, 2
    %v6601 = vmax.f32 %v6599, %v6600
    %v6602 = vrot.slane %v6601, 1
    %v6603 = vmax.f32 %v6601, %v6602
    %v6604 = vsel %vm2069, %v5855, -inf
    %v6605 = vrot.slane %v6604, 4
    %v6606 = vmax.f32 %v6604, %v6605
    %v6607 = vrot.slane %v6606, 2
    %v6608 = vmax.f32 %v6606, %v6607
    %v6609 = vrot.slane %v6608, 1
    %v6610 = vmax.f32 %v6608, %v6609
    %v6611 = vsel %vm2069, %v5863, -inf
    %v6612 = vrot.slane %v6611, 4
    %v6613 = vmax.f32 %v6611, %v6612
    %v6614 = vrot.slane %v6613, 2
    %v6615 = vmax.f32 %v6613, %v6614
    %v6616 = vrot.slane %v6615, 1
    %v6617 = vmax.f32 %v6615, %v6616
    %v6618 = vsel %vm2069, %v5871, -inf
    %v6619 = vrot.slane %v6618, 4
    %v6620 = vmax.f32 %v6618, %v6619
    %v6621 = vrot.slane %v6620, 2
    %v6622 = vmax.f32 %v6620, %v6621
    %v6623 = vrot.slane %v6622, 1
    %v6624 = vmax.f32 %v6622, %v6623
    %v6625 = vsel %vm2069, %v5870, -inf
    %v6626 = vrot.slane %v6625, 4
    %v6627 = vmax.f32 %v6625, %v6626
    %v6628 = vrot.slane %v6627, 2
    %v6629 = vmax.f32 %v6627, %v6628
    %v6630 = vrot.slane %v6629, 1
    %v6631 = vmax.f32 %v6629, %v6630
    %v6632 = vsel %vm2069, %v5872, -inf
    %v6633 = vrot.slane %v6632, 4
    %v6634 = vmax.f32 %v6632, %v6633
    %v6635 = vrot.slane %v6634, 2
    %v6636 = vmax.f32 %v6634, %v6635
    %v6637 = vrot.slane %v6636, 1
    %v6638 = vmax.f32 %v6636, %v6637
    %v6639 = vsel %vm2069, %v5879, -inf
    %v6640 = vrot.slane %v6639, 4
    %v6641 = vmax.f32 %v6639, %v6640
    %v6642 = vrot.slane %v6641, 2
    %v6643 = vmax.f32 %v6641, %v6642
    %v6644 = vrot.slane %v6643, 1
    %v6645 = vmax.f32 %v6643, %v6644
    %v6646 = vsel %vm2069, %v5887, -inf
    %v6647 = vrot.slane %v6646, 4
    %v6648 = vmax.f32 %v6646, %v6647
    %v6649 = vrot.slane %v6648, 2
    %v6650 = vmax.f32 %v6648, %v6649
    %v6651 = vrot.slane %v6650, 1
    %v6652 = vmax.f32 %v6650, %v6651
    %v6653 = vsel %vm2069, %v5895, -inf
    %v6654 = vrot.slane %v6653, 4
    %v6655 = vmax.f32 %v6653, %v6654
    %v6656 = vrot.slane %v6655, 2
    %v6657 = vmax.f32 %v6655, %v6656
    %v6658 = vrot.slane %v6657, 1
    %v6659 = vmax.f32 %v6657, %v6658
    %v6660 = vsel %vm2069, %v5894, -inf
    %v6661 = vrot.slane %v6660, 4
    %v6662 = vmax.f32 %v6660, %v6661
    %v6663 = vrot.slane %v6662, 2
    %v6664 = vmax.f32 %v6662, %v6663
    %v6665 = vrot.slane %v6664, 1
    %v6666 = vmax.f32 %v6664, %v6665
    %v6667 = vsel %vm2069, %v5896, -inf
    %v6668 = vrot.slane %v6667, 4
    %v6669 = vmax.f32 %v6667, %v6668
    %v6670 = vrot.slane %v6669, 2
    %v6671 = vmax.f32 %v6669, %v6670
    %v6672 = vrot.slane %v6671, 1
    %v6673 = vmax.f32 %v6671, %v6672
    %v6674 = vsel %vm2069, %v5904, -inf
    %v6675 = vrot.slane %v6674, 4
    %v6676 = vmax.f32 %v6674, %v6675
    %v6677 = vrot.slane %v6676, 2
    %v6678 = vmax.f32 %v6676, %v6677
    %v6679 = vrot.slane %v6678, 1
    %v6680 = vmax.f32 %v6678, %v6679
    %v6681 = vsel %vm2069, %v5912, -inf
    %v6682 = vrot.slane %v6681, 4
    %v6683 = vmax.f32 %v6681, %v6682
    %v6684 = vrot.slane %v6683, 2
    %v6685 = vmax.f32 %v6683, %v6684
    %v6686 = vrot.slane %v6685, 1
    %v6687 = vmax.f32 %v6685, %v6686
    %v6688 = vsel %vm2069, %v5911, -inf
    %v6689 = vrot.slane %v6688, 4
    %v6690 = vmax.f32 %v6688, %v6689
    %v6691 = vrot.slane %v6690, 2
    %v6692 = vmax.f32 %v6690, %v6691
    %v6693 = vrot.slane %v6692, 1
    %v6694 = vmax.f32 %v6692, %v6693
    %v6695 = vsel %vm2069, %v5913, -inf
    %v6696 = vrot.slane %v6695, 4
    %v6697 = vmax.f32 %v6695, %v6696
    %v6698 = vrot.slane %v6697, 2
    %v6699 = vmax.f32 %v6697, %v6698
    %v6700 = vrot.slane %v6699, 1
    %v6701 = vmax.f32 %v6699, %v6700
    %v6702 = vsel %vm2069, %v5921, -inf
    %v6703 = vrot.slane %v6702, 4
    %v6704 = vmax.f32 %v6702, %v6703
    %v6705 = vrot.slane %v6704, 2
    %v6706 = vmax.f32 %v6704, %v6705
    %v6707 = vrot.slane %v6706, 1
    %v6708 = vmax.f32 %v6706, %v6707
    %v6709 = vsel %vm2069, %v5929, -inf
    %v6710 = vrot.slane %v6709, 4
    %v6711 = vmax.f32 %v6709, %v6710
    %v6712 = vrot.slane %v6711, 2
    %v6713 = vmax.f32 %v6711, %v6712
    %v6714 = vrot.slane %v6713, 1
    %v6715 = vmax.f32 %v6713, %v6714
    %v6716 = vsel %vm2069, %v5928, -inf
    %v6717 = vrot.slane %v6716, 4
    %v6718 = vmax.f32 %v6716, %v6717
    %v6719 = vrot.slane %v6718, 2
    %v6720 = vmax.f32 %v6718, %v6719
    %v6721 = vrot.slane %v6720, 1
    %v6722 = vmax.f32 %v6720, %v6721
    %v6723 = vsel %vm2069, %v5930, -inf
    %v6724 = vrot.slane %v6723, 4
    %v6725 = vmax.f32 %v6723, %v6724
    %v6726 = vrot.slane %v6725, 2
    %v6727 = vmax.f32 %v6725, %v6726
    %v6728 = vrot.slane %v6727, 1
    %v6729 = vmax.f32 %v6727, %v6728
    %v6730 = vsel %vm2069, %v5937, -inf
    %v6731 = vrot.slane %v6730, 4
    %v6732 = vmax.f32 %v6730, %v6731
    %v6733 = vrot.slane %v6732, 2
    %v6734 = vmax.f32 %v6732, %v6733
    %v6735 = vrot.slane %v6734, 1
    %v6736 = vmax.f32 %v6734, %v6735
    %v6737 = vsel %vm2069, %v5945, -inf
    %v6738 = vrot.slane %v6737, 4
    %v6739 = vmax.f32 %v6737, %v6738
    %v6740 = vrot.slane %v6739, 2
    %v6741 = vmax.f32 %v6739, %v6740
    %v6742 = vrot.slane %v6741, 1
    %v6743 = vmax.f32 %v6741, %v6742
    %v6744 = vsel %vm2069, %v5953, -inf
    %v6745 = vrot.slane %v6744, 4
    %v6746 = vmax.f32 %v6744, %v6745
    %v6747 = vrot.slane %v6746, 2
    %v6748 = vmax.f32 %v6746, %v6747
    %v6749 = vrot.slane %v6748, 1
    %v6750 = vmax.f32 %v6748, %v6749
    %v6751 = vsel %vm2069, %v5952, -inf
    %v6752 = vrot.slane %v6751, 4
    %v6753 = vmax.f32 %v6751, %v6752
    %v6754 = vrot.slane %v6753, 2
    %v6755 = vmax.f32 %v6753, %v6754
    %v6756 = vrot.slane %v6755, 1
    %v6757 = vmax.f32 %v6755, %v6756
    %v6758 = vsel %vm2069, %v5954, -inf
    %v6759 = vrot.slane %v6758, 4
    %v6760 = vmax.f32 %v6758, %v6759
    %v6761 = vrot.slane %v6760, 2
    %v6762 = vmax.f32 %v6760, %v6761
    %v6763 = vrot.slane %v6762, 1
    %v6764 = vmax.f32 %v6762, %v6763
    %v6765 = vsel %vm2069, %v5962, -inf
    %v6766 = vrot.slane %v6765, 4
    %v6767 = vmax.f32 %v6765, %v6766
    %v6768 = vrot.slane %v6767, 2
    %v6769 = vmax.f32 %v6767, %v6768
    %v6770 = vrot.slane %v6769, 1
    %v6771 = vmax.f32 %v6769, %v6770
    %v6772 = vsel %vm2069, %v5970, -inf
    %v6773 = vrot.slane %v6772, 4
    %v6774 = vmax.f32 %v6772, %v6773
    %v6775 = vrot.slane %v6774, 2
    %v6776 = vmax.f32 %v6774, %v6775
    %v6777 = vrot.slane %v6776, 1
    %v6778 = vmax.f32 %v6776, %v6777
    %v6779 = vsel %vm2069, %v5969, -inf
    %v6780 = vrot.slane %v6779, 4
    %v6781 = vmax.f32 %v6779, %v6780
    %v6782 = vrot.slane %v6781, 2
    %v6783 = vmax.f32 %v6781, %v6782
    %v6784 = vrot.slane %v6783, 1
    %v6785 = vmax.f32 %v6783, %v6784
    %v6786 = vsel %vm2069, %v5971, -inf
    %v6787 = vrot.slane %v6786, 4
    %v6788 = vmax.f32 %v6786, %v6787
    %v6789 = vrot.slane %v6788, 2
    %v6790 = vmax.f32 %v6788, %v6789
    %v6791 = vrot.slane %v6790, 1
    %v6792 = vmax.f32 %v6790, %v6791
    %v6793 = vsel %vm2069, %v5979, -inf
    %v6794 = vrot.slane %v6793, 4
    %v6795 = vmax.f32 %v6793, %v6794
    %v6796 = vrot.slane %v6795, 2
    %v6797 = vmax.f32 %v6795, %v6796
    %v6798 = vrot.slane %v6797, 1
    %v6799 = vmax.f32 %v6797, %v6798
    %v6800 = vsel %vm2069, %v5987, -inf
    %v6801 = vrot.slane %v6800, 4
    %v6802 = vmax.f32 %v6800, %v6801
    %v6803 = vrot.slane %v6802, 2
    %v6804 = vmax.f32 %v6802, %v6803
    %v6805 = vrot.slane %v6804, 1
    %v6806 = vmax.f32 %v6804, %v6805
    %v6807 = vsel %vm2069, %v5986, -inf
    %v6808 = vrot.slane %v6807, 4
    %v6809 = vmax.f32 %v6807, %v6808
    %v6810 = vrot.slane %v6809, 2
    %v6811 = vmax.f32 %v6809, %v6810
    %v6812 = vrot.slane %v6811, 1
    %v6813 = vmax.f32 %v6811, %v6812
    %v6814 = vsel %vm2069, %v5988, -inf
    %v6815 = vrot.slane %v6814, 4
    %v6816 = vmax.f32 %v6814, %v6815
    %v6817 = vrot.slane %v6816, 2
    %v6818 = vmax.f32 %v6816, %v6817
    %v6819 = vrot.slane %v6818, 1
    %v6820 = vmax.f32 %v6818, %v6819
    %v6821 = vsel %vm2069, %v5995, -inf
    %v6822 = vrot.slane %v6821, 4
    %v6823 = vmax.f32 %v6821, %v6822
    %v6824 = vrot.slane %v6823, 2
    %v6825 = vmax.f32 %v6823, %v6824
    %v6826 = vrot.slane %v6825, 1
    %v6827 = vmax.f32 %v6825, %v6826
    %v6932 = vsel %vm3990, %v6113, %v6106
    %v6933 = vsel %vm3992, %v6120, %v6932
    %v6934 = vsel %vm3994, %v6127, %v6933
    %v6935 = vsel %vm3996, %v6134, %v6934
    %v6936 = vsel %vm3998, %v6141, %v6935
    %v6937 = vsel %vm4000, %v6148, %v6936
    %v6938 = vsel %vm4002, %v6155, %v6937
    %v6939 = vsel %vm3990, %v6169, %v6162
    %v6940 = vsel %vm3992, %v6176, %v6939
    %v6941 = vsel %vm3994, %v6183, %v6940
    %v6942 = vsel %vm3996, %v6190, %v6941
    %v6943 = vsel %vm3990, %v6204, %v6197
    %v6944 = vsel %vm3992, %v6211, %v6943
    %v6945 = vsel %vm3994, %v6218, %v6944
    %v6946 = vsel %vm3996, %v6225, %v6945
    %v6947 = vsel %vm3998, %v6232, %v6946
    %v6948 = vsel %vm4000, %v6239, %v6947
    %v6949 = vsel %vm4002, %v6246, %v6948
    %v6950 = vsel %vm3990, %v6260, %v6253
    %v6951 = vsel %vm3992, %v6267, %v6950
    %v6952 = vsel %vm3994, %v6274, %v6951
    %v6953 = vsel %vm3996, %v6281, %v6952
    %v6954 = vsel %vm3990, %v6295, %v6288
    %v6955 = vsel %vm3992, %v6302, %v6954
    %v6956 = vsel %vm3994, %v6309, %v6955
    %v6957 = vsel %vm3996, %v6316, %v6956
    %v6958 = vsel %vm3998, %v6323, %v6957
    %v6959 = vsel %vm4000, %v6330, %v6958
    %v6960 = vsel %vm4002, %v6337, %v6959
    %v6961 = vsel %vm3990, %v6351, %v6344
    %v6962 = vsel %vm3992, %v6358, %v6961
    %v6963 = vsel %vm3994, %v6365, %v6962
    %v6964 = vsel %vm3996, %v6372, %v6963
    %v6965 = vsel %vm3990, %v6386, %v6379
    %v6966 = vsel %vm3992, %v6393, %v6965
    %v6967 = vsel %vm3994, %v6400, %v6966
    %v6968 = vsel %vm3996, %v6407, %v6967
    %v6969 = vsel %vm3998, %v6414, %v6968
    %v6970 = vsel %vm4000, %v6421, %v6969
    %v6971 = vsel %vm4002, %v6428, %v6970
    %v6972 = vsel %vm3990, %v6442, %v6435
    %v6973 = vsel %vm3992, %v6449, %v6972
    %v6974 = vsel %vm3994, %v6456, %v6973
    %v6975 = vsel %vm3996, %v6463, %v6974
    %v6976 = vsel %vm3990, %v6477, %v6470
    %v6977 = vsel %vm3992, %v6484, %v6976
    %v6978 = vsel %vm3994, %v6491, %v6977
    %v6979 = vsel %vm3996, %v6498, %v6978
    %v6980 = vsel %vm3998, %v6505, %v6979
    %v6981 = vsel %vm4000, %v6512, %v6980
    %v6982 = vsel %vm4002, %v6519, %v6981
    %v6983 = vsel %vm3990, %v6533, %v6526
    %v6984 = vsel %vm3992, %v6540, %v6983
    %v6985 = vsel %vm3994, %v6547, %v6984
    %v6986 = vsel %vm3996, %v6554, %v6985
    %v6987 = vsel %vm3990, %v6568, %v6561
    %v6988 = vsel %vm3992, %v6575, %v6987
    %v6989 = vsel %vm3994, %v6582, %v6988
    %v6990 = vsel %vm3996, %v6589, %v6989
    %v6991 = vsel %vm3998, %v6596, %v6990
    %v6992 = vsel %vm4000, %v6603, %v6991
    %v6993 = vsel %vm4002, %v6610, %v6992
    %v6994 = vsel %vm3990, %v6624, %v6617
    %v6995 = vsel %vm3992, %v6631, %v6994
    %v6996 = vsel %vm3994, %v6638, %v6995
    %v6997 = vsel %vm3996, %v6645, %v6996
    %v6998 = vsel %vm3990, %v6659, %v6652
    %v6999 = vsel %vm3992, %v6666, %v6998
    %v7000 = vsel %vm3994, %v6673, %v6999
    %v7001 = vsel %vm3996, %v6680, %v7000
    %v7002 = vsel %vm3998, %v6687, %v7001
    %v7003 = vsel %vm4000, %v6694, %v7002
    %v7004 = vsel %vm4002, %v6701, %v7003
    %v7005 = vsel %vm3990, %v6715, %v6708
    %v7006 = vsel %vm3992, %v6722, %v7005
    %v7007 = vsel %vm3994, %v6729, %v7006
    %v7008 = vsel %vm3996, %v6736, %v7007
    %v7009 = vsel %vm3990, %v6750, %v6743
    %v7010 = vsel %vm3992, %v6757, %v7009
    %v7011 = vsel %vm3994, %v6764, %v7010
    %v7012 = vsel %vm3996, %v6771, %v7011
    %v7013 = vsel %vm3998, %v6778, %v7012
    %v7014 = vsel %vm4000, %v6785, %v7013
    %v7015 = vsel %vm4002, %v6792, %v7014
    %v7016 = vsel %vm3990, %v6806, %v6799
    %v7017 = vsel %vm3992, %v6813, %v7016
    %v7018 = vsel %vm3994, %v6820, %v7017
    %v7019 = vsel %vm3996, %v6827, %v7018
    %7036 = vst [vmem:[%s4] sm:$0xff] %v6938
    %7037 = vst [vmem:[%s4 + $0x8] sm:$0x1f] %v6942
    %7038 = vst [vmem:[%s4 + $0x10] sm:$0xff] %v6949
    %7039 = vst [vmem:[%s4 + $0x18] sm:$0x1f] %v6953
    %7040 = vst [vmem:[%s4 + $0x20] sm:$0xff] %v6960
    %7041 = vst [vmem:[%s4 + $0x28] sm:$0x1f] %v6964
    %7042 = vst [vmem:[%s4 + $0x30] sm:$0xff] %v6971
    %7043 = vst [vmem:[%s4 + $0x38] sm:$0x1f] %v6975
    %7044 = vst [vmem:[%s4 + $0x40] sm:$0xff] %v6982
    %7045 = vst [vmem:[%s4 + $0x48] sm:$0x1f] %v6986
    %7046 = vst [vmem:[%s4 + $0x50] sm:$0xff] %v6993
    %7047 = vst [vmem:[%s4 + $0x58] sm:$0x1f] %v6997
    %7048 = vst [vmem:[%s4 + $0x60] sm:$0xff] %v7004
    %7049 = vst [vmem:[%s4 + $0x68] sm:$0x1f] %v7008
    %7050 = vst [vmem:[%s4 + $0x70] sm:$0xff] %v7015
    %7051 = vst [vmem:[%s4 + $0x78] sm:$0x1f] %v7019
    // Predicated region
    $region22: #{tpu_custom_call.1} parent=1 // pred_check
      _
    $region23: #{tpu_custom_call.1} parent=1 // pred_check_branch
      %7053 = sbr.rel (0) target = $region25
    $region24: #{tpu_custom_call.1} parent=1 // pred_region
      _
    $region25: #{tpu_custom_call.1} parent=1 // pred_fallthru
      _
    // Predicated region
    $region26: #{tpu_custom_call.1} parent=1 // pred_check
      _
    $region27: #{tpu_custom_call.1} parent=1 // pred_check_branch
      %7055 = sbr.rel (0) target = $region29
    $region28: #{tpu_custom_call.1} parent=1 // pred_region
      _
    $region29: #{tpu_custom_call.1} parent=1 // pred_fallthru
      _
    %7056 = vsyncpa [#allocation3], 1

</llo_original>
